<compile_context>
chip_gen: v5e
topology: v5e:2x2
jax: 0.10.0
libtpu: 0.0.40
codegen_flags: <defaults>
</compile_context>

<pallas_src>
import math
import functools

import jax
import jax.numpy as jnp
from jax import lax
from jax.experimental import pallas as pl
from jax.experimental.pallas import tpu as pltpu


# ----------------------------------------------------------------------------
# Pallas kernel: whole batch block per grid step, all layers unrolled inside.
# ----------------------------------------------------------------------------
def attention_extractor_kernel(
    x_ref, pe_ref,
    wqkv_ref, bqkv_ref,                 # fused QKV proj (1/sqrt(Dh) folded into Q)
    wol_ref, bol_ref,                   # fused out_proj + post-attention Linear
    w1_ref, b1_ref, w2_ref, b2_ref,     # feed-forward
    gamma_ref, beta_ref,                # shared LayerNorm
    out_ref,
    *, num_layers: int, num_heads: int,
):
    Bb, S, E = x_ref.shape
    H = num_heads
    Dh = E // H

    gamma = gamma_ref[...]              # (1, E)
    beta = beta_ref[...]                # (1, E)

    def layer_norm(v):                  # v: (M, E); eps = 1e-5 (PyTorch default)
        mu = jnp.mean(v, axis=-1, keepdims=True)
        var = jnp.mean((v - mu) ** 2, axis=-1, keepdims=True)
        return (v - mu) * lax.rsqrt(var + 1e-5) * gamma + beta

    # x = x + positional_encoding
    x = x_ref[...] + pe_ref[...]        # (Bb, S, E)

    for l in range(num_layers):
        # ---- fused QKV projection, batch folded into M = Bb*S ---------------
        xs = x.reshape(Bb * S, E)
        qkv = (jnp.dot(xs, wqkv_ref[l], preferred_element_type=jnp.float32)
               + bqkv_ref[l]).reshape(Bb, S, 3 * E)
        q = qkv[:, :, :E]               # already scaled by 1/sqrt(Dh)
        k = qkv[:, :, E:2 * E]
        v = qkv[:, :, 2 * E:]

        # ---- attention: heads folded into the (single) leading batch dim ----
        # One score einsum, one softmax, one PV einsum per layer (instead of
        # 2H tiny einsums + H softmaxes).
        def split_heads(t):             # (Bb, S, E) -> (H*Bb, S, Dh), head-major
            return jnp.concatenate(
                [t[:, :, h * Dh:(h + 1) * Dh] for h in range(H)], axis=0)

        qh = split_heads(q)
        kh = split_heads(k)
        vh = split_heads(v)

        s = jnp.einsum("nqd,nkd->nqk", qh, kh,
                       preferred_element_type=jnp.float32)      # (H*Bb, S, S)
        s = s - jnp.max(s, axis=-1, keepdims=True)
        p = jnp.exp(s)
        p = p * pl.reciprocal(jnp.sum(p, axis=-1, keepdims=True), approx=True)
        ctx = jnp.einsum("nqk,nkd->nqd", p, vh,
                         preferred_element_type=jnp.float32)    # (H*Bb, S, Dh)

        # merge heads back along the embedding (lane) axis: -> (Bb, S, E)
        attn = jnp.concatenate(
            [ctx[h * Bb:(h + 1) * Bb] for h in range(H)], axis=-1)
        a = attn.reshape(Bb * S, E)

        # ---- fused out_proj+Linear, residual + LayerNorm ---------------------
        # TODO(synk): nn.Dropout is identity here (inference / eval mode).
        a = jnp.dot(a, wol_ref[l], preferred_element_type=jnp.float32) + bol_ref[l]
        y = layer_norm(xs + a)

        # ---- feed-forward (Linear -> ReLU -> Linear), residual + LayerNorm --
        h1 = jnp.maximum(
            jnp.dot(y, w1_ref[l], preferred_element_type=jnp.float32) + b1_ref[l],
            0.0)
        f = jnp.dot(h1, w2_ref[l], preferred_element_type=jnp.float32) + b2_ref[l]
        y = layer_norm(y + f)

        x = y.reshape(Bb, S, E)

    # PyTorch's last layer only keeps the final-timestep query; every
    # post-attention op is row-wise, so slicing the final row here is
    # mathematically identical.
    # TODO(synk): for large S, switch the last layer to a true single-query
    # path (project Q only for row S-1) instead of computing all S rows.
    out_ref[...] = x[:, S - 1, :]                      # (Bb, E)


# ----------------------------------------------------------------------------
# Host-side wrapper
# ----------------------------------------------------------------------------
def attention_extractor_forward(x, pe, kparams, *, num_layers, num_heads,
                                batch_block=None):
    B, S, E = x.shape
    H = num_heads
    F = kparams["w1_t"].shape[-1]
    if batch_block is None:
        # Whole batch per grid step: best on 1-TensorCore parts (v5e/v6e).
        # On v7x (2 TCs/chip) pass batch_block = B // 2 when B is large enough
        # for the (batch_block, E) output block to stay (8,128)-legal, so the
        # "parallel" grid axis spans both cores.
        batch_block = B
    assert B % batch_block == 0
    nb = B // batch_block

    args = (
        x, pe,
        kparams["wqkv_t"], kparams["bqkv"],
        kparams["wol_t"], kparams["bol"],
        kparams["w1_t"], kparams["b1"], kparams["w2_t"], kparams["b2"],
        kparams["ln_g"], kparams["ln_b"],
    )

    # Rough cost hint so XLA schedules / prefetches around the custom call.
    M, Dh = B * S, E // H
    flops = num_layers * (2 * M * E * 3 * E          # fused QKV projection
                          + 4 * B * H * S * S * Dh   # QK^T and PV matmuls
                          + 2 * M * E * E            # fused out_proj + Linear
                          + 4 * M * E * F)           # feed-forward
    transcendentals = num_layers * (B * H * S * S + 2 * M)
    bytes_accessed = 4 * (sum(int(a.size) for a in args) + B * E)

    def build(single_buffer_consts):
        def const_spec(a):
            # Grid-invariant (weights / biases / positional encoding):
            # resident in VMEM every step; single-buffered so the default
            # double-buffer doesn't double their VMEM footprint.
            idx = lambda b, _n=a.ndim: (0,) * _n
            if single_buffer_consts:
                return pl.BlockSpec(a.shape, idx, pipeline_mode=pl.Buffered(1))
            return pl.BlockSpec(a.shape, idx)

        in_specs = [pl.BlockSpec((batch_block, S, E), lambda b: (b, 0, 0))]
        in_specs += [const_spec(a) for a in args[1:]]

        return pl.pallas_call(
            functools.partial(attention_extractor_kernel,
                              num_layers=num_layers, num_heads=num_heads),
            grid=(nb,),
            in_specs=in_specs,
            out_specs=pl.BlockSpec((batch_block, E), lambda b: (b, 0)),
            out_shape=jax.ShapeDtypeStruct((B, E), jnp.float32),
            compiler_params=pltpu.CompilerParams(
                dimension_semantics=("parallel",)),
            cost_estimate=pl.CostEstimate(
                flops=int(flops), transcendentals=int(transcendentals),
                bytes_accessed=int(bytes_accessed)),
        )

    try:
        return build(True)(*args)
    except Exception:
        # Fallback if this jax build rejects single buffering (Buffered(1)).
        return build(False)(*args)


# ----------------------------------------------------------------------------
# Deterministic parameter construction (PyTorch module shapes), then conversion
# to kernel-friendly (pre-transposed, QKV-fused, out_proj+Linear-fused) layouts.
# ----------------------------------------------------------------------------
def get_positional_encoding(hist_len, emb_dim):
    pos = jnp.arange(hist_len, dtype=jnp.float32)[:, None]
    div = jnp.exp(jnp.arange(0, emb_dim, 2, dtype=jnp.float32)
                  * (-math.log(10000.0) / emb_dim))
    ang = pos * div                                     # (S, E/2)
    pe = jnp.stack([jnp.sin(ang), jnp.cos(ang)], axis=-1).reshape(hist_len, emb_dim)
    return pe                                           # (S, E)


def init_torch_shaped_params(key, L, E, F):
    ks = jax.random.split(key, 10)
    r = lambda k, s: 0.05 * jax.random.normal(k, s, dtype=jnp.float32)
    return dict(
        in_proj_w=r(ks[0], (L, 3 * E, E)),   # nn.MultiheadAttention.in_proj_weight
        in_proj_b=r(ks[1], (L, 3 * E)),
        out_proj_w=r(ks[2], (L, E, E)),      # out_proj: Linear(E, E)
        out_proj_b=r(ks[3], (L, E)),
        lin_w=r(ks[4], (L, E, E)),           # linear_layers[i]
        lin_b=r(ks[5], (L, E)),
        ff1_w=r(ks[6], (L, F, E)),           # feedforward Linear(E, F)
        ff1_b=r(ks[7], (L, F)),
        ff2_w=r(ks[8], (L, E, F)),           # feedforward Linear(F, E)
        ff2_b=r(ks[9], (L, E)),
        ln_g=jnp.ones((E,), jnp.float32),    # shared nn.LayerNorm(E)
        ln_b=jnp.zeros((E,), jnp.float32),
    )


def to_kernel_params(p, L, H, E, F):
    Dh = E // H
    scale = 1.0 / math.sqrt(Dh)
    t = lambda W: jnp.transpose(W, (0, 2, 1))           # (L, out, in) -> (L, in, out)

    Wq, Wk, Wv = (p["in_proj_w"][:, :E], p["in_proj_w"][:, E:2 * E],
                  p["in_proj_w"][:, 2 * E:])
    bq, bk, bv = (p["in_proj_b"][:, :E], p["in_proj_b"][:, E:2 * E],
                  p["in_proj_b"][:, 2 * E:])

    # Fused QKV weight (E, 3E) with 1/sqrt(Dh) folded into the Q block.
    wqkv_t = jnp.concatenate([t(Wq) * scale, t(Wk), t(Wv)], axis=-1)  # (L, E, 3E)
    bqkv = jnp.concatenate([bq * scale, bk, bv], axis=-1)[:, None, :]  # (L, 1, 3E)

    # Fold out_proj and the post-attention Linear into ONE weight / bias.
    # (Dropout between them is identity in eval mode.)
    wo_t = t(p["out_proj_w"])                            # (L, E, E) = Wo^T
    wl_t = t(p["lin_w"])                                 # (L, E, E) = Wl^T
    wol_t = jnp.einsum("lij,ljk->lik", wo_t, wl_t)       # (L, E, E)
    bol = (jnp.einsum("lj,ljk->lk", p["out_proj_b"], wl_t)
           + p["lin_b"])[:, None, :]                     # (L, 1, E)

    return dict(
        wqkv_t=wqkv_t, bqkv=bqkv,
        wol_t=wol_t, bol=bol,
        w1_t=t(p["ff1_w"]), b1=p["ff1_b"][:, None, :],
        w2_t=t(p["ff2_w"]), b2=p["ff2_b"][:, None, :],
        ln_g=p["ln_g"][None, :], ln_b=p["ln_b"][None, :],
    )


# ----------------------------------------------------------------------------
# Pure-JAX reference (mirrors the PyTorch forward exactly) for validation.
# ----------------------------------------------------------------------------
def reference_forward(x, pe, p, L, H):
    B, S, E = x.shape
    Dh = E // H
    x = x + pe[None]
    gamma, beta = p["ln_g"], p["ln_b"]

    def ln(v):
        mu = v.mean(-1, keepdims=True)
        var = ((v - mu) ** 2).mean(-1, keepdims=True)
        return (v - mu) / jnp.sqrt(var + 1e-5) * gamma + beta

    for l in range(L):
        q = x if l < L - 1 else x[:, -1:, :]
        Wq, Wk, Wv = p["in_proj_w"][l, :E], p["in_proj_w"][l, E:2 * E], p["in_proj_w"][l, 2 * E:]
        bq, bk, bv = p["in_proj_b"][l, :E], p["in_proj_b"][l, E:2 * E], p["in_proj_b"][l, 2 * E:]
        Q, K, V = q @ Wq.T + bq, x @ Wk.T + bk, x @ Wv.T + bv
        split = lambda t: t.reshape(t.shape[0], t.shape[1], H, Dh).transpose(0, 2, 1, 3)
        Qh, Kh, Vh = split(Q), split(K), split(V)
        s = jnp.einsum("bhqd,bhkd->bhqk", Qh, Kh) / math.sqrt(Dh)
        prob = jax.nn.softmax(s, axis=-1)
        O = jnp.einsum("bhqk,bhkd->bhqd", prob, Vh).transpose(0, 2, 1, 3)
        O = O.reshape(q.shape[0], q.shape[1], E)
        attn = O @ p["out_proj_w"][l].T + p["out_proj_b"][l]
        x_ = attn @ p["lin_w"][l].T + p["lin_b"][l]
        x = ln(q + x_)
        h1 = jax.nn.relu(x @ p["ff1_w"][l].T + p["ff1_b"][l])
        x_ = h1 @ p["ff2_w"][l].T + p["ff2_b"][l]
        x = ln(x + x_)
    return x[:, 0, :]


# ----------------------------------------------------------------------------
if __name__ == "__main__":
    # Small shapes consistent with the module's forward
    B, S, E = 2, 8, 32          # batch, hist_len, emb_dim
    L, H, F = 2, 4, 64          # num_layers, num_heads, feedforward_dim

    key = jax.random.PRNGKey(0)
    kx, kp = jax.random.split(key)
    x = jax.random.normal(kx, (B, S, E), dtype=jnp.float32)

    pe = get_positional_encoding(S, E)
    torch_params = init_torch_shaped_params(kp, L, E, F)
    kparams = to_kernel_params(torch_params, L, H, E, F)

    out = attention_extractor_forward(x, pe, kparams, num_layers=L, num_heads=H)
    out = jax.block_until_ready(out)
    assert out.shape == (B, E), out.shape

    ref = jax.block_until_ready(reference_forward(x, pe, torch_params, L, H))
    assert jnp.allclose(out, ref, atol=3e-3, rtol=3e-3), \
        float(jnp.max(jnp.abs(out - ref)))

    print("KERNEL_OK")
</pallas_src>

<mosaic_0001>
module attributes {stable_mosaic.version = 11 : i64} {
  func.func @attention_extractor_kernel(%arg0: i32, %arg1: memref<2x8x32xf32, #tpu.memory_space<vmem>>, %arg2: memref<8x32xf32, #tpu.memory_space<vmem>>, %arg3: memref<2x32x96xf32, #tpu.memory_space<vmem>>, %arg4: memref<2x1x96xf32, #tpu.memory_space<vmem>>, %arg5: memref<2x32x32xf32, #tpu.memory_space<vmem>>, %arg6: memref<2x1x32xf32, #tpu.memory_space<vmem>>, %arg7: memref<2x32x64xf32, #tpu.memory_space<vmem>>, %arg8: memref<2x1x64xf32, #tpu.memory_space<vmem>>, %arg9: memref<2x64x32xf32, #tpu.memory_space<vmem>>, %arg10: memref<2x1x32xf32, #tpu.memory_space<vmem>>, %arg11: memref<1x32xf32, #tpu.memory_space<vmem>>, %arg12: memref<1x32xf32, #tpu.memory_space<vmem>>, %arg13: memref<2x32xf32, #tpu.memory_space<vmem>>) attributes {dimension_semantics = [#tpu.dimension_semantics<parallel>], iteration_bounds = array<i64: 1>, scalar_prefetch = 0 : i64, scratch_operands = 0 : i64, tpu.core_type = #tpu.core_type<tc>, window_params = [{transform_indices = @transform_0, window_bounds = array<i64: 2, 8, 32>}, {pipeline_mode = #tpu.pipeline_mode<synchronous>, transform_indices = @transform_1, window_bounds = array<i64: 8, 32>}, {pipeline_mode = #tpu.pipeline_mode<synchronous>, transform_indices = @transform_2, window_bounds = array<i64: 2, 32, 96>}, {pipeline_mode = #tpu.pipeline_mode<synchronous>, transform_indices = @transform_3, window_bounds = array<i64: 2, 1, 96>}, {pipeline_mode = #tpu.pipeline_mode<synchronous>, transform_indices = @transform_4, window_bounds = array<i64: 2, 32, 32>}, {pipeline_mode = #tpu.pipeline_mode<synchronous>, transform_indices = @transform_5, window_bounds = array<i64: 2, 1, 32>}, {pipeline_mode = #tpu.pipeline_mode<synchronous>, transform_indices = @transform_6, window_bounds = array<i64: 2, 32, 64>}, {pipeline_mode = #tpu.pipeline_mode<synchronous>, transform_indices = @transform_7, window_bounds = array<i64: 2, 1, 64>}, {pipeline_mode = #tpu.pipeline_mode<synchronous>, transform_indices = @transform_8, window_bounds = array<i64: 2, 64, 32>}, {pipeline_mode = #tpu.pipeline_mode<synchronous>, transform_indices = @transform_9, window_bounds = array<i64: 2, 1, 32>}, {pipeline_mode = #tpu.pipeline_mode<synchronous>, transform_indices = @transform_10, window_bounds = array<i64: 1, 32>}, {pipeline_mode = #tpu.pipeline_mode<synchronous>, transform_indices = @transform_11, window_bounds = array<i64: 1, 32>}, {transform_indices = @transform_12, window_bounds = array<i64: 2, 32>}]} {
    %c0 = arith.constant 0 : index
    %c0_0 = arith.constant 0 : index
    %0 = vector.load %arg11[%c0, %c0_0] : memref<1x32xf32, #tpu.memory_space<vmem>>, vector<1x32xf32>
    %c0_1 = arith.constant 0 : index
    %c0_2 = arith.constant 0 : index
    %1 = vector.load %arg12[%c0_1, %c0_2] : memref<1x32xf32, #tpu.memory_space<vmem>>, vector<1x32xf32>
    %c0_3 = arith.constant 0 : index
    %c0_4 = arith.constant 0 : index
    %c0_5 = arith.constant 0 : index
    %2 = vector.load %arg1[%c0_3, %c0_4, %c0_5] : memref<2x8x32xf32, #tpu.memory_space<vmem>>, vector<2x8x32xf32>
    %c0_6 = arith.constant 0 : index
    %c0_7 = arith.constant 0 : index
    %3 = vector.load %arg2[%c0_6, %c0_7] : memref<8x32xf32, #tpu.memory_space<vmem>>, vector<8x32xf32>
    %4 = vector.shape_cast %3 : vector<8x32xf32> to vector<1x8x32xf32>
    %5 = vector.broadcast %4 : vector<1x8x32xf32> to vector<2x8x32xf32>
    %6 = arith.addf %2, %5 : vector<2x8x32xf32>
    %7 = vector.shape_cast %6 : vector<2x8x32xf32> to vector<16x32xf32>
    %c0_8 = arith.constant 0 : index
    %c0_9 = arith.constant 0 : index
    %c0_10 = arith.constant 0 : index
    %8 = vector.load %arg3[%c0_8, %c0_9, %c0_10] : memref<2x32x96xf32, #tpu.memory_space<vmem>>, vector<1x32x96xf32>
    %9 = vector.shape_cast %8 : vector<1x32x96xf32> to vector<32x96xf32>
    %cst = arith.constant dense<0.000000e+00> : vector<16x96xf32>
    %10 = tpu.matmul %7, %9, %cst {dimension_numbers = #tpu.dot_dimension_numbers<[1], [0], [0], [1], [0, 0, 1, 1], [], []>} : vector<16x32xf32>, vector<32x96xf32>, vector<16x96xf32> -> vector<16x96xf32>
    %c0_11 = arith.constant 0 : index
    %c0_12 = arith.constant 0 : index
    %c0_13 = arith.constant 0 : index
    %11 = vector.load %arg4[%c0_11, %c0_12, %c0_13] : memref<2x1x96xf32, #tpu.memory_space<vmem>>, vector<1x1x96xf32>
    %12 = vector.shape_cast %11 : vector<1x1x96xf32> to vector<1x96xf32>
    %13 = vector.broadcast %12 : vector<1x96xf32> to vector<16x96xf32>
    %14 = arith.addf %10, %13 : vector<16x96xf32>
    %15 = vector.shape_cast %14 : vector<16x96xf32> to vector<2x8x96xf32>
    %16 = vector.extract_strided_slice %15 {offsets = [0, 0, 0], sizes = [2, 8, 32], strides = [1, 1, 1]} : vector<2x8x96xf32> to vector<2x8x32xf32>
    %17 = vector.extract_strided_slice %15 {offsets = [0, 0, 32], sizes = [2, 8, 32], strides = [1, 1, 1]} : vector<2x8x96xf32> to vector<2x8x32xf32>
    %18 = vector.extract_strided_slice %15 {offsets = [0, 0, 64], sizes = [2, 8, 32], strides = [1, 1, 1]} : vector<2x8x96xf32> to vector<2x8x32xf32>
    %19 = vector.extract_strided_slice %16 {offsets = [0, 0, 0], sizes = [2, 8, 8], strides = [1, 1, 1]} : vector<2x8x32xf32> to vector<2x8x8xf32>
    %20 = vector.extract_strided_slice %16 {offsets = [0, 0, 8], sizes = [2, 8, 8], strides = [1, 1, 1]} : vector<2x8x32xf32> to vector<2x8x8xf32>
    %21 = vector.extract_strided_slice %16 {offsets = [0, 0, 16], sizes = [2, 8, 8], strides = [1, 1, 1]} : vector<2x8x32xf32> to vector<2x8x8xf32>
    %22 = vector.extract_strided_slice %16 {offsets = [0, 0, 24], sizes = [2, 8, 8], strides = [1, 1, 1]} : vector<2x8x32xf32> to vector<2x8x8xf32>
    %23 = tpu.concatenate %19, %20, %21, %22 in 0 : vector<2x8x8xf32>, vector<2x8x8xf32>, vector<2x8x8xf32>, vector<2x8x8xf32> -> vector<8x8x8xf32>
    %24 = vector.extract_strided_slice %17 {offsets = [0, 0, 0], sizes = [2, 8, 8], strides = [1, 1, 1]} : vector<2x8x32xf32> to vector<2x8x8xf32>
    %25 = vector.extract_strided_slice %17 {offsets = [0, 0, 8], sizes = [2, 8, 8], strides = [1, 1, 1]} : vector<2x8x32xf32> to vector<2x8x8xf32>
    %26 = vector.extract_strided_slice %17 {offsets = [0, 0, 16], sizes = [2, 8, 8], strides = [1, 1, 1]} : vector<2x8x32xf32> to vector<2x8x8xf32>
    %27 = vector.extract_strided_slice %17 {offsets = [0, 0, 24], sizes = [2, 8, 8], strides = [1, 1, 1]} : vector<2x8x32xf32> to vector<2x8x8xf32>
    %28 = tpu.concatenate %24, %25, %26, %27 in 0 : vector<2x8x8xf32>, vector<2x8x8xf32>, vector<2x8x8xf32>, vector<2x8x8xf32> -> vector<8x8x8xf32>
    %29 = vector.extract_strided_slice %18 {offsets = [0, 0, 0], sizes = [2, 8, 8], strides = [1, 1, 1]} : vector<2x8x32xf32> to vector<2x8x8xf32>
    %30 = vector.extract_strided_slice %18 {offsets = [0, 0, 8], sizes = [2, 8, 8], strides = [1, 1, 1]} : vector<2x8x32xf32> to vector<2x8x8xf32>
    %31 = vector.extract_strided_slice %18 {offsets = [0, 0, 16], sizes = [2, 8, 8], strides = [1, 1, 1]} : vector<2x8x32xf32> to vector<2x8x8xf32>
    %32 = vector.extract_strided_slice %18 {offsets = [0, 0, 24], sizes = [2, 8, 8], strides = [1, 1, 1]} : vector<2x8x32xf32> to vector<2x8x8xf32>
    %33 = tpu.concatenate %29, %30, %31, %32 in 0 : vector<2x8x8xf32>, vector<2x8x8xf32>, vector<2x8x8xf32>, vector<2x8x8xf32> -> vector<8x8x8xf32>
    "tpu.trace_start"() <{level = 10 : i32, message = "nqd,nkd->nqk"}> : () -> ()
    %cst_14 = arith.constant dense<0.000000e+00> : vector<8x8x8xf32>
    %34 = tpu.matmul %23, %28, %cst_14 {dimension_numbers = #tpu.dot_dimension_numbers<[2], [2], [1], [1], [0, 0, 0, 1, 1, 1], [0], [0]>} : vector<8x8x8xf32>, vector<8x8x8xf32>, vector<8x8x8xf32> -> vector<8x8x8xf32>
    "tpu.trace_stop"() : () -> ()
    %cst_15 = arith.constant dense<0xFF800000> : vector<8x8xf32>
    %35 = vector.multi_reduction <maximumf>, %34, %cst_15 [2] : vector<8x8x8xf32> to vector<8x8xf32>
    %36 = vector.shape_cast %35 : vector<8x8xf32> to vector<8x8x1xf32>
    %37 = vector.broadcast %36 : vector<8x8x1xf32> to vector<8x8x8xf32>
    %38 = arith.subf %34, %37 : vector<8x8x8xf32>
    %39 = math.exp %38 : vector<8x8x8xf32>
    %cst_16 = arith.constant dense<0.000000e+00> : vector<8x8xf32>
    %40 = vector.multi_reduction <add>, %39, %cst_16 [2] : vector<8x8x8xf32> to vector<8x8xf32>
    %41 = vector.shape_cast %40 : vector<8x8xf32> to vector<8x8x1xf32>
    %42 = tpu.reciprocal %41 {approx = true} : vector<8x8x1xf32> -> vector<8x8x1xf32>
    %43 = vector.broadcast %42 : vector<8x8x1xf32> to vector<8x8x8xf32>
    %44 = arith.mulf %39, %43 : vector<8x8x8xf32>
    "tpu.trace_start"() <{level = 10 : i32, message = "nqk,nkd->nqd"}> : () -> ()
    %cst_17 = arith.constant dense<0.000000e+00> : vector<8x8x8xf32>
    %45 = tpu.matmul %44, %33, %cst_17 {dimension_numbers = #tpu.dot_dimension_numbers<[2], [1], [1], [2], [0, 0, 0, 1, 1, 2], [0], [0]>} : vector<8x8x8xf32>, vector<8x8x8xf32>, vector<8x8x8xf32> -> vector<8x8x8xf32>
    "tpu.trace_stop"() : () -> ()
    %46 = vector.extract_strided_slice %45 {offsets = [0, 0, 0], sizes = [2, 8, 8], strides = [1, 1, 1]} : vector<8x8x8xf32> to vector<2x8x8xf32>
    %47 = vector.extract_strided_slice %45 {offsets = [2, 0, 0], sizes = [2, 8, 8], strides = [1, 1, 1]} : vector<8x8x8xf32> to vector<2x8x8xf32>
    %48 = vector.extract_strided_slice %45 {offsets = [4, 0, 0], sizes = [2, 8, 8], strides = [1, 1, 1]} : vector<8x8x8xf32> to vector<2x8x8xf32>
    %49 = vector.extract_strided_slice %45 {offsets = [6, 0, 0], sizes = [2, 8, 8], strides = [1, 1, 1]} : vector<8x8x8xf32> to vector<2x8x8xf32>
    %50 = tpu.concatenate %46, %47, %48, %49 in 2 : vector<2x8x8xf32>, vector<2x8x8xf32>, vector<2x8x8xf32>, vector<2x8x8xf32> -> vector<2x8x32xf32>
    %51 = vector.shape_cast %50 : vector<2x8x32xf32> to vector<16x32xf32>
    %c0_18 = arith.constant 0 : index
    %c0_19 = arith.constant 0 : index
    %c0_20 = arith.constant 0 : index
    %52 = vector.load %arg5[%c0_18, %c0_19, %c0_20] : memref<2x32x32xf32, #tpu.memory_space<vmem>>, vector<1x32x32xf32>
    %53 = vector.shape_cast %52 : vector<1x32x32xf32> to vector<32x32xf32>
    %cst_21 = arith.constant dense<0.000000e+00> : vector<16x32xf32>
    %54 = tpu.matmul %51, %53, %cst_21 {dimension_numbers = #tpu.dot_dimension_numbers<[1], [0], [0], [1], [0, 0, 1, 1], [], []>} : vector<16x32xf32>, vector<32x32xf32>, vector<16x32xf32> -> vector<16x32xf32>
    %c0_22 = arith.constant 0 : index
    %c0_23 = arith.constant 0 : index
    %c0_24 = arith.constant 0 : index
    %55 = vector.load %arg6[%c0_22, %c0_23, %c0_24] : memref<2x1x32xf32, #tpu.memory_space<vmem>>, vector<1x1x32xf32>
    %56 = vector.shape_cast %55 : vector<1x1x32xf32> to vector<1x32xf32>
    %57 = vector.broadcast %56 : vector<1x32xf32> to vector<16x32xf32>
    %58 = arith.addf %54, %57 : vector<16x32xf32>
    %59 = arith.addf %7, %58 : vector<16x32xf32>
    %cst_25 = arith.constant dense<0.000000e+00> : vector<16xf32>
    %60 = vector.multi_reduction <add>, %59, %cst_25 [1] : vector<16x32xf32> to vector<16xf32>
    %61 = vector.shape_cast %60 : vector<16xf32> to vector<16x1xf32>
    %cst_26 = arith.constant 3.200000e+01 : f32
    %62 = vector.broadcast %cst_26 : f32 to vector<16x1xf32>
    %63 = arith.divf %61, %62 : vector<16x1xf32>
    %64 = vector.broadcast %63 : vector<16x1xf32> to vector<16x32xf32>
    %65 = arith.subf %59, %64 : vector<16x32xf32>
    %66 = arith.mulf %65, %65 : vector<16x32xf32>
    %cst_27 = arith.constant dense<0.000000e+00> : vector<16xf32>
    %67 = vector.multi_reduction <add>, %66, %cst_27 [1] : vector<16x32xf32> to vector<16xf32>
    %68 = vector.shape_cast %67 : vector<16xf32> to vector<16x1xf32>
    %cst_28 = arith.constant 3.200000e+01 : f32
    %69 = vector.broadcast %cst_28 : f32 to vector<16x1xf32>
    %70 = arith.divf %68, %69 : vector<16x1xf32>
    %71 = vector.broadcast %63 : vector<16x1xf32> to vector<16x32xf32>
    %72 = arith.subf %59, %71 : vector<16x32xf32>
    %cst_29 = arith.constant 9.99999974E-6 : f32
    %73 = vector.broadcast %cst_29 : f32 to vector<16x1xf32>
    %74 = arith.addf %70, %73 : vector<16x1xf32>
    %75 = math.rsqrt %74 : vector<16x1xf32>
    %76 = vector.broadcast %75 : vector<16x1xf32> to vector<16x32xf32>
    %77 = arith.mulf %72, %76 : vector<16x32xf32>
    %78 = vector.broadcast %0 : vector<1x32xf32> to vector<16x32xf32>
    %79 = arith.mulf %77, %78 : vector<16x32xf32>
    %80 = vector.broadcast %1 : vector<1x32xf32> to vector<16x32xf32>
    %81 = arith.addf %79, %80 : vector<16x32xf32>
    %c0_30 = arith.constant 0 : index
    %c0_31 = arith.constant 0 : index
    %c0_32 = arith.constant 0 : index
    %82 = vector.load %arg7[%c0_30, %c0_31, %c0_32] : memref<2x32x64xf32, #tpu.memory_space<vmem>>, vector<1x32x64xf32>
    %83 = vector.shape_cast %82 : vector<1x32x64xf32> to vector<32x64xf32>
    %cst_33 = arith.constant dense<0.000000e+00> : vector<16x64xf32>
    %84 = tpu.matmul %81, %83, %cst_33 {dimension_numbers = #tpu.dot_dimension_numbers<[1], [0], [0], [1], [0, 0, 1, 1], [], []>} : vector<16x32xf32>, vector<32x64xf32>, vector<16x64xf32> -> vector<16x64xf32>
    %c0_34 = arith.constant 0 : index
    %c0_35 = arith.constant 0 : index
    %c0_36 = arith.constant 0 : index
    %85 = vector.load %arg8[%c0_34, %c0_35, %c0_36] : memref<2x1x64xf32, #tpu.memory_space<vmem>>, vector<1x1x64xf32>
    %86 = vector.shape_cast %85 : vector<1x1x64xf32> to vector<1x64xf32>
    %87 = vector.broadcast %86 : vector<1x64xf32> to vector<16x64xf32>
    %88 = arith.addf %84, %87 : vector<16x64xf32>
    %cst_37 = arith.constant 0.000000e+00 : f32
    %89 = vector.broadcast %cst_37 : f32 to vector<16x64xf32>
    %90 = arith.maximumf %88, %89 : vector<16x64xf32>
    %c0_38 = arith.constant 0 : index
    %c0_39 = arith.constant 0 : index
    %c0_40 = arith.constant 0 : index
    %91 = vector.load %arg9[%c0_38, %c0_39, %c0_40] : memref<2x64x32xf32, #tpu.memory_space<vmem>>, vector<1x64x32xf32>
    %92 = vector.shape_cast %91 : vector<1x64x32xf32> to vector<64x32xf32>
    %cst_41 = arith.constant dense<0.000000e+00> : vector<16x32xf32>
    %93 = tpu.matmul %90, %92, %cst_41 {dimension_numbers = #tpu.dot_dimension_numbers<[1], [0], [0], [1], [0, 0, 1, 1], [], []>} : vector<16x64xf32>, vector<64x32xf32>, vector<16x32xf32> -> vector<16x32xf32>
    %c0_42 = arith.constant 0 : index
    %c0_43 = arith.constant 0 : index
    %c0_44 = arith.constant 0 : index
    %94 = vector.load %arg10[%c0_42, %c0_43, %c0_44] : memref<2x1x32xf32, #tpu.memory_space<vmem>>, vector<1x1x32xf32>
    %95 = vector.shape_cast %94 : vector<1x1x32xf32> to vector<1x32xf32>
    %96 = vector.broadcast %95 : vector<1x32xf32> to vector<16x32xf32>
    %97 = arith.addf %93, %96 : vector<16x32xf32>
    %98 = arith.addf %81, %97 : vector<16x32xf32>
    %cst_45 = arith.constant dense<0.000000e+00> : vector<16xf32>
    %99 = vector.multi_reduction <add>, %98, %cst_45 [1] : vector<16x32xf32> to vector<16xf32>
    %100 = vector.shape_cast %99 : vector<16xf32> to vector<16x1xf32>
    %cst_46 = arith.constant 3.200000e+01 : f32
    %101 = vector.broadcast %cst_46 : f32 to vector<16x1xf32>
    %102 = arith.divf %100, %101 : vector<16x1xf32>
    %103 = vector.broadcast %102 : vector<16x1xf32> to vector<16x32xf32>
    %104 = arith.subf %98, %103 : vector<16x32xf32>
    %105 = arith.mulf %104, %104 : vector<16x32xf32>
    %cst_47 = arith.constant dense<0.000000e+00> : vector<16xf32>
    %106 = vector.multi_reduction <add>, %105, %cst_47 [1] : vector<16x32xf32> to vector<16xf32>
    %107 = vector.shape_cast %106 : vector<16xf32> to vector<16x1xf32>
    %cst_48 = arith.constant 3.200000e+01 : f32
    %108 = vector.broadcast %cst_48 : f32 to vector<16x1xf32>
    %109 = arith.divf %107, %108 : vector<16x1xf32>
    %110 = vector.broadcast %102 : vector<16x1xf32> to vector<16x32xf32>
    %111 = arith.subf %98, %110 : vector<16x32xf32>
    %cst_49 = arith.constant 9.99999974E-6 : f32
    %112 = vector.broadcast %cst_49 : f32 to vector<16x1xf32>
    %113 = arith.addf %109, %112 : vector<16x1xf32>
    %114 = math.rsqrt %113 : vector<16x1xf32>
    %115 = vector.broadcast %114 : vector<16x1xf32> to vector<16x32xf32>
    %116 = arith.mulf %111, %115 : vector<16x32xf32>
    %117 = vector.broadcast %0 : vector<1x32xf32> to vector<16x32xf32>
    %118 = arith.mulf %116, %117 : vector<16x32xf32>
    %119 = vector.broadcast %1 : vector<1x32xf32> to vector<16x32xf32>
    %120 = arith.addf %118, %119 : vector<16x32xf32>
    %121 = vector.shape_cast %120 : vector<16x32xf32> to vector<2x8x32xf32>
    %122 = vector.shape_cast %121 : vector<2x8x32xf32> to vector<16x32xf32>
    %c1 = arith.constant 1 : index
    %c0_50 = arith.constant 0 : index
    %c0_51 = arith.constant 0 : index
    %123 = vector.load %arg3[%c1, %c0_50, %c0_51] : memref<2x32x96xf32, #tpu.memory_space<vmem>>, vector<1x32x96xf32>
    %124 = vector.shape_cast %123 : vector<1x32x96xf32> to vector<32x96xf32>
    %cst_52 = arith.constant dense<0.000000e+00> : vector<16x96xf32>
    %125 = tpu.matmul %122, %124, %cst_52 {dimension_numbers = #tpu.dot_dimension_numbers<[1], [0], [0], [1], [0, 0, 1, 1], [], []>} : vector<16x32xf32>, vector<32x96xf32>, vector<16x96xf32> -> vector<16x96xf32>
    %c1_53 = arith.constant 1 : index
    %c0_54 = arith.constant 0 : index
    %c0_55 = arith.constant 0 : index
    %126 = vector.load %arg4[%c1_53, %c0_54, %c0_55] : memref<2x1x96xf32, #tpu.memory_space<vmem>>, vector<1x1x96xf32>
    %127 = vector.shape_cast %126 : vector<1x1x96xf32> to vector<1x96xf32>
    %128 = vector.broadcast %127 : vector<1x96xf32> to vector<16x96xf32>
    %129 = arith.addf %125, %128 : vector<16x96xf32>
    %130 = vector.shape_cast %129 : vector<16x96xf32> to vector<2x8x96xf32>
    %131 = vector.extract_strided_slice %130 {offsets = [0, 0, 0], sizes = [2, 8, 32], strides = [1, 1, 1]} : vector<2x8x96xf32> to vector<2x8x32xf32>
    %132 = vector.extract_strided_slice %130 {offsets = [0, 0, 32], sizes = [2, 8, 32], strides = [1, 1, 1]} : vector<2x8x96xf32> to vector<2x8x32xf32>
    %133 = vector.extract_strided_slice %130 {offsets = [0, 0, 64], sizes = [2, 8, 32], strides = [1, 1, 1]} : vector<2x8x96xf32> to vector<2x8x32xf32>
    %134 = vector.extract_strided_slice %131 {offsets = [0, 0, 0], sizes = [2, 8, 8], strides = [1, 1, 1]} : vector<2x8x32xf32> to vector<2x8x8xf32>
    %135 = vector.extract_strided_slice %131 {offsets = [0, 0, 8], sizes = [2, 8, 8], strides = [1, 1, 1]} : vector<2x8x32xf32> to vector<2x8x8xf32>
    %136 = vector.extract_strided_slice %131 {offsets = [0, 0, 16], sizes = [2, 8, 8], strides = [1, 1, 1]} : vector<2x8x32xf32> to vector<2x8x8xf32>
    %137 = vector.extract_strided_slice %131 {offsets = [0, 0, 24], sizes = [2, 8, 8], strides = [1, 1, 1]} : vector<2x8x32xf32> to vector<2x8x8xf32>
    %138 = tpu.concatenate %134, %135, %136, %137 in 0 : vector<2x8x8xf32>, vector<2x8x8xf32>, vector<2x8x8xf32>, vector<2x8x8xf32> -> vector<8x8x8xf32>
    %139 = vector.extract_strided_slice %132 {offsets = [0, 0, 0], sizes = [2, 8, 8], strides = [1, 1, 1]} : vector<2x8x32xf32> to vector<2x8x8xf32>
    %140 = vector.extract_strided_slice %132 {offsets = [0, 0, 8], sizes = [2, 8, 8], strides = [1, 1, 1]} : vector<2x8x32xf32> to vector<2x8x8xf32>
    %141 = vector.extract_strided_slice %132 {offsets = [0, 0, 16], sizes = [2, 8, 8], strides = [1, 1, 1]} : vector<2x8x32xf32> to vector<2x8x8xf32>
    %142 = vector.extract_strided_slice %132 {offsets = [0, 0, 24], sizes = [2, 8, 8], strides = [1, 1, 1]} : vector<2x8x32xf32> to vector<2x8x8xf32>
    %143 = tpu.concatenate %139, %140, %141, %142 in 0 : vector<2x8x8xf32>, vector<2x8x8xf32>, vector<2x8x8xf32>, vector<2x8x8xf32> -> vector<8x8x8xf32>
    %144 = vector.extract_strided_slice %133 {offsets = [0, 0, 0], sizes = [2, 8, 8], strides = [1, 1, 1]} : vector<2x8x32xf32> to vector<2x8x8xf32>
    %145 = vector.extract_strided_slice %133 {offsets = [0, 0, 8], sizes = [2, 8, 8], strides = [1, 1, 1]} : vector<2x8x32xf32> to vector<2x8x8xf32>
    %146 = vector.extract_strided_slice %133 {offsets = [0, 0, 16], sizes = [2, 8, 8], strides = [1, 1, 1]} : vector<2x8x32xf32> to vector<2x8x8xf32>
    %147 = vector.extract_strided_slice %133 {offsets = [0, 0, 24], sizes = [2, 8, 8], strides = [1, 1, 1]} : vector<2x8x32xf32> to vector<2x8x8xf32>
    %148 = tpu.concatenate %144, %145, %146, %147 in 0 : vector<2x8x8xf32>, vector<2x8x8xf32>, vector<2x8x8xf32>, vector<2x8x8xf32> -> vector<8x8x8xf32>
    "tpu.trace_start"() <{level = 10 : i32, message = "nqd,nkd->nqk"}> : () -> ()
    %cst_56 = arith.constant dense<0.000000e+00> : vector<8x8x8xf32>
    %149 = tpu.matmul %138, %143, %cst_56 {dimension_numbers = #tpu.dot_dimension_numbers<[2], [2], [1], [1], [0, 0, 0, 1, 1, 1], [0], [0]>} : vector<8x8x8xf32>, vector<8x8x8xf32>, vector<8x8x8xf32> -> vector<8x8x8xf32>
    "tpu.trace_stop"() : () -> ()
    %cst_57 = arith.constant dense<0xFF800000> : vector<8x8xf32>
    %150 = vector.multi_reduction <maximumf>, %149, %cst_57 [2] : vector<8x8x8xf32> to vector<8x8xf32>
    %151 = vector.shape_cast %150 : vector<8x8xf32> to vector<8x8x1xf32>
    %152 = vector.broadcast %151 : vector<8x8x1xf32> to vector<8x8x8xf32>
    %153 = arith.subf %149, %152 : vector<8x8x8xf32>
    %154 = math.exp %153 : vector<8x8x8xf32>
    %cst_58 = arith.constant dense<0.000000e+00> : vector<8x8xf32>
    %155 = vector.multi_reduction <add>, %154, %cst_58 [2] : vector<8x8x8xf32> to vector<8x8xf32>
    %156 = vector.shape_cast %155 : vector<8x8xf32> to vector<8x8x1xf32>
    %157 = tpu.reciprocal %156 {approx = true} : vector<8x8x1xf32> -> vector<8x8x1xf32>
    %158 = vector.broadcast %157 : vector<8x8x1xf32> to vector<8x8x8xf32>
    %159 = arith.mulf %154, %158 : vector<8x8x8xf32>
    "tpu.trace_start"() <{level = 10 : i32, message = "nqk,nkd->nqd"}> : () -> ()
    %cst_59 = arith.constant dense<0.000000e+00> : vector<8x8x8xf32>
    %160 = tpu.matmul %159, %148, %cst_59 {dimension_numbers = #tpu.dot_dimension_numbers<[2], [1], [1], [2], [0, 0, 0, 1, 1, 2], [0], [0]>} : vector<8x8x8xf32>, vector<8x8x8xf32>, vector<8x8x8xf32> -> vector<8x8x8xf32>
    "tpu.trace_stop"() : () -> ()
    %161 = vector.extract_strided_slice %160 {offsets = [0, 0, 0], sizes = [2, 8, 8], strides = [1, 1, 1]} : vector<8x8x8xf32> to vector<2x8x8xf32>
    %162 = vector.extract_strided_slice %160 {offsets = [2, 0, 0], sizes = [2, 8, 8], strides = [1, 1, 1]} : vector<8x8x8xf32> to vector<2x8x8xf32>
    %163 = vector.extract_strided_slice %160 {offsets = [4, 0, 0], sizes = [2, 8, 8], strides = [1, 1, 1]} : vector<8x8x8xf32> to vector<2x8x8xf32>
    %164 = vector.extract_strided_slice %160 {offsets = [6, 0, 0], sizes = [2, 8, 8], strides = [1, 1, 1]} : vector<8x8x8xf32> to vector<2x8x8xf32>
    %165 = tpu.concatenate %161, %162, %163, %164 in 2 : vector<2x8x8xf32>, vector<2x8x8xf32>, vector<2x8x8xf32>, vector<2x8x8xf32> -> vector<2x8x32xf32>
    %166 = vector.shape_cast %165 : vector<2x8x32xf32> to vector<16x32xf32>
    %c1_60 = arith.constant 1 : index
    %c0_61 = arith.constant 0 : index
    %c0_62 = arith.constant 0 : index
    %167 = vector.load %arg5[%c1_60, %c0_61, %c0_62] : memref<2x32x32xf32, #tpu.memory_space<vmem>>, vector<1x32x32xf32>
    %168 = vector.shape_cast %167 : vector<1x32x32xf32> to vector<32x32xf32>
    %cst_63 = arith.constant dense<0.000000e+00> : vector<16x32xf32>
    %169 = tpu.matmul %166, %168, %cst_63 {dimension_numbers = #tpu.dot_dimension_numbers<[1], [0], [0], [1], [0, 0, 1, 1], [], []>} : vector<16x32xf32>, vector<32x32xf32>, vector<16x32xf32> -> vector<16x32xf32>
    %c1_64 = arith.constant 1 : index
    %c0_65 = arith.constant 0 : index
    %c0_66 = arith.constant 0 : index
    %170 = vector.load %arg6[%c1_64, %c0_65, %c0_66] : memref<2x1x32xf32, #tpu.memory_space<vmem>>, vector<1x1x32xf32>
    %171 = vector.shape_cast %170 : vector<1x1x32xf32> to vector<1x32xf32>
    %172 = vector.broadcast %171 : vector<1x32xf32> to vector<16x32xf32>
    %173 = arith.addf %169, %172 : vector<16x32xf32>
    %174 = arith.addf %122, %173 : vector<16x32xf32>
    %cst_67 = arith.constant dense<0.000000e+00> : vector<16xf32>
    %175 = vector.multi_reduction <add>, %174, %cst_67 [1] : vector<16x32xf32> to vector<16xf32>
    %176 = vector.shape_cast %175 : vector<16xf32> to vector<16x1xf32>
    %cst_68 = arith.constant 3.200000e+01 : f32
    %177 = vector.broadcast %cst_68 : f32 to vector<16x1xf32>
    %178 = arith.divf %176, %177 : vector<16x1xf32>
    %179 = vector.broadcast %178 : vector<16x1xf32> to vector<16x32xf32>
    %180 = arith.subf %174, %179 : vector<16x32xf32>
    %181 = arith.mulf %180, %180 : vector<16x32xf32>
    %cst_69 = arith.constant dense<0.000000e+00> : vector<16xf32>
    %182 = vector.multi_reduction <add>, %181, %cst_69 [1] : vector<16x32xf32> to vector<16xf32>
    %183 = vector.shape_cast %182 : vector<16xf32> to vector<16x1xf32>
    %cst_70 = arith.constant 3.200000e+01 : f32
    %184 = vector.broadcast %cst_70 : f32 to vector<16x1xf32>
    %185 = arith.divf %183, %184 : vector<16x1xf32>
    %186 = vector.broadcast %178 : vector<16x1xf32> to vector<16x32xf32>
    %187 = arith.subf %174, %186 : vector<16x32xf32>
    %cst_71 = arith.constant 9.99999974E-6 : f32
    %188 = vector.broadcast %cst_71 : f32 to vector<16x1xf32>
    %189 = arith.addf %185, %188 : vector<16x1xf32>
    %190 = math.rsqrt %189 : vector<16x1xf32>
    %191 = vector.broadcast %190 : vector<16x1xf32> to vector<16x32xf32>
    %192 = arith.mulf %187, %191 : vector<16x32xf32>
    %193 = vector.broadcast %0 : vector<1x32xf32> to vector<16x32xf32>
    %194 = arith.mulf %192, %193 : vector<16x32xf32>
    %195 = vector.broadcast %1 : vector<1x32xf32> to vector<16x32xf32>
    %196 = arith.addf %194, %195 : vector<16x32xf32>
    %c1_72 = arith.constant 1 : index
    %c0_73 = arith.constant 0 : index
    %c0_74 = arith.constant 0 : index
    %197 = vector.load %arg7[%c1_72, %c0_73, %c0_74] : memref<2x32x64xf32, #tpu.memory_space<vmem>>, vector<1x32x64xf32>
    %198 = vector.shape_cast %197 : vector<1x32x64xf32> to vector<32x64xf32>
    %cst_75 = arith.constant dense<0.000000e+00> : vector<16x64xf32>
    %199 = tpu.matmul %196, %198, %cst_75 {dimension_numbers = #tpu.dot_dimension_numbers<[1], [0], [0], [1], [0, 0, 1, 1], [], []>} : vector<16x32xf32>, vector<32x64xf32>, vector<16x64xf32> -> vector<16x64xf32>
    %c1_76 = arith.constant 1 : index
    %c0_77 = arith.constant 0 : index
    %c0_78 = arith.constant 0 : index
    %200 = vector.load %arg8[%c1_76, %c0_77, %c0_78] : memref<2x1x64xf32, #tpu.memory_space<vmem>>, vector<1x1x64xf32>
    %201 = vector.shape_cast %200 : vector<1x1x64xf32> to vector<1x64xf32>
    %202 = vector.broadcast %201 : vector<1x64xf32> to vector<16x64xf32>
    %203 = arith.addf %199, %202 : vector<16x64xf32>
    %cst_79 = arith.constant 0.000000e+00 : f32
    %204 = vector.broadcast %cst_79 : f32 to vector<16x64xf32>
    %205 = arith.maximumf %203, %204 : vector<16x64xf32>
    %c1_80 = arith.constant 1 : index
    %c0_81 = arith.constant 0 : index
    %c0_82 = arith.constant 0 : index
    %206 = vector.load %arg9[%c1_80, %c0_81, %c0_82] : memref<2x64x32xf32, #tpu.memory_space<vmem>>, vector<1x64x32xf32>
    %207 = vector.shape_cast %206 : vector<1x64x32xf32> to vector<64x32xf32>
    %cst_83 = arith.constant dense<0.000000e+00> : vector<16x32xf32>
    %208 = tpu.matmul %205, %207, %cst_83 {dimension_numbers = #tpu.dot_dimension_numbers<[1], [0], [0], [1], [0, 0, 1, 1], [], []>} : vector<16x64xf32>, vector<64x32xf32>, vector<16x32xf32> -> vector<16x32xf32>
    %c1_84 = arith.constant 1 : index
    %c0_85 = arith.constant 0 : index
    %c0_86 = arith.constant 0 : index
    %209 = vector.load %arg10[%c1_84, %c0_85, %c0_86] : memref<2x1x32xf32, #tpu.memory_space<vmem>>, vector<1x1x32xf32>
    %210 = vector.shape_cast %209 : vector<1x1x32xf32> to vector<1x32xf32>
    %211 = vector.broadcast %210 : vector<1x32xf32> to vector<16x32xf32>
    %212 = arith.addf %208, %211 : vector<16x32xf32>
    %213 = arith.addf %196, %212 : vector<16x32xf32>
    %cst_87 = arith.constant dense<0.000000e+00> : vector<16xf32>
    %214 = vector.multi_reduction <add>, %213, %cst_87 [1] : vector<16x32xf32> to vector<16xf32>
    %215 = vector.shape_cast %214 : vector<16xf32> to vector<16x1xf32>
    %cst_88 = arith.constant 3.200000e+01 : f32
    %216 = vector.broadcast %cst_88 : f32 to vector<16x1xf32>
    %217 = arith.divf %215, %216 : vector<16x1xf32>
    %218 = vector.broadcast %217 : vector<16x1xf32> to vector<16x32xf32>
    %219 = arith.subf %213, %218 : vector<16x32xf32>
    %220 = arith.mulf %219, %219 : vector<16x32xf32>
    %cst_89 = arith.constant dense<0.000000e+00> : vector<16xf32>
    %221 = vector.multi_reduction <add>, %220, %cst_89 [1] : vector<16x32xf32> to vector<16xf32>
    %222 = vector.shape_cast %221 : vector<16xf32> to vector<16x1xf32>
    %cst_90 = arith.constant 3.200000e+01 : f32
    %223 = vector.broadcast %cst_90 : f32 to vector<16x1xf32>
    %224 = arith.divf %222, %223 : vector<16x1xf32>
    %225 = vector.broadcast %217 : vector<16x1xf32> to vector<16x32xf32>
    %226 = arith.subf %213, %225 : vector<16x32xf32>
    %cst_91 = arith.constant 9.99999974E-6 : f32
    %227 = vector.broadcast %cst_91 : f32 to vector<16x1xf32>
    %228 = arith.addf %224, %227 : vector<16x1xf32>
    %229 = math.rsqrt %228 : vector<16x1xf32>
    %230 = vector.broadcast %229 : vector<16x1xf32> to vector<16x32xf32>
    %231 = arith.mulf %226, %230 : vector<16x32xf32>
    %232 = vector.broadcast %0 : vector<1x32xf32> to vector<16x32xf32>
    %233 = arith.mulf %231, %232 : vector<16x32xf32>
    %234 = vector.broadcast %1 : vector<1x32xf32> to vector<16x32xf32>
    %235 = arith.addf %233, %234 : vector<16x32xf32>
    %236 = vector.shape_cast %235 : vector<16x32xf32> to vector<2x8x32xf32>
    %237 = vector.extract_strided_slice %236 {offsets = [0, 7, 0], sizes = [2, 1, 32], strides = [1, 1, 1]} : vector<2x8x32xf32> to vector<2x1x32xf32>
    %238 = vector.shape_cast %237 : vector<2x1x32xf32> to vector<2x32xf32>
    %c0_92 = arith.constant 0 : index
    %c0_93 = arith.constant 0 : index
    %239 = vector.load %arg13[%c0_92, %c0_93] : memref<2x32xf32, #tpu.memory_space<vmem>>, vector<2x32xf32>
    tpu.vector_store %arg13[%c0_92, %c0_93], %238 {strides = array<i32>} : memref<2x32xf32, #tpu.memory_space<vmem>>, vector<2x32xf32>,
    return
  }
  func.func @transform_0(%arg0: i32) -> (i32, i32, i32) {
    %c0_i32 = arith.constant 0 : i32
    %c0_i32_0 = arith.constant 0 : i32
    %c0_i32_1 = arith.constant 0 : i32
    return %arg0, %c0_i32, %c0_i32_0 : i32, i32, i32
  }
  func.func @transform_1(%arg0: i32) -> (i32, i32) {
    %c0_i32 = arith.constant 0 : i32
    %c0_i32_0 = arith.constant 0 : i32
    %c0_i32_1 = arith.constant 0 : i32
    return %c0_i32, %c0_i32_0 : i32, i32
  }
  func.func @transform_2(%arg0: i32) -> (i32, i32, i32) {
    %c0_i32 = arith.constant 0 : i32
    %c0_i32_0 = arith.constant 0 : i32
    %c0_i32_1 = arith.constant 0 : i32
    %c0_i32_2 = arith.constant 0 : i32
    return %c0_i32, %c0_i32_0, %c0_i32_1 : i32, i32, i32
  }
  func.func @transform_3(%arg0: i32) -> (i32, i32, i32) {
    %c0_i32 = arith.constant 0 : i32
    %c0_i32_0 = arith.constant 0 : i32
    %c0_i32_1 = arith.constant 0 : i32
    %c0_i32_2 = arith.constant 0 : i32
    return %c0_i32, %c0_i32_0, %c0_i32_1 : i32, i32, i32
  }
  func.func @transform_4(%arg0: i32) -> (i32, i32, i32) {
    %c0_i32 = arith.constant 0 : i32
    %c0_i32_0 = arith.constant 0 : i32
    %c0_i32_1 = arith.constant 0 : i32
    %c0_i32_2 = arith.constant 0 : i32
    return %c0_i32, %c0_i32_0, %c0_i32_1 : i32, i32, i32
  }
  func.func @transform_5(%arg0: i32) -> (i32, i32, i32) {
    %c0_i32 = arith.constant 0 : i32
    %c0_i32_0 = arith.constant 0 : i32
    %c0_i32_1 = arith.constant 0 : i32
    %c0_i32_2 = arith.constant 0 : i32
    return %c0_i32, %c0_i32_0, %c0_i32_1 : i32, i32, i32
  }
  func.func @transform_6(%arg0: i32) -> (i32, i32, i32) {
    %c0_i32 = arith.constant 0 : i32
    %c0_i32_0 = arith.constant 0 : i32
    %c0_i32_1 = arith.constant 0 : i32
    %c0_i32_2 = arith.constant 0 : i32
    return %c0_i32, %c0_i32_0, %c0_i32_1 : i32, i32, i32
  }
  func.func @transform_7(%arg0: i32) -> (i32, i32, i32) {
    %c0_i32 = arith.constant 0 : i32
    %c0_i32_0 = arith.constant 0 : i32
    %c0_i32_1 = arith.constant 0 : i32
    %c0_i32_2 = arith.constant 0 : i32
    return %c0_i32, %c0_i32_0, %c0_i32_1 : i32, i32, i32
  }
  func.func @transform_8(%arg0: i32) -> (i32, i32, i32) {
    %c0_i32 = arith.constant 0 : i32
    %c0_i32_0 = arith.constant 0 : i32
    %c0_i32_1 = arith.constant 0 : i32
    %c0_i32_2 = arith.constant 0 : i32
    return %c0_i32, %c0_i32_0, %c0_i32_1 : i32, i32, i32
  }
  func.func @transform_9(%arg0: i32) -> (i32, i32, i32) {
    %c0_i32 = arith.constant 0 : i32
    %c0_i32_0 = arith.constant 0 : i32
    %c0_i32_1 = arith.constant 0 : i32
    %c0_i32_2 = arith.constant 0 : i32
    return %c0_i32, %c0_i32_0, %c0_i32_1 : i32, i32, i32
  }
  func.func @transform_10(%arg0: i32) -> (i32, i32) {
    %c0_i32 = arith.constant 0 : i32
    %c0_i32_0 = arith.constant 0 : i32
    %c0_i32_1 = arith.constant 0 : i32
    return %c0_i32, %c0_i32_0 : i32, i32
  }
  func.func @transform_11(%arg0: i32) -> (i32, i32) {
    %c0_i32 = arith.constant 0 : i32
    %c0_i32_0 = arith.constant 0 : i32
    %c0_i32_1 = arith.constant 0 : i32
    return %c0_i32, %c0_i32_0 : i32, i32
  }
  func.func @transform_12(%arg0: i32) -> (i32, i32) {
    %c0_i32 = arith.constant 0 : i32
    %c0_i32_0 = arith.constant 0 : i32
    return %arg0, %c0_i32 : i32, i32
  }
}

module attributes {stable_mosaic.version = 11 : i64} {
  func.func @attention_extractor_kernel(%arg0: i32, %arg1: memref<2x8x32xf32, #tpu.memory_space<vmem>>, %arg2: memref<8x32xf32, #tpu.memory_space<vmem>>, %arg3: memref<2x32x96xf32, #tpu.memory_space<vmem>>, %arg4: memref<2x1x96xf32, #tpu.memory_space<vmem>>, %arg5: memref<2x32x32xf32, #tpu.memory_space<vmem>>, %arg6: memref<2x1x32xf32, #tpu.memory_space<vmem>>, %arg7: memref<2x32x64xf32, #tpu.memory_space<vmem>>, %arg8: memref<2x1x64xf32, #tpu.memory_space<vmem>>, %arg9: memref<2x64x32xf32, #tpu.memory_space<vmem>>, %arg10: memref<2x1x32xf32, #tpu.memory_space<vmem>>, %arg11: memref<1x32xf32, #tpu.memory_space<vmem>>, %arg12: memref<1x32xf32, #tpu.memory_space<vmem>>, %arg13: memref<2x32xf32, #tpu.memory_space<vmem>>) attributes {dimension_semantics = [#tpu.dimension_semantics<parallel>], iteration_bounds = array<i64: 1>, scalar_prefetch = 0 : i64, scratch_operands = 0 : i64, tpu.core_type = #tpu.core_type<tc>, window_params = [{transform_indices = @transform_0, window_bounds = array<i64: 2, 8, 32>}, {pipeline_mode = #tpu.pipeline_mode<synchronous>, transform_indices = @transform_1, window_bounds = array<i64: 8, 32>}, {pipeline_mode = #tpu.pipeline_mode<synchronous>, transform_indices = @transform_2, window_bounds = array<i64: 2, 32, 96>}, {pipeline_mode = #tpu.pipeline_mode<synchronous>, transform_indices = @transform_3, window_bounds = array<i64: 2, 1, 96>}, {pipeline_mode = #tpu.pipeline_mode<synchronous>, transform_indices = @transform_4, window_bounds = array<i64: 2, 32, 32>}, {pipeline_mode = #tpu.pipeline_mode<synchronous>, transform_indices = @transform_5, window_bounds = array<i64: 2, 1, 32>}, {pipeline_mode = #tpu.pipeline_mode<synchronous>, transform_indices = @transform_6, window_bounds = array<i64: 2, 32, 64>}, {pipeline_mode = #tpu.pipeline_mode<synchronous>, transform_indices = @transform_7, window_bounds = array<i64: 2, 1, 64>}, {pipeline_mode = #tpu.pipeline_mode<synchronous>, transform_indices = @transform_8, window_bounds = array<i64: 2, 64, 32>}, {pipeline_mode = #tpu.pipeline_mode<synchronous>, transform_indices = @transform_9, window_bounds = array<i64: 2, 1, 32>}, {pipeline_mode = #tpu.pipeline_mode<synchronous>, transform_indices = @transform_10, window_bounds = array<i64: 1, 32>}, {pipeline_mode = #tpu.pipeline_mode<synchronous>, transform_indices = @transform_11, window_bounds = array<i64: 1, 32>}, {transform_indices = @transform_12, window_bounds = array<i64: 2, 32>}]} {
    %c0 = arith.constant 0 : index
    %c0_0 = arith.constant 0 : index
    %0 = vector.load %arg11[%c0, %c0_0] : memref<1x32xf32, #tpu.memory_space<vmem>>, vector<1x32xf32>
    %c0_1 = arith.constant 0 : index
    %c0_2 = arith.constant 0 : index
    %1 = vector.load %arg12[%c0_1, %c0_2] : memref<1x32xf32, #tpu.memory_space<vmem>>, vector<1x32xf32>
    %c0_3 = arith.constant 0 : index
    %c0_4 = arith.constant 0 : index
    %c0_5 = arith.constant 0 : index
    %2 = vector.load %arg1[%c0_3, %c0_4, %c0_5] : memref<2x8x32xf32, #tpu.memory_space<vmem>>, vector<2x8x32xf32>
    %c0_6 = arith.constant 0 : index
    %c0_7 = arith.constant 0 : index
    %3 = vector.load %arg2[%c0_6, %c0_7] : memref<8x32xf32, #tpu.memory_space<vmem>>, vector<8x32xf32>
    %4 = vector.shape_cast %3 : vector<8x32xf32> to vector<1x8x32xf32>
    %5 = vector.broadcast %4 : vector<1x8x32xf32> to vector<2x8x32xf32>
    %6 = arith.addf %2, %5 : vector<2x8x32xf32>
    %7 = vector.shape_cast %6 : vector<2x8x32xf32> to vector<16x32xf32>
    %c0_8 = arith.constant 0 : index
    %c0_9 = arith.constant 0 : index
    %c0_10 = arith.constant 0 : index
    %8 = vector.load %arg3[%c0_8, %c0_9, %c0_10] : memref<2x32x96xf32, #tpu.memory_space<vmem>>, vector<1x32x96xf32>
    %9 = vector.shape_cast %8 : vector<1x32x96xf32> to vector<32x96xf32>
    %cst = arith.constant dense<0.000000e+00> : vector<16x96xf32>
    %10 = tpu.matmul %7, %9, %cst {dimension_numbers = #tpu.dot_dimension_numbers<[1], [0], [0], [1], [0, 0, 1, 1], [], []>} : vector<16x32xf32>, vector<32x96xf32>, vector<16x96xf32> -> vector<16x96xf32>
    %c0_11 = arith.constant 0 : index
    %c0_12 = arith.constant 0 : index
    %c0_13 = arith.constant 0 : index
    %11 = vector.load %arg4[%c0_11, %c0_12, %c0_13] : memref<2x1x96xf32, #tpu.memory_space<vmem>>, vector<1x1x96xf32>
    %12 = vector.shape_cast %11 : vector<1x1x96xf32> to vector<1x96xf32>
    %13 = vector.broadcast %12 : vector<1x96xf32> to vector<16x96xf32>
    %14 = arith.addf %10, %13 : vector<16x96xf32>
    %15 = vector.shape_cast %14 : vector<16x96xf32> to vector<2x8x96xf32>
    %16 = vector.extract_strided_slice %15 {offsets = [0, 0, 0], sizes = [2, 8, 32], strides = [1, 1, 1]} : vector<2x8x96xf32> to vector<2x8x32xf32>
    %17 = vector.extract_strided_slice %15 {offsets = [0, 0, 32], sizes = [2, 8, 32], strides = [1, 1, 1]} : vector<2x8x96xf32> to vector<2x8x32xf32>
    %18 = vector.extract_strided_slice %15 {offsets = [0, 0, 64], sizes = [2, 8, 32], strides = [1, 1, 1]} : vector<2x8x96xf32> to vector<2x8x32xf32>
    %19 = vector.extract_strided_slice %16 {offsets = [0, 0, 0], sizes = [2, 8, 8], strides = [1, 1, 1]} : vector<2x8x32xf32> to vector<2x8x8xf32>
    %20 = vector.extract_strided_slice %16 {offsets = [0, 0, 8], sizes = [2, 8, 8], strides = [1, 1, 1]} : vector<2x8x32xf32> to vector<2x8x8xf32>
    %21 = vector.extract_strided_slice %16 {offsets = [0, 0, 16], sizes = [2, 8, 8], strides = [1, 1, 1]} : vector<2x8x32xf32> to vector<2x8x8xf32>
    %22 = vector.extract_strided_slice %16 {offsets = [0, 0, 24], sizes = [2, 8, 8], strides = [1, 1, 1]} : vector<2x8x32xf32> to vector<2x8x8xf32>
    %23 = tpu.concatenate %19, %20, %21, %22 in 0 : vector<2x8x8xf32>, vector<2x8x8xf32>, vector<2x8x8xf32>, vector<2x8x8xf32> -> vector<8x8x8xf32>
    %24 = vector.extract_strided_slice %17 {offsets = [0, 0, 0], sizes = [2, 8, 8], strides = [1, 1, 1]} : vector<2x8x32xf32> to vector<2x8x8xf32>
    %25 = vector.extract_strided_slice %17 {offsets = [0, 0, 8], sizes = [2, 8, 8], strides = [1, 1, 1]} : vector<2x8x32xf32> to vector<2x8x8xf32>
    %26 = vector.extract_strided_slice %17 {offsets = [0, 0, 16], sizes = [2, 8, 8], strides = [1, 1, 1]} : vector<2x8x32xf32> to vector<2x8x8xf32>
    %27 = vector.extract_strided_slice %17 {offsets = [0, 0, 24], sizes = [2, 8, 8], strides = [1, 1, 1]} : vector<2x8x32xf32> to vector<2x8x8xf32>
    %28 = tpu.concatenate %24, %25, %26, %27 in 0 : vector<2x8x8xf32>, vector<2x8x8xf32>, vector<2x8x8xf32>, vector<2x8x8xf32> -> vector<8x8x8xf32>
    %29 = vector.extract_strided_slice %18 {offsets = [0, 0, 0], sizes = [2, 8, 8], strides = [1, 1, 1]} : vector<2x8x32xf32> to vector<2x8x8xf32>
    %30 = vector.extract_strided_slice %18 {offsets = [0, 0, 8], sizes = [2, 8, 8], strides = [1, 1, 1]} : vector<2x8x32xf32> to vector<2x8x8xf32>
    %31 = vector.extract_strided_slice %18 {offsets = [0, 0, 16], sizes = [2, 8, 8], strides = [1, 1, 1]} : vector<2x8x32xf32> to vector<2x8x8xf32>
    %32 = vector.extract_strided_slice %18 {offsets = [0, 0, 24], sizes = [2, 8, 8], strides = [1, 1, 1]} : vector<2x8x32xf32> to vector<2x8x8xf32>
    %33 = tpu.concatenate %29, %30, %31, %32 in 0 : vector<2x8x8xf32>, vector<2x8x8xf32>, vector<2x8x8xf32>, vector<2x8x8xf32> -> vector<8x8x8xf32>
    "tpu.trace_start"() <{level = 10 : i32, message = "nqd,nkd->nqk"}> : () -> ()
    %cst_14 = arith.constant dense<0.000000e+00> : vector<8x8x8xf32>
    %34 = tpu.matmul %23, %28, %cst_14 {dimension_numbers = #tpu.dot_dimension_numbers<[2], [2], [1], [1], [0, 0, 0, 1, 1, 1], [0], [0]>} : vector<8x8x8xf32>, vector<8x8x8xf32>, vector<8x8x8xf32> -> vector<8x8x8xf32>
    "tpu.trace_stop"() : () -> ()
    %cst_15 = arith.constant dense<0xFF800000> : vector<8x8xf32>
    %35 = vector.multi_reduction <maximumf>, %34, %cst_15 [2] : vector<8x8x8xf32> to vector<8x8xf32>
    %36 = vector.shape_cast %35 : vector<8x8xf32> to vector<8x8x1xf32>
    %37 = vector.broadcast %36 : vector<8x8x1xf32> to vector<8x8x8xf32>
    %38 = arith.subf %34, %37 : vector<8x8x8xf32>
    %39 = math.exp %38 : vector<8x8x8xf32>
    %cst_16 = arith.constant dense<0.000000e+00> : vector<8x8xf32>
    %40 = vector.multi_reduction <add>, %39, %cst_16 [2] : vector<8x8x8xf32> to vector<8x8xf32>
    %41 = vector.shape_cast %40 : vector<8x8xf32> to vector<8x8x1xf32>
    %42 = tpu.reciprocal %41 {approx = true} : vector<8x8x1xf32> -> vector<8x8x1xf32>
    %43 = vector.broadcast %42 : vector<8x8x1xf32> to vector<8x8x8xf32>
    %44 = arith.mulf %39, %43 : vector<8x8x8xf32>
    "tpu.trace_start"() <{level = 10 : i32, message = "nqk,nkd->nqd"}> : () -> ()
    %cst_17 = arith.constant dense<0.000000e+00> : vector<8x8x8xf32>
    %45 = tpu.matmul %44, %33, %cst_17 {dimension_numbers = #tpu.dot_dimension_numbers<[2], [1], [1], [2], [0, 0, 0, 1, 1, 2], [0], [0]>} : vector<8x8x8xf32>, vector<8x8x8xf32>, vector<8x8x8xf32> -> vector<8x8x8xf32>
    "tpu.trace_stop"() : () -> ()
    %46 = vector.extract_strided_slice %45 {offsets = [0, 0, 0], sizes = [2, 8, 8], strides = [1, 1, 1]} : vector<8x8x8xf32> to vector<2x8x8xf32>
    %47 = vector.extract_strided_slice %45 {offsets = [2, 0, 0], sizes = [2, 8, 8], strides = [1, 1, 1]} : vector<8x8x8xf32> to vector<2x8x8xf32>
    %48 = vector.extract_strided_slice %45 {offsets = [4, 0, 0], sizes = [2, 8, 8], strides = [1, 1, 1]} : vector<8x8x8xf32> to vector<2x8x8xf32>
    %49 = vector.extract_strided_slice %45 {offsets = [6, 0, 0], sizes = [2, 8, 8], strides = [1, 1, 1]} : vector<8x8x8xf32> to vector<2x8x8xf32>
    %50 = tpu.concatenate %46, %47, %48, %49 in 2 : vector<2x8x8xf32>, vector<2x8x8xf32>, vector<2x8x8xf32>, vector<2x8x8xf32> -> vector<2x8x32xf32>
    %51 = vector.shape_cast %50 : vector<2x8x32xf32> to vector<16x32xf32>
    %c0_18 = arith.constant 0 : index
    %c0_19 = arith.constant 0 : index
    %c0_20 = arith.constant 0 : index
    %52 = vector.load %arg5[%c0_18, %c0_19, %c0_20] : memref<2x32x32xf32, #tpu.memory_space<vmem>>, vector<1x32x32xf32>
    %53 = vector.shape_cast %52 : vector<1x32x32xf32> to vector<32x32xf32>
    %cst_21 = arith.constant dense<0.000000e+00> : vector<16x32xf32>
    %54 = tpu.matmul %51, %53, %cst_21 {dimension_numbers = #tpu.dot_dimension_numbers<[1], [0], [0], [1], [0, 0, 1, 1], [], []>} : vector<16x32xf32>, vector<32x32xf32>, vector<16x32xf32> -> vector<16x32xf32>
    %c0_22 = arith.constant 0 : index
    %c0_23 = arith.constant 0 : index
    %c0_24 = arith.constant 0 : index
    %55 = vector.load %arg6[%c0_22, %c0_23, %c0_24] : memref<2x1x32xf32, #tpu.memory_space<vmem>>, vector<1x1x32xf32>
    %56 = vector.shape_cast %55 : vector<1x1x32xf32> to vector<1x32xf32>
    %57 = vector.broadcast %56 : vector<1x32xf32> to vector<16x32xf32>
    %58 = arith.addf %54, %57 : vector<16x32xf32>
    %59 = arith.addf %7, %58 : vector<16x32xf32>
    %cst_25 = arith.constant dense<0.000000e+00> : vector<16xf32>
    %60 = vector.multi_reduction <add>, %59, %cst_25 [1] : vector<16x32xf32> to vector<16xf32>
    %61 = vector.shape_cast %60 : vector<16xf32> to vector<16x1xf32>
    %cst_26 = arith.constant 3.200000e+01 : f32
    %62 = vector.broadcast %cst_26 : f32 to vector<16x1xf32>
    %63 = arith.divf %61, %62 : vector<16x1xf32>
    %64 = vector.broadcast %63 : vector<16x1xf32> to vector<16x32xf32>
    %65 = arith.subf %59, %64 : vector<16x32xf32>
    %66 = arith.mulf %65, %65 : vector<16x32xf32>
    %cst_27 = arith.constant dense<0.000000e+00> : vector<16xf32>
    %67 = vector.multi_reduction <add>, %66, %cst_27 [1] : vector<16x32xf32> to vector<16xf32>
    %68 = vector.shape_cast %67 : vector<16xf32> to vector<16x1xf32>
    %cst_28 = arith.constant 3.200000e+01 : f32
    %69 = vector.broadcast %cst_28 : f32 to vector<16x1xf32>
    %70 = arith.divf %68, %69 : vector<16x1xf32>
    %71 = vector.broadcast %63 : vector<16x1xf32> to vector<16x32xf32>
    %72 = arith.subf %59, %71 : vector<16x32xf32>
    %cst_29 = arith.constant 9.99999974E-6 : f32
    %73 = vector.broadcast %cst_29 : f32 to vector<16x1xf32>
    %74 = arith.addf %70, %73 : vector<16x1xf32>
    %75 = math.rsqrt %74 : vector<16x1xf32>
    %76 = vector.broadcast %75 : vector<16x1xf32> to vector<16x32xf32>
    %77 = arith.mulf %72, %76 : vector<16x32xf32>
    %78 = vector.broadcast %0 : vector<1x32xf32> to vector<16x32xf32>
    %79 = arith.mulf %77, %78 : vector<16x32xf32>
    %80 = vector.broadcast %1 : vector<1x32xf32> to vector<16x32xf32>
    %81 = arith.addf %79, %80 : vector<16x32xf32>
    %c0_30 = arith.constant 0 : index
    %c0_31 = arith.constant 0 : index
    %c0_32 = arith.constant 0 : index
    %82 = vector.load %arg7[%c0_30, %c0_31, %c0_32] : memref<2x32x64xf32, #tpu.memory_space<vmem>>, vector<1x32x64xf32>
    %83 = vector.shape_cast %82 : vector<1x32x64xf32> to vector<32x64xf32>
    %cst_33 = arith.constant dense<0.000000e+00> : vector<16x64xf32>
    %84 = tpu.matmul %81, %83, %cst_33 {dimension_numbers = #tpu.dot_dimension_numbers<[1], [0], [0], [1], [0, 0, 1, 1], [], []>} : vector<16x32xf32>, vector<32x64xf32>, vector<16x64xf32> -> vector<16x64xf32>
    %c0_34 = arith.constant 0 : index
    %c0_35 = arith.constant 0 : index
    %c0_36 = arith.constant 0 : index
    %85 = vector.load %arg8[%c0_34, %c0_35, %c0_36] : memref<2x1x64xf32, #tpu.memory_space<vmem>>, vector<1x1x64xf32>
    %86 = vector.shape_cast %85 : vector<1x1x64xf32> to vector<1x64xf32>
    %87 = vector.broadcast %86 : vector<1x64xf32> to vector<16x64xf32>
    %88 = arith.addf %84, %87 : vector<16x64xf32>
    %cst_37 = arith.constant 0.000000e+00 : f32
    %89 = vector.broadcast %cst_37 : f32 to vector<16x64xf32>
    %90 = arith.maximumf %88, %89 : vector<16x64xf32>
    %c0_38 = arith.constant 0 : index
    %c0_39 = arith.constant 0 : index
    %c0_40 = arith.constant 0 : index
    %91 = vector.load %arg9[%c0_38, %c0_39, %c0_40] : memref<2x64x32xf32, #tpu.memory_space<vmem>>, vector<1x64x32xf32>
    %92 = vector.shape_cast %91 : vector<1x64x32xf32> to vector<64x32xf32>
    %cst_41 = arith.constant dense<0.000000e+00> : vector<16x32xf32>
    %93 = tpu.matmul %90, %92, %cst_41 {dimension_numbers = #tpu.dot_dimension_numbers<[1], [0], [0], [1], [0, 0, 1, 1], [], []>} : vector<16x64xf32>, vector<64x32xf32>, vector<16x32xf32> -> vector<16x32xf32>
    %c0_42 = arith.constant 0 : index
    %c0_43 = arith.constant 0 : index
    %c0_44 = arith.constant 0 : index
    %94 = vector.load %arg10[%c0_42, %c0_43, %c0_44] : memref<2x1x32xf32, #tpu.memory_space<vmem>>, vector<1x1x32xf32>
    %95 = vector.shape_cast %94 : vector<1x1x32xf32> to vector<1x32xf32>
    %96 = vector.broadcast %95 : vector<1x32xf32> to vector<16x32xf32>
    %97 = arith.addf %93, %96 : vector<16x32xf32>
    %98 = arith.addf %81, %97 : vector<16x32xf32>
    %cst_45 = arith.constant dense<0.000000e+00> : vector<16xf32>
    %99 = vector.multi_reduction <add>, %98, %cst_45 [1] : vector<16x32xf32> to vector<16xf32>
    %100 = vector.shape_cast %99 : vector<16xf32> to vector<16x1xf32>
    %cst_46 = arith.constant 3.200000e+01 : f32
    %101 = vector.broadcast %cst_46 : f32 to vector<16x1xf32>
    %102 = arith.divf %100, %101 : vector<16x1xf32>
    %103 = vector.broadcast %102 : vector<16x1xf32> to vector<16x32xf32>
    %104 = arith.subf %98, %103 : vector<16x32xf32>
    %105 = arith.mulf %104, %104 : vector<16x32xf32>
    %cst_47 = arith.constant dense<0.000000e+00> : vector<16xf32>
    %106 = vector.multi_reduction <add>, %105, %cst_47 [1] : vector<16x32xf32> to vector<16xf32>
    %107 = vector.shape_cast %106 : vector<16xf32> to vector<16x1xf32>
    %cst_48 = arith.constant 3.200000e+01 : f32
    %108 = vector.broadcast %cst_48 : f32 to vector<16x1xf32>
    %109 = arith.divf %107, %108 : vector<16x1xf32>
    %110 = vector.broadcast %102 : vector<16x1xf32> to vector<16x32xf32>
    %111 = arith.subf %98, %110 : vector<16x32xf32>
    %cst_49 = arith.constant 9.99999974E-6 : f32
    %112 = vector.broadcast %cst_49 : f32 to vector<16x1xf32>
    %113 = arith.addf %109, %112 : vector<16x1xf32>
    %114 = math.rsqrt %113 : vector<16x1xf32>
    %115 = vector.broadcast %114 : vector<16x1xf32> to vector<16x32xf32>
    %116 = arith.mulf %111, %115 : vector<16x32xf32>
    %117 = vector.broadcast %0 : vector<1x32xf32> to vector<16x32xf32>
    %118 = arith.mulf %116, %117 : vector<16x32xf32>
    %119 = vector.broadcast %1 : vector<1x32xf32> to vector<16x32xf32>
    %120 = arith.addf %118, %119 : vector<16x32xf32>
    %121 = vector.shape_cast %120 : vector<16x32xf32> to vector<2x8x32xf32>
    %122 = vector.shape_cast %121 : vector<2x8x32xf32> to vector<16x32xf32>
    %c1 = arith.constant 1 : index
    %c0_50 = arith.constant 0 : index
    %c0_51 = arith.constant 0 : index
    %123 = vector.load %arg3[%c1, %c0_50, %c0_51] : memref<2x32x96xf32, #tpu.memory_space<vmem>>, vector<1x32x96xf32>
    %124 = vector.shape_cast %123 : vector<1x32x96xf32> to vector<32x96xf32>
    %cst_52 = arith.constant dense<0.000000e+00> : vector<16x96xf32>
    %125 = tpu.matmul %122, %124, %cst_52 {dimension_numbers = #tpu.dot_dimension_numbers<[1], [0], [0], [1], [0, 0, 1, 1], [], []>} : vector<16x32xf32>, vector<32x96xf32>, vector<16x96xf32> -> vector<16x96xf32>
    %c1_53 = arith.constant 1 : index
    %c0_54 = arith.constant 0 : index
    %c0_55 = arith.constant 0 : index
    %126 = vector.load %arg4[%c1_53, %c0_54, %c0_55] : memref<2x1x96xf32, #tpu.memory_space<vmem>>, vector<1x1x96xf32>
    %127 = vector.shape_cast %126 : vector<1x1x96xf32> to vector<1x96xf32>
    %128 = vector.broadcast %127 : vector<1x96xf32> to vector<16x96xf32>
    %129 = arith.addf %125, %128 : vector<16x96xf32>
    %130 = vector.shape_cast %129 : vector<16x96xf32> to vector<2x8x96xf32>
    %131 = vector.extract_strided_slice %130 {offsets = [0, 0, 0], sizes = [2, 8, 32], strides = [1, 1, 1]} : vector<2x8x96xf32> to vector<2x8x32xf32>
    %132 = vector.extract_strided_slice %130 {offsets = [0, 0, 32], sizes = [2, 8, 32], strides = [1, 1, 1]} : vector<2x8x96xf32> to vector<2x8x32xf32>
    %133 = vector.extract_strided_slice %130 {offsets = [0, 0, 64], sizes = [2, 8, 32], strides = [1, 1, 1]} : vector<2x8x96xf32> to vector<2x8x32xf32>
    %134 = vector.extract_strided_slice %131 {offsets = [0, 0, 0], sizes = [2, 8, 8], strides = [1, 1, 1]} : vector<2x8x32xf32> to vector<2x8x8xf32>
    %135 = vector.extract_strided_slice %131 {offsets = [0, 0, 8], sizes = [2, 8, 8], strides = [1, 1, 1]} : vector<2x8x32xf32> to vector<2x8x8xf32>
    %136 = vector.extract_strided_slice %131 {offsets = [0, 0, 16], sizes = [2, 8, 8], strides = [1, 1, 1]} : vector<2x8x32xf32> to vector<2x8x8xf32>
    %137 = vector.extract_strided_slice %131 {offsets = [0, 0, 24], sizes = [2, 8, 8], strides = [1, 1, 1]} : vector<2x8x32xf32> to vector<2x8x8xf32>
    %138 = tpu.concatenate %134, %135, %136, %137 in 0 : vector<2x8x8xf32>, vector<2x8x8xf32>, vector<2x8x8xf32>, vector<2x8x8xf32> -> vector<8x8x8xf32>
    %139 = vector.extract_strided_slice %132 {offsets = [0, 0, 0], sizes = [2, 8, 8], strides = [1, 1, 1]} : vector<2x8x32xf32> to vector<2x8x8xf32>
    %140 = vector.extract_strided_slice %132 {offsets = [0, 0, 8], sizes = [2, 8, 8], strides = [1, 1, 1]} : vector<2x8x32xf32> to vector<2x8x8xf32>
    %141 = vector.extract_strided_slice %132 {offsets = [0, 0, 16], sizes = [2, 8, 8], strides = [1, 1, 1]} : vector<2x8x32xf32> to vector<2x8x8xf32>
    %142 = vector.extract_strided_slice %132 {offsets = [0, 0, 24], sizes = [2, 8, 8], strides = [1, 1, 1]} : vector<2x8x32xf32> to vector<2x8x8xf32>
    %143 = tpu.concatenate %139, %140, %141, %142 in 0 : vector<2x8x8xf32>, vector<2x8x8xf32>, vector<2x8x8xf32>, vector<2x8x8xf32> -> vector<8x8x8xf32>
    %144 = vector.extract_strided_slice %133 {offsets = [0, 0, 0], sizes = [2, 8, 8], strides = [1, 1, 1]} : vector<2x8x32xf32> to vector<2x8x8xf32>
    %145 = vector.extract_strided_slice %133 {offsets = [0, 0, 8], sizes = [2, 8, 8], strides = [1, 1, 1]} : vector<2x8x32xf32> to vector<2x8x8xf32>
    %146 = vector.extract_strided_slice %133 {offsets = [0, 0, 16], sizes = [2, 8, 8], strides = [1, 1, 1]} : vector<2x8x32xf32> to vector<2x8x8xf32>
    %147 = vector.extract_strided_slice %133 {offsets = [0, 0, 24], sizes = [2, 8, 8], strides = [1, 1, 1]} : vector<2x8x32xf32> to vector<2x8x8xf32>
    %148 = tpu.concatenate %144, %145, %146, %147 in 0 : vector<2x8x8xf32>, vector<2x8x8xf32>, vector<2x8x8xf32>, vector<2x8x8xf32> -> vector<8x8x8xf32>
    "tpu.trace_start"() <{level = 10 : i32, message = "nqd,nkd->nqk"}> : () -> ()
    %cst_56 = arith.constant dense<0.000000e+00> : vector<8x8x8xf32>
    %149 = tpu.matmul %138, %143, %cst_56 {dimension_numbers = #tpu.dot_dimension_numbers<[2], [2], [1], [1], [0, 0, 0, 1, 1, 1], [0], [0]>} : vector<8x8x8xf32>, vector<8x8x8xf32>, vector<8x8x8xf32> -> vector<8x8x8xf32>
    "tpu.trace_stop"() : () -> ()
    %cst_57 = arith.constant dense<0xFF800000> : vector<8x8xf32>
    %150 = vector.multi_reduction <maximumf>, %149, %cst_57 [2] : vector<8x8x8xf32> to vector<8x8xf32>
    %151 = vector.shape_cast %150 : vector<8x8xf32> to vector<8x8x1xf32>
    %152 = vector.broadcast %151 : vector<8x8x1xf32> to vector<8x8x8xf32>
    %153 = arith.subf %149, %152 : vector<8x8x8xf32>
    %154 = math.exp %153 : vector<8x8x8xf32>
    %cst_58 = arith.constant dense<0.000000e+00> : vector<8x8xf32>
    %155 = vector.multi_reduction <add>, %154, %cst_58 [2] : vector<8x8x8xf32> to vector<8x8xf32>
    %156 = vector.shape_cast %155 : vector<8x8xf32> to vector<8x8x1xf32>
    %157 = tpu.reciprocal %156 {approx = true} : vector<8x8x1xf32> -> vector<8x8x1xf32>
    %158 = vector.broadcast %157 : vector<8x8x1xf32> to vector<8x8x8xf32>
    %159 = arith.mulf %154, %158 : vector<8x8x8xf32>
    "tpu.trace_start"() <{level = 10 : i32, message = "nqk,nkd->nqd"}> : () -> ()
    %cst_59 = arith.constant dense<0.000000e+00> : vector<8x8x8xf32>
    %160 = tpu.matmul %159, %148, %cst_59 {dimension_numbers = #tpu.dot_dimension_numbers<[2], [1], [1], [2], [0, 0, 0, 1, 1, 2], [0], [0]>} : vector<8x8x8xf32>, vector<8x8x8xf32>, vector<8x8x8xf32> -> vector<8x8x8xf32>
    "tpu.trace_stop"() : () -> ()
    %161 = vector.extract_strided_slice %160 {offsets = [0, 0, 0], sizes = [2, 8, 8], strides = [1, 1, 1]} : vector<8x8x8xf32> to vector<2x8x8xf32>
    %162 = vector.extract_strided_slice %160 {offsets = [2, 0, 0], sizes = [2, 8, 8], strides = [1, 1, 1]} : vector<8x8x8xf32> to vector<2x8x8xf32>
    %163 = vector.extract_strided_slice %160 {offsets = [4, 0, 0], sizes = [2, 8, 8], strides = [1, 1, 1]} : vector<8x8x8xf32> to vector<2x8x8xf32>
    %164 = vector.extract_strided_slice %160 {offsets = [6, 0, 0], sizes = [2, 8, 8], strides = [1, 1, 1]} : vector<8x8x8xf32> to vector<2x8x8xf32>
    %165 = tpu.concatenate %161, %162, %163, %164 in 2 : vector<2x8x8xf32>, vector<2x8x8xf32>, vector<2x8x8xf32>, vector<2x8x8xf32> -> vector<2x8x32xf32>
    %166 = vector.shape_cast %165 : vector<2x8x32xf32> to vector<16x32xf32>
    %c1_60 = arith.constant 1 : index
    %c0_61 = arith.constant 0 : index
    %c0_62 = arith.constant 0 : index
    %167 = vector.load %arg5[%c1_60, %c0_61, %c0_62] : memref<2x32x32xf32, #tpu.memory_space<vmem>>, vector<1x32x32xf32>
    %168 = vector.shape_cast %167 : vector<1x32x32xf32> to vector<32x32xf32>
    %cst_63 = arith.constant dense<0.000000e+00> : vector<16x32xf32>
    %169 = tpu.matmul %166, %168, %cst_63 {dimension_numbers = #tpu.dot_dimension_numbers<[1], [0], [0], [1], [0, 0, 1, 1], [], []>} : vector<16x32xf32>, vector<32x32xf32>, vector<16x32xf32> -> vector<16x32xf32>
    %c1_64 = arith.constant 1 : index
    %c0_65 = arith.constant 0 : index
    %c0_66 = arith.constant 0 : index
    %170 = vector.load %arg6[%c1_64, %c0_65, %c0_66] : memref<2x1x32xf32, #tpu.memory_space<vmem>>, vector<1x1x32xf32>
    %171 = vector.shape_cast %170 : vector<1x1x32xf32> to vector<1x32xf32>
    %172 = vector.broadcast %171 : vector<1x32xf32> to vector<16x32xf32>
    %173 = arith.addf %169, %172 : vector<16x32xf32>
    %174 = arith.addf %122, %173 : vector<16x32xf32>
    %cst_67 = arith.constant dense<0.000000e+00> : vector<16xf32>
    %175 = vector.multi_reduction <add>, %174, %cst_67 [1] : vector<16x32xf32> to vector<16xf32>
    %176 = vector.shape_cast %175 : vector<16xf32> to vector<16x1xf32>
    %cst_68 = arith.constant 3.200000e+01 : f32
    %177 = vector.broadcast %cst_68 : f32 to vector<16x1xf32>
    %178 = arith.divf %176, %177 : vector<16x1xf32>
    %179 = vector.broadcast %178 : vector<16x1xf32> to vector<16x32xf32>
    %180 = arith.subf %174, %179 : vector<16x32xf32>
    %181 = arith.mulf %180, %180 : vector<16x32xf32>
    %cst_69 = arith.constant dense<0.000000e+00> : vector<16xf32>
    %182 = vector.multi_reduction <add>, %181, %cst_69 [1] : vector<16x32xf32> to vector<16xf32>
    %183 = vector.shape_cast %182 : vector<16xf32> to vector<16x1xf32>
    %cst_70 = arith.constant 3.200000e+01 : f32
    %184 = vector.broadcast %cst_70 : f32 to vector<16x1xf32>
    %185 = arith.divf %183, %184 : vector<16x1xf32>
    %186 = vector.broadcast %178 : vector<16x1xf32> to vector<16x32xf32>
    %187 = arith.subf %174, %186 : vector<16x32xf32>
    %cst_71 = arith.constant 9.99999974E-6 : f32
    %188 = vector.broadcast %cst_71 : f32 to vector<16x1xf32>
    %189 = arith.addf %185, %188 : vector<16x1xf32>
    %190 = math.rsqrt %189 : vector<16x1xf32>
    %191 = vector.broadcast %190 : vector<16x1xf32> to vector<16x32xf32>
    %192 = arith.mulf %187, %191 : vector<16x32xf32>
    %193 = vector.broadcast %0 : vector<1x32xf32> to vector<16x32xf32>
    %194 = arith.mulf %192, %193 : vector<16x32xf32>
    %195 = vector.broadcast %1 : vector<1x32xf32> to vector<16x32xf32>
    %196 = arith.addf %194, %195 : vector<16x32xf32>
    %c1_72 = arith.constant 1 : index
    %c0_73 = arith.constant 0 : index
    %c0_74 = arith.constant 0 : index
    %197 = vector.load %arg7[%c1_72, %c0_73, %c0_74] : memref<2x32x64xf32, #tpu.memory_space<vmem>>, vector<1x32x64xf32>
    %198 = vector.shape_cast %197 : vector<1x32x64xf32> to vector<32x64xf32>
    %cst_75 = arith.constant dense<0.000000e+00> : vector<16x64xf32>
    %199 = tpu.matmul %196, %198, %cst_75 {dimension_numbers = #tpu.dot_dimension_numbers<[1], [0], [0], [1], [0, 0, 1, 1], [], []>} : vector<16x32xf32>, vector<32x64xf32>, vector<16x64xf32> -> vector<16x64xf32>
    %c1_76 = arith.constant 1 : index
    %c0_77 = arith.constant 0 : index
    %c0_78 = arith.constant 0 : index
    %200 = vector.load %arg8[%c1_76, %c0_77, %c0_78] : memref<2x1x64xf32, #tpu.memory_space<vmem>>, vector<1x1x64xf32>
    %201 = vector.shape_cast %200 : vector<1x1x64xf32> to vector<1x64xf32>
    %202 = vector.broadcast %201 : vector<1x64xf32> to vector<16x64xf32>
    %203 = arith.addf %199, %202 : vector<16x64xf32>
    %cst_79 = arith.constant 0.000000e+00 : f32
    %204 = vector.broadcast %cst_79 : f32 to vector<16x64xf32>
    %205 = arith.maximumf %203, %204 : vector<16x64xf32>
    %c1_80 = arith.constant 1 : index
    %c0_81 = arith.constant 0 : index
    %c0_82 = arith.constant 0 : index
    %206 = vector.load %arg9[%c1_80, %c0_81, %c0_82] : memref<2x64x32xf32, #tpu.memory_space<vmem>>, vector<1x64x32xf32>
    %207 = vector.shape_cast %206 : vector<1x64x32xf32> to vector<64x32xf32>
    %cst_83 = arith.constant dense<0.000000e+00> : vector<16x32xf32>
    %208 = tpu.matmul %205, %207, %cst_83 {dimension_numbers = #tpu.dot_dimension_numbers<[1], [0], [0], [1], [0, 0, 1, 1], [], []>} : vector<16x64xf32>, vector<64x32xf32>, vector<16x32xf32> -> vector<16x32xf32>
    %c1_84 = arith.constant 1 : index
    %c0_85 = arith.constant 0 : index
    %c0_86 = arith.constant 0 : index
    %209 = vector.load %arg10[%c1_84, %c0_85, %c0_86] : memref<2x1x32xf32, #tpu.memory_space<vmem>>, vector<1x1x32xf32>
    %210 = vector.shape_cast %209 : vector<1x1x32xf32> to vector<1x32xf32>
    %211 = vector.broadcast %210 : vector<1x32xf32> to vector<16x32xf32>
    %212 = arith.addf %208, %211 : vector<16x32xf32>
    %213 = arith.addf %196, %212 : vector<16x32xf32>
    %cst_87 = arith.constant dense<0.000000e+00> : vector<16xf32>
    %214 = vector.multi_reduction <add>, %213, %cst_87 [1] : vector<16x32xf32> to vector<16xf32>
    %215 = vector.shape_cast %214 : vector<16xf32> to vector<16x1xf32>
    %cst_88 = arith.constant 3.200000e+01 : f32
    %216 = vector.broadcast %cst_88 : f32 to vector<16x1xf32>
    %217 = arith.divf %215, %216 : vector<16x1xf32>
    %218 = vector.broadcast %217 : vector<16x1xf32> to vector<16x32xf32>
    %219 = arith.subf %213, %218 : vector<16x32xf32>
    %220 = arith.mulf %219, %219 : vector<16x32xf32>
    %cst_89 = arith.constant dense<0.000000e+00> : vector<16xf32>
    %221 = vector.multi_reduction <add>, %220, %cst_89 [1] : vector<16x32xf32> to vector<16xf32>
    %222 = vector.shape_cast %221 : vector<16xf32> to vector<16x1xf32>
    %cst_90 = arith.constant 3.200000e+01 : f32
    %223 = vector.broadcast %cst_90 : f32 to vector<16x1xf32>
    %224 = arith.divf %222, %223 : vector<16x1xf32>
    %225 = vector.broadcast %217 : vector<16x1xf32> to vector<16x32xf32>
    %226 = arith.subf %213, %225 : vector<16x32xf32>
    %cst_91 = arith.constant 9.99999974E-6 : f32
    %227 = vector.broadcast %cst_91 : f32 to vector<16x1xf32>
    %228 = arith.addf %224, %227 : vector<16x1xf32>
    %229 = math.rsqrt %228 : vector<16x1xf32>
    %230 = vector.broadcast %229 : vector<16x1xf32> to vector<16x32xf32>
    %231 = arith.mulf %226, %230 : vector<16x32xf32>
    %232 = vector.broadcast %0 : vector<1x32xf32> to vector<16x32xf32>
    %233 = arith.mulf %231, %232 : vector<16x32xf32>
    %234 = vector.broadcast %1 : vector<1x32xf32> to vector<16x32xf32>
    %235 = arith.addf %233, %234 : vector<16x32xf32>
    %236 = vector.shape_cast %235 : vector<16x32xf32> to vector<2x8x32xf32>
    %237 = vector.extract_strided_slice %236 {offsets = [0, 7, 0], sizes = [2, 1, 32], strides = [1, 1, 1]} : vector<2x8x32xf32> to vector<2x1x32xf32>
    %238 = vector.shape_cast %237 : vector<2x1x32xf32> to vector<2x32xf32>
    %c0_92 = arith.constant 0 : index
    %c0_93 = arith.constant 0 : index
    %239 = vector.load %arg13[%c0_92, %c0_93] : memref<2x32xf32, #tpu.memory_space<vmem>>, vector<2x32xf32>
    tpu.vector_store %arg13[%c0_92, %c0_93], %238 {strides = array<i32>} : memref<2x32xf32, #tpu.memory_space<vmem>>, vector<2x32xf32>,
    return
  }
  func.func @transform_0(%arg0: i32) -> (i32, i32, i32) {
    %c0_i32 = arith.constant 0 : i32
    %c0_i32_0 = arith.constant 0 : i32
    %c0_i32_1 = arith.constant 0 : i32
    return %arg0, %c0_i32, %c0_i32_0 : i32, i32, i32
  }
  func.func @transform_1(%arg0: i32) -> (i32, i32) {
    %c0_i32 = arith.constant 0 : i32
    %c0_i32_0 = arith.constant 0 : i32
    %c0_i32_1 = arith.constant 0 : i32
    return %c0_i32, %c0_i32_0 : i32, i32
  }
  func.func @transform_2(%arg0: i32) -> (i32, i32, i32) {
    %c0_i32 = arith.constant 0 : i32
    %c0_i32_0 = arith.constant 0 : i32
    %c0_i32_1 = arith.constant 0 : i32
    %c0_i32_2 = arith.constant 0 : i32
    return %c0_i32, %c0_i32_0, %c0_i32_1 : i32, i32, i32
  }
  func.func @transform_3(%arg0: i32) -> (i32, i32, i32) {
    %c0_i32 = arith.constant 0 : i32
    %c0_i32_0 = arith.constant 0 : i32
    %c0_i32_1 = arith.constant 0 : i32
    %c0_i32_2 = arith.constant 0 : i32
    return %c0_i32, %c0_i32_0, %c0_i32_1 : i32, i32, i32
  }
  func.func @transform_4(%arg0: i32) -> (i32, i32, i32) {
    %c0_i32 = arith.constant 0 : i32
    %c0_i32_0 = arith.constant 0 : i32
    %c0_i32_1 = arith.constant 0 : i32
    %c0_i32_2 = arith.constant 0 : i32
    return %c0_i32, %c0_i32_0, %c0_i32_1 : i32, i32, i32
  }
  func.func @transform_5(%arg0: i32) -> (i32, i32, i32) {
    %c0_i32 = arith.constant 0 : i32
    %c0_i32_0 = arith.constant 0 : i32
    %c0_i32_1 = arith.constant 0 : i32
    %c0_i32_2 = arith.constant 0 : i32
    return %c0_i32, %c0_i32_0, %c0_i32_1 : i32, i32, i32
  }
  func.func @transform_6(%arg0: i32) -> (i32, i32, i32) {
    %c0_i32 = arith.constant 0 : i32
    %c0_i32_0 = arith.constant 0 : i32
    %c0_i32_1 = arith.constant 0 : i32
    %c0_i32_2 = arith.constant 0 : i32
    return %c0_i32, %c0_i32_0, %c0_i32_1 : i32, i32, i32
  }
  func.func @transform_7(%arg0: i32) -> (i32, i32, i32) {
    %c0_i32 = arith.constant 0 : i32
    %c0_i32_0 = arith.constant 0 : i32
    %c0_i32_1 = arith.constant 0 : i32
    %c0_i32_2 = arith.constant 0 : i32
    return %c0_i32, %c0_i32_0, %c0_i32_1 : i32, i32, i32
  }
  func.func @transform_8(%arg0: i32) -> (i32, i32, i32) {
    %c0_i32 = arith.constant 0 : i32
    %c0_i32_0 = arith.constant 0 : i32
    %c0_i32_1 = arith.constant 0 : i32
    %c0_i32_2 = arith.constant 0 : i32
    return %c0_i32, %c0_i32_0, %c0_i32_1 : i32, i32, i32
  }
  func.func @transform_9(%arg0: i32) -> (i32, i32, i32) {
    %c0_i32 = arith.constant 0 : i32
    %c0_i32_0 = arith.constant 0 : i32
    %c0_i32_1 = arith.constant 0 : i32
    %c0_i32_2 = arith.constant 0 : i32
    return %c0_i32, %c0_i32_0, %c0_i32_1 : i32, i32, i32
  }
  func.func @transform_10(%arg0: i32) -> (i32, i32) {
    %c0_i32 = arith.constant 0 : i32
    %c0_i32_0 = arith.constant 0 : i32
    %c0_i32_1 = arith.constant 0 : i32
    return %c0_i32, %c0_i32_0 : i32, i32
  }
  func.func @transform_11(%arg0: i32) -> (i32, i32) {
    %c0_i32 = arith.constant 0 : i32
    %c0_i32_0 = arith.constant 0 : i32
    %c0_i32_1 = arith.constant 0 : i32
    return %c0_i32, %c0_i32_0 : i32, i32
  }
  func.func @transform_12(%arg0: i32) -> (i32, i32) {
    %c0_i32 = arith.constant 0 : i32
    %c0_i32_0 = arith.constant 0 : i32
    return %arg0, %c0_i32 : i32, i32
  }
}

</mosaic_0001>

<llo_original>
// kernel: tpu_custom_call.1
$region0: #{tpu_custom_call.1}
  #allocation0 [shape = 'u32[]', space=smem, size = 0x4, offset = 0x4, fixed_abs, tag = 'smem constant byte address 0x4 - core index']
  #allocation1 [shape = 'u32[72,128]{1,0:T(1,128)}', space=vmem, size = 0x9000, scoped, tag = 'internal scratch']
  %s0 = inlined_call_operand.hbm [shape: f32[2,8,32], index: 0, kind: input, shape index: {}]
  %s1 = inlined_call_operand.hbm [shape: f32[8,32], index: 1, kind: input, shape index: {}]
  %s2 = inlined_call_operand.vmem [shape: f32[2,32,96], index: 2, kind: input, shape index: {}]
  %s3 = inlined_call_operand.vmem [shape: f32[2,1,96], index: 3, kind: input, shape index: {}]
  %s4 = inlined_call_operand.vmem [shape: f32[2,32,32], index: 4, kind: input, shape index: {}]
  %s5 = inlined_call_operand.hbm [shape: f32[2,1,32], index: 5, kind: input, shape index: {}]
  %s6 = inlined_call_operand.vmem [shape: f32[2,32,64], index: 6, kind: input, shape index: {}]
  %s7 = inlined_call_operand.vmem [shape: f32[2,1,64], index: 7, kind: input, shape index: {}]
  %s8 = inlined_call_operand.vmem [shape: f32[2,64,32], index: 8, kind: input, shape index: {}]
  %s9 = inlined_call_operand.vmem [shape: f32[2,1,32], index: 9, kind: input, shape index: {}]
  %s10 = inlined_call_operand.vmem [shape: f32[1,32], index: 10, kind: input, shape index: {}]
  %s11 = inlined_call_operand.vmem [shape: f32[1,32], index: 11, kind: input, shape index: {}]
  %s12 = inlined_call_operand.hbm [shape: f32[2,32], index: 12, kind: output, shape index: {}]
  %s13 = sld [smem:[#allocation0]]
  $region70: #{tpu_custom_call.1} parent=0
    _
  %s15 = ssub.s32 1, %s13
  %s16 = scalar_select 0, %s15, %s13
  $region1: #{tpu_custom_call.1} parent=0
    #allocation2 [shape = 'u8[8192]{0}', space=vmem, size = 0x2000, scoped, tag = 'input window, operand 0, single buffered']
    #allocation3 [shape = 's32[1]{0}', space=sflag, size = 0x4, scoped, tag = 'scoped memory for tpu_custom_call.1']
    #allocation4 [shape = 's32[1]{0}', space=sflag, size = 0x4, scoped, tag = 'scoped memory for tpu_custom_call.1']
    #allocation5 [shape = 'u8[4096]{0}', space=vmem, size = 0x1000, scoped, tag = 'input window, operand 1, single buffered']
    #allocation6 [shape = 's32[1]{0}', space=sflag, size = 0x4, scoped, tag = 'scoped memory for tpu_custom_call.1']
    #allocation7 [shape = 'u8[1024]{0}', space=vmem, size = 0x400, scoped, tag = 'input window, operand 5, single buffered']
    #allocation8 [shape = 'u8[1024]{0}', space=vmem, size = 0x400, scoped, tag = 'output window, operand 0, single buffered']
    %17 = vsyncpa [#allocation3], 0
    %18 = vsyncpa [#allocation6], 0
    %19 = vsyncpa [#allocation4], 0
    // Predicated region
    $region2: #{tpu_custom_call.1} parent=1 // pred_check
      _
    $region3: #{tpu_custom_call.1} parent=1 // pred_check_branch
      %21 = sbr.rel (0) target = $region5
    $region4: #{tpu_custom_call.1} parent=1 // pred_region
      %23 = vsyncadd [#allocation3], 0
      %s24 = sshll.u32 %s0, 4
      %s25 = int_to_ptr.hbm [resolvable:$true] %s24
      %s26 = sshll.u32 [#allocation2], 4
      %s27 = int_to_ptr.vmem [resolvable:$true] %s26
      %32 = dma.hbm_to_vmem [thread:$0]  %s25, 256, %s27, [#allocation3], 128, 128, 8
    $region5: #{tpu_custom_call.1} parent=1 // pred_fallthru
      _
    // Predicated region
    $region6: #{tpu_custom_call.1} parent=1 // pred_check
      _
    $region7: #{tpu_custom_call.1} parent=1 // pred_check_branch
      %34 = sbr.rel (0) target = $region9
    $region8: #{tpu_custom_call.1} parent=1 // pred_region
      %36 = vsyncadd [#allocation6], 0
      %s38 = sshll.u32 %s1, 4
      %s39 = int_to_ptr.hbm [resolvable:$true] %s38
      %s40 = sshll.u32 [#allocation5], 4
      %s41 = int_to_ptr.vmem [resolvable:$true] %s40
      %43 = dma.hbm_to_vmem [thread:$0]  %s39, 128, %s41, [#allocation6]
    $region9: #{tpu_custom_call.1} parent=1 // pred_fallthru
      _
    // Predicated region
    $region10: #{tpu_custom_call.1} parent=1 // pred_check
      _
    $region11: #{tpu_custom_call.1} parent=1 // pred_check_branch
      %45 = sbr.rel (0) target = $region13
    $region12: #{tpu_custom_call.1} parent=1 // pred_region
      _
    $region13: #{tpu_custom_call.1} parent=1 // pred_fallthru
      _
    // Predicated region
    $region14: #{tpu_custom_call.1} parent=1 // pred_check
      _
    $region15: #{tpu_custom_call.1} parent=1 // pred_check_branch
      %47 = sbr.rel (0) target = $region17
    $region16: #{tpu_custom_call.1} parent=1 // pred_region
      _
    $region17: #{tpu_custom_call.1} parent=1 // pred_fallthru
      _
    // Predicated region
    $region18: #{tpu_custom_call.1} parent=1 // pred_check
      _
    $region19: #{tpu_custom_call.1} parent=1 // pred_check_branch
      %49 = sbr.rel (0) target = $region21
    $region20: #{tpu_custom_call.1} parent=1 // pred_region
      _
    $region21: #{tpu_custom_call.1} parent=1 // pred_fallthru
      _
    // Predicated region
    $region22: #{tpu_custom_call.1} parent=1 // pred_check
      _
    $region23: #{tpu_custom_call.1} parent=1 // pred_check_branch
      %51 = sbr.rel (0) target = $region25
    $region24: #{tpu_custom_call.1} parent=1 // pred_region
      %53 = vsyncadd [#allocation6], 0
      %s54 = sshll.u32 %s5, 4
      %s55 = int_to_ptr.hbm [resolvable:$true] %s54
      %s56 = sshll.u32 [#allocation7], 4
      %s57 = int_to_ptr.vmem [resolvable:$true] %s56
      %62 = dma.hbm_to_vmem [thread:$0]  %s55, 32, %s57, [#allocation6], 16, 16, 1
    $region25: #{tpu_custom_call.1} parent=1 // pred_fallthru
      _
    // Predicated region
    $region26: #{tpu_custom_call.1} parent=1 // pred_check
      _
    $region27: #{tpu_custom_call.1} parent=1 // pred_check_branch
      %64 = sbr.rel (0) target = $region29
    $region28: #{tpu_custom_call.1} parent=1 // pred_region
      _
    $region29: #{tpu_custom_call.1} parent=1 // pred_fallthru
      _
    // Predicated region
    $region30: #{tpu_custom_call.1} parent=1 // pred_check
      _
    $region31: #{tpu_custom_call.1} parent=1 // pred_check_branch
      %66 = sbr.rel (0) target = $region33
    $region32: #{tpu_custom_call.1} parent=1 // pred_region
      _
    $region33: #{tpu_custom_call.1} parent=1 // pred_fallthru
      _
    // Predicated region
    $region34: #{tpu_custom_call.1} parent=1 // pred_check
      _
    $region35: #{tpu_custom_call.1} parent=1 // pred_check_branch
      %68 = sbr.rel (0) target = $region37
    $region36: #{tpu_custom_call.1} parent=1 // pred_region
      _
    $region37: #{tpu_custom_call.1} parent=1 // pred_fallthru
      _
    // Predicated region
    $region38: #{tpu_custom_call.1} parent=1 // pred_check
      _
    $region39: #{tpu_custom_call.1} parent=1 // pred_check_branch
      %70 = sbr.rel (0) target = $region41
    $region40: #{tpu_custom_call.1} parent=1 // pred_region
      _
    $region41: #{tpu_custom_call.1} parent=1 // pred_fallthru
      _
    // Predicated region
    $region42: #{tpu_custom_call.1} parent=1 // pred_check
      _
    $region43: #{tpu_custom_call.1} parent=1 // pred_check_branch
      %72 = sbr.rel (0) target = $region45
    $region44: #{tpu_custom_call.1} parent=1 // pred_region
      _
    $region45: #{tpu_custom_call.1} parent=1 // pred_fallthru
      _
    // Predicated region
    $region46: #{tpu_custom_call.1} parent=1 // pred_check
      _
    $region47: #{tpu_custom_call.1} parent=1 // pred_check_branch
      %74 = sbr.rel (0) target = $region49
    $region48: #{tpu_custom_call.1} parent=1 // pred_region
      _
    $region49: #{tpu_custom_call.1} parent=1 // pred_fallthru
      _
    // Predicated region
    $region50: #{tpu_custom_call.1} parent=1 // pred_check
      _
    $region51: #{tpu_custom_call.1} parent=1 // pred_check_branch
      %76 = sbr.rel (0) target = $region53
    $region52: #{tpu_custom_call.1} parent=1 // pred_region
      %78 = dma.done [#allocation3], 256
    $region53: #{tpu_custom_call.1} parent=1 // pred_fallthru
      _
    // Predicated region
    $region54: #{tpu_custom_call.1} parent=1 // pred_check
      _
    $region55: #{tpu_custom_call.1} parent=1 // pred_check_branch
      %80 = sbr.rel (0) target = $region57
    $region56: #{tpu_custom_call.1} parent=1 // pred_region
      %82 = dma.done [#allocation6], 128
    $region57: #{tpu_custom_call.1} parent=1 // pred_fallthru
      _
    // Predicated region
    $region58: #{tpu_custom_call.1} parent=1 // pred_check
      _
    $region59: #{tpu_custom_call.1} parent=1 // pred_check_branch
      %84 = sbr.rel (0) target = $region61
    $region60: #{tpu_custom_call.1} parent=1 // pred_region
      %86 = dma.done [#allocation6], 32
    $region61: #{tpu_custom_call.1} parent=1 // pred_fallthru
      _
    %v87 = vld [vmem:[%s10] sm:$0x1]
    %v88 = vld [vmem:[%s11] sm:$0x1]
    %v89 = vld [vmem:[#allocation2] sm:$0xff]
    %v90 = vld [vmem:[#allocation2 + $0x8] sm:$0xff]
    %v91 = vld [vmem:[#allocation5] sm:$0xff]
    %v92 = vadd.f32 %v89, %v91
    %v93 = vadd.f32 %v90, %v91
    %v94 = vld [vmem:[%s2] sm:$0xff]
    %v95 = vld [vmem:[%s2 + $0x8] sm:$0xff]
    %v96 = vld [vmem:[%s2 + $0x10] sm:$0xff]
    %v97 = vld [vmem:[%s2 + $0x18] sm:$0xff]
    %v98 = vld [vmem:[%s3] sm:$0x1]
    %v100 = vperm.slane %v98, 0
    %vm102 = vcmask 261120
    %v104 = vsel %vm102, %v92, 0
    %v107 = vsel %vm102, %v93, 0
    %109 = vmatpush.msra.mxu0 0.0
    %110 = vmatpush.msra.mxu0 0.0
    %111 = vmatpush.msra.mxu0 0.0
    %112 = vmatpush.msra.mxu0 0.0
    %113 = vmatpush.msra.mxu0 0.0
    %114 = vmatpush.msra.mxu0 0.0
    %115 = vmatpush.msra.mxu0 0.0
    %116 = vmatpush.msra.mxu0 0.0
    %117 = vmatpush.msra.mxu0 0.0
    %118 = vmatpush.msra.mxu0 0.0
    %119 = vmatpush.msra.mxu0 0.0
    %120 = vmatpush.msra.mxu0 0.0
    %121 = vmatpush.msra.mxu0 %v97
    %122 = vmatpush.msra.mxu0 %v96
    %123 = vmatpush.msra.mxu0 %v95
    %124 = vmatpush.msra.mxu0 %v94
    %125 = vmatmul.f32.gmra.mxu0 %v104
    %v126 = vpop.f32.mrf.mxu0
    %v127 = vadd.f32 %v100, %v126
    %128 = vmatmul.f32.gmra.mxu0 %v107
    %v129 = vpop.f32.mrf.mxu0
    %v130 = vadd.f32 %v100, %v129
    %131 = vdwg.mxu0
    %134 = vrot.lane.b32.xlu0 %v127, 120
    %v135 = vpop.permute.xlu0 %134
    %136 = vrot.lane.b32.xlu0 %v130, 120
    %v137 = vpop.permute.xlu0 %136
    %138 = vrot.lane.b32.xlu0 %v127, 112
    %v139 = vpop.permute.xlu0 %138
    %140 = vrot.lane.b32.xlu0 %v130, 112
    %v141 = vpop.permute.xlu0 %140
    %142 = vrot.lane.b32.xlu0 %v127, 104
    %v143 = vpop.permute.xlu0 %142
    %144 = vrot.lane.b32.xlu0 %v130, 104
    %v145 = vpop.permute.xlu0 %144
    %146 = vrot.lane.b32.xlu0 %v127, 96
    %v147 = vpop.permute.xlu0 %146
    %vm148 = vcmask 64512
    %v149 = vsel %vm148, %v127, 0
    %v151 = vsel %vm148, %v147, 0
    %153 = vmatpush.xpose.msra.mxu0 0.0
    %154 = vmatpush.xpose.msra.mxu0 0.0
    %155 = vmatpush.xpose.msra.mxu0 0.0
    %156 = vmatpush.xpose.msra.mxu0 0.0
    %157 = vmatpush.xpose.msra.mxu0 0.0
    %158 = vmatpush.xpose.msra.mxu0 0.0
    %159 = vmatpush.xpose.msra.mxu0 0.0
    %160 = vmatpush.xpose.msra.mxu0 0.0
    %161 = vmatpush.xpose.msra.mxu0 0.0
    %162 = vmatpush.xpose.msra.mxu0 0.0
    %163 = vmatpush.xpose.msra.mxu0 0.0
    %164 = vmatpush.xpose.msra.mxu0 0.0
    %165 = vmatpush.xpose.msra.mxu0 0.0
    %166 = vmatpush.xpose.msra.mxu0 0.0
    %167 = vmatpush.xpose.msra.mxu0 0.0
    %168 = vmatpush.xpose.msra.mxu0 %v151
    %169 = vmatmul.f32.gmra.mxu0 %v149
    %v170 = vpop.f32.mrf.mxu0
    %v171 = vadd.f32 0.0, %v170
    %172 = vdwg.mxu0
    %173 = vrot.lane.b32.xlu0 %v130, 96
    %v174 = vpop.permute.xlu0 %173
    %v175 = vsel %vm148, %v130, 0
    %v177 = vsel %vm148, %v174, 0
    %179 = vmatpush.xpose.msra.mxu0 0.0
    %180 = vmatpush.xpose.msra.mxu0 0.0
    %181 = vmatpush.xpose.msra.mxu0 0.0
    %182 = vmatpush.xpose.msra.mxu0 0.0
    %183 = vmatpush.xpose.msra.mxu0 0.0
    %184 = vmatpush.xpose.msra.mxu0 0.0
    %185 = vmatpush.xpose.msra.mxu0 0.0
    %186 = vmatpush.xpose.msra.mxu0 0.0
    %187 = vmatpush.xpose.msra.mxu0 0.0
    %188 = vmatpush.xpose.msra.mxu0 0.0
    %189 = vmatpush.xpose.msra.mxu0 0.0
    %190 = vmatpush.xpose.msra.mxu0 0.0
    %191 = vmatpush.xpose.msra.mxu0 0.0
    %192 = vmatpush.xpose.msra.mxu0 0.0
    %193 = vmatpush.xpose.msra.mxu0 0.0
    %194 = vmatpush.xpose.msra.mxu0 %v177
    %195 = vmatmul.f32.gmra.mxu0 %v175
    %v196 = vpop.f32.mrf.mxu0
    %v197 = vadd.f32 0.0, %v196
    %198 = vdwg.mxu0
    %199 = vrot.lane.b32.xlu0 %v135, 96
    %v200 = vpop.permute.xlu0 %199
    %v201 = vsel %vm148, %v135, 0
    %v203 = vsel %vm148, %v200, 0
    %205 = vmatpush.xpose.msra.mxu0 0.0
    %206 = vmatpush.xpose.msra.mxu0 0.0
    %207 = vmatpush.xpose.msra.mxu0 0.0
    %208 = vmatpush.xpose.msra.mxu0 0.0
    %209 = vmatpush.xpose.msra.mxu0 0.0
    %210 = vmatpush.xpose.msra.mxu0 0.0
    %211 = vmatpush.xpose.msra.mxu0 0.0
    %212 = vmatpush.xpose.msra.mxu0 0.0
    %213 = vmatpush.xpose.msra.mxu0 0.0
    %214 = vmatpush.xpose.msra.mxu0 0.0
    %215 = vmatpush.xpose.msra.mxu0 0.0
    %216 = vmatpush.xpose.msra.mxu0 0.0
    %217 = vmatpush.xpose.msra.mxu0 0.0
    %218 = vmatpush.xpose.msra.mxu0 0.0
    %219 = vmatpush.xpose.msra.mxu0 0.0
    %220 = vmatpush.xpose.msra.mxu0 %v203
    %221 = vmatmul.f32.gmra.mxu0 %v201
    %v222 = vpop.f32.mrf.mxu0
    %v223 = vadd.f32 0.0, %v222
    %224 = vdwg.mxu0
    %225 = vrot.lane.b32.xlu0 %v137, 96
    %v226 = vpop.permute.xlu0 %225
    %v227 = vsel %vm148, %v137, 0
    %v229 = vsel %vm148, %v226, 0
    %231 = vmatpush.xpose.msra.mxu0 0.0
    %232 = vmatpush.xpose.msra.mxu0 0.0
    %233 = vmatpush.xpose.msra.mxu0 0.0
    %234 = vmatpush.xpose.msra.mxu0 0.0
    %235 = vmatpush.xpose.msra.mxu0 0.0
    %236 = vmatpush.xpose.msra.mxu0 0.0
    %237 = vmatpush.xpose.msra.mxu0 0.0
    %238 = vmatpush.xpose.msra.mxu0 0.0
    %239 = vmatpush.xpose.msra.mxu0 0.0
    %240 = vmatpush.xpose.msra.mxu0 0.0
    %241 = vmatpush.xpose.msra.mxu0 0.0
    %242 = vmatpush.xpose.msra.mxu0 0.0
    %243 = vmatpush.xpose.msra.mxu0 0.0
    %244 = vmatpush.xpose.msra.mxu0 0.0
    %245 = vmatpush.xpose.msra.mxu0 0.0
    %246 = vmatpush.xpose.msra.mxu0 %v229
    %247 = vmatmul.f32.gmra.mxu0 %v227
    %v248 = vpop.f32.mrf.mxu0
    %v249 = vadd.f32 0.0, %v248
    %250 = vdwg.mxu0
    %251 = vrot.lane.b32.xlu0 %v139, 96
    %v252 = vpop.permute.xlu0 %251
    %v253 = vsel %vm148, %v139, 0
    %v255 = vsel %vm148, %v252, 0
    %257 = vmatpush.xpose.msra.mxu0 0.0
    %258 = vmatpush.xpose.msra.mxu0 0.0
    %259 = vmatpush.xpose.msra.mxu0 0.0
    %260 = vmatpush.xpose.msra.mxu0 0.0
    %261 = vmatpush.xpose.msra.mxu0 0.0
    %262 = vmatpush.xpose.msra.mxu0 0.0
    %263 = vmatpush.xpose.msra.mxu0 0.0
    %264 = vmatpush.xpose.msra.mxu0 0.0
    %265 = vmatpush.xpose.msra.mxu0 0.0
    %266 = vmatpush.xpose.msra.mxu0 0.0
    %267 = vmatpush.xpose.msra.mxu0 0.0
    %268 = vmatpush.xpose.msra.mxu0 0.0
    %269 = vmatpush.xpose.msra.mxu0 0.0
    %270 = vmatpush.xpose.msra.mxu0 0.0
    %271 = vmatpush.xpose.msra.mxu0 0.0
    %272 = vmatpush.xpose.msra.mxu0 %v255
    %273 = vmatmul.f32.gmra.mxu0 %v253
    %v274 = vpop.f32.mrf.mxu0
    %v275 = vadd.f32 0.0, %v274
    %276 = vdwg.mxu0
    %277 = vrot.lane.b32.xlu0 %v141, 96
    %v278 = vpop.permute.xlu0 %277
    %v279 = vsel %vm148, %v141, 0
    %v281 = vsel %vm148, %v278, 0
    %283 = vmatpush.xpose.msra.mxu0 0.0
    %284 = vmatpush.xpose.msra.mxu0 0.0
    %285 = vmatpush.xpose.msra.mxu0 0.0
    %286 = vmatpush.xpose.msra.mxu0 0.0
    %287 = vmatpush.xpose.msra.mxu0 0.0
    %288 = vmatpush.xpose.msra.mxu0 0.0
    %289 = vmatpush.xpose.msra.mxu0 0.0
    %290 = vmatpush.xpose.msra.mxu0 0.0
    %291 = vmatpush.xpose.msra.mxu0 0.0
    %292 = vmatpush.xpose.msra.mxu0 0.0
    %293 = vmatpush.xpose.msra.mxu0 0.0
    %294 = vmatpush.xpose.msra.mxu0 0.0
    %295 = vmatpush.xpose.msra.mxu0 0.0
    %296 = vmatpush.xpose.msra.mxu0 0.0
    %297 = vmatpush.xpose.msra.mxu0 0.0
    %298 = vmatpush.xpose.msra.mxu0 %v281
    %299 = vmatmul.f32.gmra.mxu0 %v279
    %v300 = vpop.f32.mrf.mxu0
    %v301 = vadd.f32 0.0, %v300
    %302 = vdwg.mxu0
    %303 = vrot.lane.b32.xlu0 %v143, 96
    %v304 = vpop.permute.xlu0 %303
    %v305 = vsel %vm148, %v143, 0
    %v307 = vsel %vm148, %v304, 0
    %309 = vmatpush.xpose.msra.mxu0 0.0
    %310 = vmatpush.xpose.msra.mxu0 0.0
    %311 = vmatpush.xpose.msra.mxu0 0.0
    %312 = vmatpush.xpose.msra.mxu0 0.0
    %313 = vmatpush.xpose.msra.mxu0 0.0
    %314 = vmatpush.xpose.msra.mxu0 0.0
    %315 = vmatpush.xpose.msra.mxu0 0.0
    %316 = vmatpush.xpose.msra.mxu0 0.0
    %317 = vmatpush.xpose.msra.mxu0 0.0
    %318 = vmatpush.xpose.msra.mxu0 0.0
    %319 = vmatpush.xpose.msra.mxu0 0.0
    %320 = vmatpush.xpose.msra.mxu0 0.0
    %321 = vmatpush.xpose.msra.mxu0 0.0
    %322 = vmatpush.xpose.msra.mxu0 0.0
    %323 = vmatpush.xpose.msra.mxu0 0.0
    %324 = vmatpush.xpose.msra.mxu0 %v307
    %325 = vmatmul.f32.gmra.mxu0 %v305
    %v326 = vpop.f32.mrf.mxu0
    %v327 = vadd.f32 0.0, %v326
    %328 = vdwg.mxu0
    %329 = vrot.lane.b32.xlu0 %v145, 96
    %v330 = vpop.permute.xlu0 %329
    %v331 = vsel %vm148, %v145, 0
    %v333 = vsel %vm148, %v330, 0
    %335 = vmatpush.xpose.msra.mxu0 0.0
    %336 = vmatpush.xpose.msra.mxu0 0.0
    %337 = vmatpush.xpose.msra.mxu0 0.0
    %338 = vmatpush.xpose.msra.mxu0 0.0
    %339 = vmatpush.xpose.msra.mxu0 0.0
    %340 = vmatpush.xpose.msra.mxu0 0.0
    %341 = vmatpush.xpose.msra.mxu0 0.0
    %342 = vmatpush.xpose.msra.mxu0 0.0
    %343 = vmatpush.xpose.msra.mxu0 0.0
    %344 = vmatpush.xpose.msra.mxu0 0.0
    %345 = vmatpush.xpose.msra.mxu0 0.0
    %346 = vmatpush.xpose.msra.mxu0 0.0
    %347 = vmatpush.xpose.msra.mxu0 0.0
    %348 = vmatpush.xpose.msra.mxu0 0.0
    %349 = vmatpush.xpose.msra.mxu0 0.0
    %350 = vmatpush.xpose.msra.mxu0 %v333
    %351 = vmatmul.f32.gmra.mxu0 %v331
    %v352 = vpop.f32.mrf.mxu0
    %v353 = vadd.f32 0.0, %v352
    %354 = vdwg.mxu0
    %v355 = vsel %vm148, %v171, -inf
    %356 = vmax.xlane.f32.xlu0 %v355
    %v357 = vpop.xlane.xlu0 %356
    %v358 = vsel %vm148, %v197, -inf
    %359 = vmax.xlane.f32.xlu0 %v358
    %v360 = vpop.xlane.xlu0 %359
    %v361 = vsel %vm148, %v223, -inf
    %362 = vmax.xlane.f32.xlu0 %v361
    %v363 = vpop.xlane.xlu0 %362
    %v364 = vsel %vm148, %v249, -inf
    %365 = vmax.xlane.f32.xlu0 %v364
    %v366 = vpop.xlane.xlu0 %365
    %v367 = vsel %vm148, %v275, -inf
    %368 = vmax.xlane.f32.xlu0 %v367
    %v369 = vpop.xlane.xlu0 %368
    %v370 = vsel %vm148, %v301, -inf
    %371 = vmax.xlane.f32.xlu0 %v370
    %v372 = vpop.xlane.xlu0 %371
    %v373 = vsel %vm148, %v327, -inf
    %374 = vmax.xlane.f32.xlu0 %v373
    %v375 = vpop.xlane.xlu0 %374
    %v376 = vsel %vm148, %v353, -inf
    %377 = vmax.xlane.f32.xlu0 %v376
    %v378 = vpop.xlane.xlu0 %377
    %v379 = vsub.f32 %v171, %v357
    %v380 = vsub.f32 %v197, %v360
    %v381 = vsub.f32 %v223, %v363
    %v382 = vsub.f32 %v249, %v366
    %v383 = vsub.f32 %v275, %v369
    %v384 = vsub.f32 %v301, %v372
    %v385 = vsub.f32 %v327, %v375
    %v386 = vsub.f32 %v353, %v378
    %v387 = vmul.f32 %v379, 1.442695
    %v388 = vpow.pop %v387
    %v389 = vmul.f32 %v380, 1.442695
    %v390 = vpow.pop %v389
    %v391 = vmul.f32 %v381, 1.442695
    %v392 = vpow.pop %v391
    %v393 = vmul.f32 %v382, 1.442695
    %v394 = vpow.pop %v393
    %v395 = vmul.f32 %v383, 1.442695
    %v396 = vpow.pop %v395
    %v397 = vmul.f32 %v384, 1.442695
    %v398 = vpow.pop %v397
    %v399 = vmul.f32 %v385, 1.442695
    %v400 = vpow.pop %v399
    %v401 = vmul.f32 %v386, 1.442695
    %v402 = vpow.pop %v401
    %v403 = vsel %vm148, %v388, 0.0
    %404 = vadd.xlane.f32.xlu0 %v403
    %v405 = vpop.xlane.xlu0 %404
    %v406 = vsel %vm148, %v390, 0.0
    %407 = vadd.xlane.f32.xlu0 %v406
    %v408 = vpop.xlane.xlu0 %407
    %v409 = vsel %vm148, %v392, 0.0
    %410 = vadd.xlane.f32.xlu0 %v409
    %v411 = vpop.xlane.xlu0 %410
    %v412 = vsel %vm148, %v394, 0.0
    %413 = vadd.xlane.f32.xlu0 %v412
    %v414 = vpop.xlane.xlu0 %413
    %v415 = vsel %vm148, %v396, 0.0
    %416 = vadd.xlane.f32.xlu0 %v415
    %v417 = vpop.xlane.xlu0 %416
    %v418 = vsel %vm148, %v398, 0.0
    %419 = vadd.xlane.f32.xlu0 %v418
    %v420 = vpop.xlane.xlu0 %419
    %v421 = vsel %vm148, %v400, 0.0
    %422 = vadd.xlane.f32.xlu0 %v421
    %v423 = vpop.xlane.xlu0 %422
    %v424 = vsel %vm148, %v402, 0.0
    %425 = vadd.xlane.f32.xlu0 %v424
    %v426 = vpop.xlane.xlu0 %425
    %v427 = vrcp.pop %v405
    %v428 = vrcp.pop %v408
    %v429 = vrcp.pop %v411
    %v430 = vrcp.pop %v414
    %v431 = vrcp.pop %v417
    %v432 = vrcp.pop %v420
    %v433 = vrcp.pop %v423
    %v434 = vrcp.pop %v426
    %v435 = vmul.f32 %v388, %v427
    %v436 = vmul.f32 %v390, %v428
    %v437 = vmul.f32 %v392, %v429
    %v438 = vmul.f32 %v394, %v430
    %v439 = vmul.f32 %v396, %v431
    %v440 = vmul.f32 %v398, %v432
    %v441 = vmul.f32 %v400, %v433
    %v442 = vmul.f32 %v402, %v434
    %443 = vrot.lane.b32.xlu0 %v127, 64
    %v444 = vpop.permute.xlu0 %443
    %v447 = vsel %vm148, %v435, 0
    %449 = vmatpush.msra.mxu0 0.0
    %450 = vmatpush.msra.mxu0 0.0
    %451 = vmatpush.msra.mxu0 0.0
    %452 = vmatpush.msra.mxu0 0.0
    %453 = vmatpush.msra.mxu0 0.0
    %454 = vmatpush.msra.mxu0 0.0
    %455 = vmatpush.msra.mxu0 0.0
    %456 = vmatpush.msra.mxu0 0.0
    %457 = vmatpush.msra.mxu0 0.0
    %458 = vmatpush.msra.mxu0 0.0
    %459 = vmatpush.msra.mxu0 0.0
    %460 = vmatpush.msra.mxu0 0.0
    %461 = vmatpush.msra.mxu0 0.0
    %462 = vmatpush.msra.mxu0 0.0
    %463 = vmatpush.msra.mxu0 0.0
    %464 = vmatpush.msra.mxu0 %v444
    %465 = vmatmul.f32.gmra.mxu0 %v447
    %v466 = vpop.f32.mrf.mxu0
    %v467 = vadd.f32 0.0, %v466
    %468 = vdwg.mxu0
    %469 = vrot.lane.b32.xlu0 %v130, 64
    %v470 = vpop.permute.xlu0 %469
    %v473 = vsel %vm148, %v436, 0
    %475 = vmatpush.msra.mxu0 0.0
    %476 = vmatpush.msra.mxu0 0.0
    %477 = vmatpush.msra.mxu0 0.0
    %478 = vmatpush.msra.mxu0 0.0
    %479 = vmatpush.msra.mxu0 0.0
    %480 = vmatpush.msra.mxu0 0.0
    %481 = vmatpush.msra.mxu0 0.0
    %482 = vmatpush.msra.mxu0 0.0
    %483 = vmatpush.msra.mxu0 0.0
    %484 = vmatpush.msra.mxu0 0.0
    %485 = vmatpush.msra.mxu0 0.0
    %486 = vmatpush.msra.mxu0 0.0
    %487 = vmatpush.msra.mxu0 0.0
    %488 = vmatpush.msra.mxu0 0.0
    %489 = vmatpush.msra.mxu0 0.0
    %490 = vmatpush.msra.mxu0 %v470
    %491 = vmatmul.f32.gmra.mxu0 %v473
    %v492 = vpop.f32.mrf.mxu0
    %v493 = vadd.f32 0.0, %v492
    %494 = vdwg.mxu0
    %495 = vrot.lane.b32.xlu0 %v135, 64
    %v496 = vpop.permute.xlu0 %495
    %v499 = vsel %vm148, %v437, 0
    %501 = vmatpush.msra.mxu0 0.0
    %502 = vmatpush.msra.mxu0 0.0
    %503 = vmatpush.msra.mxu0 0.0
    %504 = vmatpush.msra.mxu0 0.0
    %505 = vmatpush.msra.mxu0 0.0
    %506 = vmatpush.msra.mxu0 0.0
    %507 = vmatpush.msra.mxu0 0.0
    %508 = vmatpush.msra.mxu0 0.0
    %509 = vmatpush.msra.mxu0 0.0
    %510 = vmatpush.msra.mxu0 0.0
    %511 = vmatpush.msra.mxu0 0.0
    %512 = vmatpush.msra.mxu0 0.0
    %513 = vmatpush.msra.mxu0 0.0
    %514 = vmatpush.msra.mxu0 0.0
    %515 = vmatpush.msra.mxu0 0.0
    %516 = vmatpush.msra.mxu0 %v496
    %517 = vmatmul.f32.gmra.mxu0 %v499
    %v518 = vpop.f32.mrf.mxu0
    %v519 = vadd.f32 0.0, %v518
    %520 = vdwg.mxu0
    %521 = vrot.lane.b32.xlu0 %v137, 64
    %v522 = vpop.permute.xlu0 %521
    %v525 = vsel %vm148, %v438, 0
    %527 = vmatpush.msra.mxu0 0.0
    %528 = vmatpush.msra.mxu0 0.0
    %529 = vmatpush.msra.mxu0 0.0
    %530 = vmatpush.msra.mxu0 0.0
    %531 = vmatpush.msra.mxu0 0.0
    %532 = vmatpush.msra.mxu0 0.0
    %533 = vmatpush.msra.mxu0 0.0
    %534 = vmatpush.msra.mxu0 0.0
    %535 = vmatpush.msra.mxu0 0.0
    %536 = vmatpush.msra.mxu0 0.0
    %537 = vmatpush.msra.mxu0 0.0
    %538 = vmatpush.msra.mxu0 0.0
    %539 = vmatpush.msra.mxu0 0.0
    %540 = vmatpush.msra.mxu0 0.0
    %541 = vmatpush.msra.mxu0 0.0
    %542 = vmatpush.msra.mxu0 %v522
    %543 = vmatmul.f32.gmra.mxu0 %v525
    %v544 = vpop.f32.mrf.mxu0
    %v545 = vadd.f32 0.0, %v544
    %546 = vdwg.mxu0
    %547 = vrot.lane.b32.xlu0 %v139, 64
    %v548 = vpop.permute.xlu0 %547
    %v551 = vsel %vm148, %v439, 0
    %553 = vmatpush.msra.mxu0 0.0
    %554 = vmatpush.msra.mxu0 0.0
    %555 = vmatpush.msra.mxu0 0.0
    %556 = vmatpush.msra.mxu0 0.0
    %557 = vmatpush.msra.mxu0 0.0
    %558 = vmatpush.msra.mxu0 0.0
    %559 = vmatpush.msra.mxu0 0.0
    %560 = vmatpush.msra.mxu0 0.0
    %561 = vmatpush.msra.mxu0 0.0
    %562 = vmatpush.msra.mxu0 0.0
    %563 = vmatpush.msra.mxu0 0.0
    %564 = vmatpush.msra.mxu0 0.0
    %565 = vmatpush.msra.mxu0 0.0
    %566 = vmatpush.msra.mxu0 0.0
    %567 = vmatpush.msra.mxu0 0.0
    %568 = vmatpush.msra.mxu0 %v548
    %569 = vmatmul.f32.gmra.mxu0 %v551
    %v570 = vpop.f32.mrf.mxu0
    %v571 = vadd.f32 0.0, %v570
    %572 = vdwg.mxu0
    %573 = vrot.lane.b32.xlu0 %v141, 64
    %v574 = vpop.permute.xlu0 %573
    %v577 = vsel %vm148, %v440, 0
    %579 = vmatpush.msra.mxu0 0.0
    %580 = vmatpush.msra.mxu0 0.0
    %581 = vmatpush.msra.mxu0 0.0
    %582 = vmatpush.msra.mxu0 0.0
    %583 = vmatpush.msra.mxu0 0.0
    %584 = vmatpush.msra.mxu0 0.0
    %585 = vmatpush.msra.mxu0 0.0
    %586 = vmatpush.msra.mxu0 0.0
    %587 = vmatpush.msra.mxu0 0.0
    %588 = vmatpush.msra.mxu0 0.0
    %589 = vmatpush.msra.mxu0 0.0
    %590 = vmatpush.msra.mxu0 0.0
    %591 = vmatpush.msra.mxu0 0.0
    %592 = vmatpush.msra.mxu0 0.0
    %593 = vmatpush.msra.mxu0 0.0
    %594 = vmatpush.msra.mxu0 %v574
    %595 = vmatmul.f32.gmra.mxu0 %v577
    %v596 = vpop.f32.mrf.mxu0
    %v597 = vadd.f32 0.0, %v596
    %598 = vdwg.mxu0
    %599 = vrot.lane.b32.xlu0 %v143, 64
    %v600 = vpop.permute.xlu0 %599
    %v603 = vsel %vm148, %v441, 0
    %605 = vmatpush.msra.mxu0 0.0
    %606 = vmatpush.msra.mxu0 0.0
    %607 = vmatpush.msra.mxu0 0.0
    %608 = vmatpush.msra.mxu0 0.0
    %609 = vmatpush.msra.mxu0 0.0
    %610 = vmatpush.msra.mxu0 0.0
    %611 = vmatpush.msra.mxu0 0.0
    %612 = vmatpush.msra.mxu0 0.0
    %613 = vmatpush.msra.mxu0 0.0
    %614 = vmatpush.msra.mxu0 0.0
    %615 = vmatpush.msra.mxu0 0.0
    %616 = vmatpush.msra.mxu0 0.0
    %617 = vmatpush.msra.mxu0 0.0
    %618 = vmatpush.msra.mxu0 0.0
    %619 = vmatpush.msra.mxu0 0.0
    %620 = vmatpush.msra.mxu0 %v600
    %621 = vmatmul.f32.gmra.mxu0 %v603
    %v622 = vpop.f32.mrf.mxu0
    %v623 = vadd.f32 0.0, %v622
    %624 = vdwg.mxu0
    %625 = vrot.lane.b32.xlu0 %v145, 64
    %v626 = vpop.permute.xlu0 %625
    %v629 = vsel %vm148, %v442, 0
    %631 = vmatpush.msra.mxu0 0.0
    %632 = vmatpush.msra.mxu0 0.0
    %633 = vmatpush.msra.mxu0 0.0
    %634 = vmatpush.msra.mxu0 0.0
    %635 = vmatpush.msra.mxu0 0.0
    %636 = vmatpush.msra.mxu0 0.0
    %637 = vmatpush.msra.mxu0 0.0
    %638 = vmatpush.msra.mxu0 0.0
    %639 = vmatpush.msra.mxu0 0.0
    %640 = vmatpush.msra.mxu0 0.0
    %641 = vmatpush.msra.mxu0 0.0
    %642 = vmatpush.msra.mxu0 0.0
    %643 = vmatpush.msra.mxu0 0.0
    %644 = vmatpush.msra.mxu0 0.0
    %645 = vmatpush.msra.mxu0 0.0
    %646 = vmatpush.msra.mxu0 %v626
    %647 = vmatmul.f32.gmra.mxu0 %v629
    %v648 = vpop.f32.mrf.mxu0
    %v649 = vadd.f32 0.0, %v648
    %650 = vdwg.mxu0
    %653 = vrot.lane.b32.xlu0 %v519, 8
    %v654 = vpop.permute.xlu0 %653
    %655 = vrot.lane.b32.xlu0 %v545, 8
    %v656 = vpop.permute.xlu0 %655
    %661 = vrot.lane.b32.xlu0 %v571, 16
    %v662 = vpop.permute.xlu0 %661
    %663 = vrot.lane.b32.xlu0 %v597, 16
    %v664 = vpop.permute.xlu0 %663
    %669 = vrot.lane.b32.xlu0 %v623, 24
    %v670 = vpop.permute.xlu0 %669
    %671 = vrot.lane.b32.xlu0 %v649, 24
    %v672 = vpop.permute.xlu0 %671
    %v675 = vsel %vm148, %v467, %v654
    %v676 = vsel %vm148, %v493, %v656
    %vm677 = vcmask 130048
    %v678 = vsel %vm677, %v675, %v662
    %v679 = vsel %vm677, %v676, %v664
    %vm680 = vcmask 195584
    %v681 = vsel %vm680, %v678, %v670
    %v682 = vsel %vm680, %v679, %v672
    %v683 = vld [vmem:[%s4] sm:$0xff]
    %v684 = vld [vmem:[%s4 + $0x8] sm:$0xff]
    %v685 = vld [vmem:[%s4 + $0x10] sm:$0xff]
    %v686 = vld [vmem:[%s4 + $0x18] sm:$0xff]
    %v687 = vld [vmem:[#allocation7] sm:$0x1]
    %v689 = vperm.slane %v687, 0
    %v692 = vsel %vm102, %v681, 0
    %v695 = vsel %vm102, %v682, 0
    %697 = vmatpush.msra.mxu0 0.0
    %698 = vmatpush.msra.mxu0 0.0
    %699 = vmatpush.msra.mxu0 0.0
    %700 = vmatpush.msra.mxu0 0.0
    %701 = vmatpush.msra.mxu0 0.0
    %702 = vmatpush.msra.mxu0 0.0
    %703 = vmatpush.msra.mxu0 0.0
    %704 = vmatpush.msra.mxu0 0.0
    %705 = vmatpush.msra.mxu0 0.0
    %706 = vmatpush.msra.mxu0 0.0
    %707 = vmatpush.msra.mxu0 0.0
    %708 = vmatpush.msra.mxu0 0.0
    %709 = vmatpush.msra.mxu0 %v686
    %710 = vmatpush.msra.mxu0 %v685
    %711 = vmatpush.msra.mxu0 %v684
    %712 = vmatpush.msra.mxu0 %v683
    %713 = vmatmul.f32.gmra.mxu0 %v692
    %v714 = vpop.f32.mrf.mxu0
    %v715 = vadd.f32 %v689, %v714
    %716 = vmatmul.f32.gmra.mxu0 %v695
    %v717 = vpop.f32.mrf.mxu0
    %v718 = vadd.f32 %v689, %v717
    %719 = vdwg.mxu0
    %v720 = vadd.f32 %v92, %v715
    %v721 = vadd.f32 %v93, %v718
    %v722 = vsel %vm102, %v720, 0.0
    %723 = vadd.xlane.f32.xlu0 %v722
    %v724 = vpop.xlane.xlu0 %723
    %v725 = vsel %vm102, %v721, 0.0
    %726 = vadd.xlane.f32.xlu0 %v725
    %v727 = vpop.xlane.xlu0 %726
    %v728 = vrcp.pop 32.0
    %v729 = vmul.f32 32.0, %v728
    %v730 = vsub.f32 1.0, %v729
    %v731 = vmul.f32 %v728, %v730
    %v732 = vadd.f32 %v728, %v731
    %vm733 = vweird.f32 %v728
    %v734 = vsel %vm733, %v728, %v732
    %v735 = vmul.f32 %v724, %v734
    %v736 = vmul.f32 %v727, %v734
    %v737 = vsub.f32 %v720, %v735
    %v738 = vsub.f32 %v721, %v736
    %v739 = vmul.f32 %v737, %v737
    %v740 = vmul.f32 %v738, %v738
    %v741 = vsel %vm102, %v739, 0.0
    %742 = vadd.xlane.f32.xlu0 %v741
    %v743 = vpop.xlane.xlu0 %742
    %v744 = vsel %vm102, %v740, 0.0
    %745 = vadd.xlane.f32.xlu0 %v744
    %v746 = vpop.xlane.xlu0 %745
    %v747 = vmul.f32 %v743, %v734
    %v748 = vmul.f32 %v746, %v734
    %v749 = vadd.f32 %v747, 1e-05
    %v750 = vadd.f32 %v748, 1e-05
    %v751 = vrsqrt.pop %v749
    %v752 = vmul.f32 %v751, %v749
    %v753 = vmul.f32 %v752, %v751
    %v754 = vmul.f32 0.5, %v753
    %v755 = vsub.f32 1.5, %v754
    %v756 = vmul.f32 %v751, %v755
    %vm757 = vweird.f32 %v749
    %vm758 = vweird.f32 %v751
    %vm759 = vmor %vm757, %vm758
    %v760 = vsel %vm759, %v751, %v756
    %v761 = vrsqrt.pop %v750
    %v762 = vmul.f32 %v761, %v750
    %v763 = vmul.f32 %v762, %v761
    %v764 = vmul.f32 0.5, %v763
    %v765 = vsub.f32 1.5, %v764
    %v766 = vmul.f32 %v761, %v765
    %vm767 = vweird.f32 %v750
    %vm768 = vweird.f32 %v761
    %vm769 = vmor %vm767, %vm768
    %v770 = vsel %vm769, %v761, %v766
    %v771 = vmul.f32 %v737, %v760
    %v772 = vmul.f32 %v738, %v770
    %v774 = vperm.slane %v87, 0
    %v776 = vmul.f32 %v771, %v774
    %v777 = vmul.f32 %v772, %v774
    %v779 = vperm.slane %v88, 0
    %v781 = vadd.f32 %v776, %v779
    %v782 = vadd.f32 %v777, %v779
    %v783 = vld [vmem:[%s6] sm:$0xff]
    %v784 = vld [vmem:[%s6 + $0x8] sm:$0xff]
    %v785 = vld [vmem:[%s6 + $0x10] sm:$0xff]
    %v786 = vld [vmem:[%s6 + $0x18] sm:$0xff]
    %v787 = vld [vmem:[%s7] sm:$0x1]
    %v789 = vperm.slane %v787, 0
    %v792 = vsel %vm102, %v781, 0
    %v795 = vsel %vm102, %v782, 0
    %797 = vmatpush.msra.mxu0 0.0
    %798 = vmatpush.msra.mxu0 0.0
    %799 = vmatpush.msra.mxu0 0.0
    %800 = vmatpush.msra.mxu0 0.0
    %801 = vmatpush.msra.mxu0 0.0
    %802 = vmatpush.msra.mxu0 0.0
    %803 = vmatpush.msra.mxu0 0.0
    %804 = vmatpush.msra.mxu0 0.0
    %805 = vmatpush.msra.mxu0 0.0
    %806 = vmatpush.msra.mxu0 0.0
    %807 = vmatpush.msra.mxu0 0.0
    %808 = vmatpush.msra.mxu0 0.0
    %809 = vmatpush.msra.mxu0 %v786
    %810 = vmatpush.msra.mxu0 %v785
    %811 = vmatpush.msra.mxu0 %v784
    %812 = vmatpush.msra.mxu0 %v783
    %813 = vmatmul.f32.gmra.mxu0 %v792
    %v814 = vpop.f32.mrf.mxu0
    %v815 = vadd.f32 %v789, %v814
    %816 = vmatmul.f32.gmra.mxu0 %v795
    %v817 = vpop.f32.mrf.mxu0
    %v818 = vadd.f32 %v789, %v817
    %819 = vdwg.mxu0
    %v820 = vmax.f32 %v815, 0.0
    %v821 = vmax.f32 %v818, 0.0
    %v822 = vld [vmem:[%s8] sm:$0xff]
    %v823 = vld [vmem:[%s8 + $0x8] sm:$0xff]
    %v824 = vld [vmem:[%s8 + $0x10] sm:$0xff]
    %v825 = vld [vmem:[%s8 + $0x18] sm:$0xff]
    %v826 = vld [vmem:[%s8 + $0x20] sm:$0xff]
    %v827 = vld [vmem:[%s8 + $0x28] sm:$0xff]
    %v828 = vld [vmem:[%s8 + $0x30] sm:$0xff]
    %v829 = vld [vmem:[%s8 + $0x38] sm:$0xff]
    %v830 = vld [vmem:[%s9] sm:$0x1]
    %v832 = vperm.slane %v830, 0
    %vm834 = vcmask 523264
    %v836 = vsel %vm834, %v820, 0
    %v839 = vsel %vm834, %v821, 0
    %841 = vmatpush.msra.mxu0 0.0
    %842 = vmatpush.msra.mxu0 0.0
    %843 = vmatpush.msra.mxu0 0.0
    %844 = vmatpush.msra.mxu0 0.0
    %845 = vmatpush.msra.mxu0 0.0
    %846 = vmatpush.msra.mxu0 0.0
    %847 = vmatpush.msra.mxu0 0.0
    %848 = vmatpush.msra.mxu0 0.0
    %849 = vmatpush.msra.mxu0 %v829
    %850 = vmatpush.msra.mxu0 %v828
    %851 = vmatpush.msra.mxu0 %v827
    %852 = vmatpush.msra.mxu0 %v826
    %853 = vmatpush.msra.mxu0 %v825
    %854 = vmatpush.msra.mxu0 %v824
    %855 = vmatpush.msra.mxu0 %v823
    %856 = vmatpush.msra.mxu0 %v822
    %857 = vmatmul.f32.gmra.mxu0 %v836
    %v858 = vpop.f32.mrf.mxu0
    %v859 = vadd.f32 %v832, %v858
    %860 = vmatmul.f32.gmra.mxu0 %v839
    %v861 = vpop.f32.mrf.mxu0
    %v862 = vadd.f32 %v832, %v861
    %863 = vdwg.mxu0
    %v864 = vadd.f32 %v781, %v859
    %v865 = vadd.f32 %v782, %v862
    %v866 = vsel %vm102, %v864, 0.0
    %867 = vadd.xlane.f32.xlu0 %v866
    %v868 = vpop.xlane.xlu0 %867
    %v869 = vsel %vm102, %v865, 0.0
    %870 = vadd.xlane.f32.xlu0 %v869
    %v871 = vpop.xlane.xlu0 %870
    %v872 = vmul.f32 %v868, %v734
    %v873 = vmul.f32 %v871, %v734
    %v874 = vsub.f32 %v864, %v872
    %v875 = vsub.f32 %v865, %v873
    %v876 = vmul.f32 %v874, %v874
    %v877 = vmul.f32 %v875, %v875
    %v878 = vsel %vm102, %v876, 0.0
    %879 = vadd.xlane.f32.xlu0 %v878
    %v880 = vpop.xlane.xlu0 %879
    %v881 = vsel %vm102, %v877, 0.0
    %882 = vadd.xlane.f32.xlu0 %v881
    %v883 = vpop.xlane.xlu0 %882
    %v884 = vmul.f32 %v880, %v734
    %v885 = vmul.f32 %v883, %v734
    %v886 = vadd.f32 %v884, 1e-05
    %v887 = vadd.f32 %v885, 1e-05
    %v888 = vrsqrt.pop %v886
    %v889 = vmul.f32 %v888, %v886
    %v890 = vmul.f32 %v889, %v888
    %v891 = vmul.f32 0.5, %v890
    %v892 = vsub.f32 1.5, %v891
    %v893 = vmul.f32 %v888, %v892
    %vm894 = vweird.f32 %v886
    %vm895 = vweird.f32 %v888
    %vm896 = vmor %vm894, %vm895
    %v897 = vsel %vm896, %v888, %v893
    %v898 = vrsqrt.pop %v887
    %v899 = vmul.f32 %v898, %v887
    %v900 = vmul.f32 %v899, %v898
    %v901 = vmul.f32 0.5, %v900
    %v902 = vsub.f32 1.5, %v901
    %v903 = vmul.f32 %v898, %v902
    %vm904 = vweird.f32 %v887
    %vm905 = vweird.f32 %v898
    %vm906 = vmor %vm904, %vm905
    %v907 = vsel %vm906, %v898, %v903
    %v908 = vmul.f32 %v874, %v897
    %v909 = vmul.f32 %v875, %v907
    %v910 = vmul.f32 %v908, %v774
    %v911 = vmul.f32 %v909, %v774
    %v912 = vadd.f32 %v910, %v779
    %v913 = vadd.f32 %v911, %v779
    %s914 = scalar_lea.vmem %s2, 32
    %v915 = vld [vmem:[%s914] sm:$0xff]
    %v916 = vld [vmem:[%s914 + $0x8] sm:$0xff]
    %v917 = vld [vmem:[%s914 + $0x10] sm:$0xff]
    %v918 = vld [vmem:[%s914 + $0x18] sm:$0xff]
    %s919 = scalar_lea.vmem %s3, 1
    %v920 = vld [vmem:[%s919] sm:$0x1]
    %v922 = vperm.slane %v920, 0
    %v925 = vsel %vm102, %v912, 0
    %v928 = vsel %vm102, %v913, 0
    %930 = vmatpush.msra.mxu0 0.0
    %931 = vmatpush.msra.mxu0 0.0
    %932 = vmatpush.msra.mxu0 0.0
    %933 = vmatpush.msra.mxu0 0.0
    %934 = vmatpush.msra.mxu0 0.0
    %935 = vmatpush.msra.mxu0 0.0
    %936 = vmatpush.msra.mxu0 0.0
    %937 = vmatpush.msra.mxu0 0.0
    %938 = vmatpush.msra.mxu0 0.0
    %939 = vmatpush.msra.mxu0 0.0
    %940 = vmatpush.msra.mxu0 0.0
    %941 = vmatpush.msra.mxu0 0.0
    %942 = vmatpush.msra.mxu0 %v918
    %943 = vmatpush.msra.mxu0 %v917
    %944 = vmatpush.msra.mxu0 %v916
    %945 = vmatpush.msra.mxu0 %v915
    %946 = vmatmul.f32.gmra.mxu0 %v925
    %v947 = vpop.f32.mrf.mxu0
    %v948 = vadd.f32 %v922, %v947
    %949 = vmatmul.f32.gmra.mxu0 %v928
    %v950 = vpop.f32.mrf.mxu0
    %v951 = vadd.f32 %v922, %v950
    %952 = vdwg.mxu0
    %955 = vrot.lane.b32.xlu0 %v948, 120
    %v956 = vpop.permute.xlu0 %955
    %957 = vrot.lane.b32.xlu0 %v951, 120
    %v958 = vpop.permute.xlu0 %957
    %959 = vrot.lane.b32.xlu0 %v948, 112
    %v960 = vpop.permute.xlu0 %959
    %961 = vrot.lane.b32.xlu0 %v951, 112
    %v962 = vpop.permute.xlu0 %961
    %963 = vrot.lane.b32.xlu0 %v948, 104
    %v964 = vpop.permute.xlu0 %963
    %965 = vrot.lane.b32.xlu0 %v951, 104
    %v966 = vpop.permute.xlu0 %965
    %967 = vrot.lane.b32.xlu0 %v948, 96
    %v968 = vpop.permute.xlu0 %967
    %v969 = vsel %vm148, %v948, 0
    %v971 = vsel %vm148, %v968, 0
    %973 = vmatpush.xpose.msra.mxu0 0.0
    %974 = vmatpush.xpose.msra.mxu0 0.0
    %975 = vmatpush.xpose.msra.mxu0 0.0
    %976 = vmatpush.xpose.msra.mxu0 0.0
    %977 = vmatpush.xpose.msra.mxu0 0.0
    %978 = vmatpush.xpose.msra.mxu0 0.0
    %979 = vmatpush.xpose.msra.mxu0 0.0
    %980 = vmatpush.xpose.msra.mxu0 0.0
    %981 = vmatpush.xpose.msra.mxu0 0.0
    %982 = vmatpush.xpose.msra.mxu0 0.0
    %983 = vmatpush.xpose.msra.mxu0 0.0
    %984 = vmatpush.xpose.msra.mxu0 0.0
    %985 = vmatpush.xpose.msra.mxu0 0.0
    %986 = vmatpush.xpose.msra.mxu0 0.0
    %987 = vmatpush.xpose.msra.mxu0 0.0
    %988 = vmatpush.xpose.msra.mxu0 %v971
    %989 = vmatmul.f32.gmra.mxu0 %v969
    %v990 = vpop.f32.mrf.mxu0
    %v991 = vadd.f32 0.0, %v990
    %992 = vdwg.mxu0
    %993 = vrot.lane.b32.xlu0 %v951, 96
    %v994 = vpop.permute.xlu0 %993
    %v995 = vsel %vm148, %v951, 0
    %v997 = vsel %vm148, %v994, 0
    %999 = vmatpush.xpose.msra.mxu0 0.0
    %1000 = vmatpush.xpose.msra.mxu0 0.0
    %1001 = vmatpush.xpose.msra.mxu0 0.0
    %1002 = vmatpush.xpose.msra.mxu0 0.0
    %1003 = vmatpush.xpose.msra.mxu0 0.0
    %1004 = vmatpush.xpose.msra.mxu0 0.0
    %1005 = vmatpush.xpose.msra.mxu0 0.0
    %1006 = vmatpush.xpose.msra.mxu0 0.0
    %1007 = vmatpush.xpose.msra.mxu0 0.0
    %1008 = vmatpush.xpose.msra.mxu0 0.0
    %1009 = vmatpush.xpose.msra.mxu0 0.0
    %1010 = vmatpush.xpose.msra.mxu0 0.0
    %1011 = vmatpush.xpose.msra.mxu0 0.0
    %1012 = vmatpush.xpose.msra.mxu0 0.0
    %1013 = vmatpush.xpose.msra.mxu0 0.0
    %1014 = vmatpush.xpose.msra.mxu0 %v997
    %1015 = vmatmul.f32.gmra.mxu0 %v995
    %v1016 = vpop.f32.mrf.mxu0
    %v1017 = vadd.f32 0.0, %v1016
    %1018 = vdwg.mxu0
    %1019 = vrot.lane.b32.xlu0 %v956, 96
    %v1020 = vpop.permute.xlu0 %1019
    %v1021 = vsel %vm148, %v956, 0
    %v1023 = vsel %vm148, %v1020, 0
    %1025 = vmatpush.xpose.msra.mxu0 0.0
    %1026 = vmatpush.xpose.msra.mxu0 0.0
    %1027 = vmatpush.xpose.msra.mxu0 0.0
    %1028 = vmatpush.xpose.msra.mxu0 0.0
    %1029 = vmatpush.xpose.msra.mxu0 0.0
    %1030 = vmatpush.xpose.msra.mxu0 0.0
    %1031 = vmatpush.xpose.msra.mxu0 0.0
    %1032 = vmatpush.xpose.msra.mxu0 0.0
    %1033 = vmatpush.xpose.msra.mxu0 0.0
    %1034 = vmatpush.xpose.msra.mxu0 0.0
    %1035 = vmatpush.xpose.msra.mxu0 0.0
    %1036 = vmatpush.xpose.msra.mxu0 0.0
    %1037 = vmatpush.xpose.msra.mxu0 0.0
    %1038 = vmatpush.xpose.msra.mxu0 0.0
    %1039 = vmatpush.xpose.msra.mxu0 0.0
    %1040 = vmatpush.xpose.msra.mxu0 %v1023
    %1041 = vmatmul.f32.gmra.mxu0 %v1021
    %v1042 = vpop.f32.mrf.mxu0
    %v1043 = vadd.f32 0.0, %v1042
    %1044 = vdwg.mxu0
    %1045 = vrot.lane.b32.xlu0 %v958, 96
    %v1046 = vpop.permute.xlu0 %1045
    %v1047 = vsel %vm148, %v958, 0
    %v1049 = vsel %vm148, %v1046, 0
    %1051 = vmatpush.xpose.msra.mxu0 0.0
    %1052 = vmatpush.xpose.msra.mxu0 0.0
    %1053 = vmatpush.xpose.msra.mxu0 0.0
    %1054 = vmatpush.xpose.msra.mxu0 0.0
    %1055 = vmatpush.xpose.msra.mxu0 0.0
    %1056 = vmatpush.xpose.msra.mxu0 0.0
    %1057 = vmatpush.xpose.msra.mxu0 0.0
    %1058 = vmatpush.xpose.msra.mxu0 0.0
    %1059 = vmatpush.xpose.msra.mxu0 0.0
    %1060 = vmatpush.xpose.msra.mxu0 0.0
    %1061 = vmatpush.xpose.msra.mxu0 0.0
    %1062 = vmatpush.xpose.msra.mxu0 0.0
    %1063 = vmatpush.xpose.msra.mxu0 0.0
    %1064 = vmatpush.xpose.msra.mxu0 0.0
    %1065 = vmatpush.xpose.msra.mxu0 0.0
    %1066 = vmatpush.xpose.msra.mxu0 %v1049
    %1067 = vmatmul.f32.gmra.mxu0 %v1047
    %v1068 = vpop.f32.mrf.mxu0
    %v1069 = vadd.f32 0.0, %v1068
    %1070 = vdwg.mxu0
    %1071 = vrot.lane.b32.xlu0 %v960, 96
    %v1072 = vpop.permute.xlu0 %1071
    %v1073 = vsel %vm148, %v960, 0
    %v1075 = vsel %vm148, %v1072, 0
    %1077 = vmatpush.xpose.msra.mxu0 0.0
    %1078 = vmatpush.xpose.msra.mxu0 0.0
    %1079 = vmatpush.xpose.msra.mxu0 0.0
    %1080 = vmatpush.xpose.msra.mxu0 0.0
    %1081 = vmatpush.xpose.msra.mxu0 0.0
    %1082 = vmatpush.xpose.msra.mxu0 0.0
    %1083 = vmatpush.xpose.msra.mxu0 0.0
    %1084 = vmatpush.xpose.msra.mxu0 0.0
    %1085 = vmatpush.xpose.msra.mxu0 0.0
    %1086 = vmatpush.xpose.msra.mxu0 0.0
    %1087 = vmatpush.xpose.msra.mxu0 0.0
    %1088 = vmatpush.xpose.msra.mxu0 0.0
    %1089 = vmatpush.xpose.msra.mxu0 0.0
    %1090 = vmatpush.xpose.msra.mxu0 0.0
    %1091 = vmatpush.xpose.msra.mxu0 0.0
    %1092 = vmatpush.xpose.msra.mxu0 %v1075
    %1093 = vmatmul.f32.gmra.mxu0 %v1073
    %v1094 = vpop.f32.mrf.mxu0
    %v1095 = vadd.f32 0.0, %v1094
    %1096 = vdwg.mxu0
    %1097 = vrot.lane.b32.xlu0 %v962, 96
    %v1098 = vpop.permute.xlu0 %1097
    %v1099 = vsel %vm148, %v962, 0
    %v1101 = vsel %vm148, %v1098, 0
    %1103 = vmatpush.xpose.msra.mxu0 0.0
    %1104 = vmatpush.xpose.msra.mxu0 0.0
    %1105 = vmatpush.xpose.msra.mxu0 0.0
    %1106 = vmatpush.xpose.msra.mxu0 0.0
    %1107 = vmatpush.xpose.msra.mxu0 0.0
    %1108 = vmatpush.xpose.msra.mxu0 0.0
    %1109 = vmatpush.xpose.msra.mxu0 0.0
    %1110 = vmatpush.xpose.msra.mxu0 0.0
    %1111 = vmatpush.xpose.msra.mxu0 0.0
    %1112 = vmatpush.xpose.msra.mxu0 0.0
    %1113 = vmatpush.xpose.msra.mxu0 0.0
    %1114 = vmatpush.xpose.msra.mxu0 0.0
    %1115 = vmatpush.xpose.msra.mxu0 0.0
    %1116 = vmatpush.xpose.msra.mxu0 0.0
    %1117 = vmatpush.xpose.msra.mxu0 0.0
    %1118 = vmatpush.xpose.msra.mxu0 %v1101
    %1119 = vmatmul.f32.gmra.mxu0 %v1099
    %v1120 = vpop.f32.mrf.mxu0
    %v1121 = vadd.f32 0.0, %v1120
    %1122 = vdwg.mxu0
    %1123 = vrot.lane.b32.xlu0 %v964, 96
    %v1124 = vpop.permute.xlu0 %1123
    %v1125 = vsel %vm148, %v964, 0
    %v1127 = vsel %vm148, %v1124, 0
    %1129 = vmatpush.xpose.msra.mxu0 0.0
    %1130 = vmatpush.xpose.msra.mxu0 0.0
    %1131 = vmatpush.xpose.msra.mxu0 0.0
    %1132 = vmatpush.xpose.msra.mxu0 0.0
    %1133 = vmatpush.xpose.msra.mxu0 0.0
    %1134 = vmatpush.xpose.msra.mxu0 0.0
    %1135 = vmatpush.xpose.msra.mxu0 0.0
    %1136 = vmatpush.xpose.msra.mxu0 0.0
    %1137 = vmatpush.xpose.msra.mxu0 0.0
    %1138 = vmatpush.xpose.msra.mxu0 0.0
    %1139 = vmatpush.xpose.msra.mxu0 0.0
    %1140 = vmatpush.xpose.msra.mxu0 0.0
    %1141 = vmatpush.xpose.msra.mxu0 0.0
    %1142 = vmatpush.xpose.msra.mxu0 0.0
    %1143 = vmatpush.xpose.msra.mxu0 0.0
    %1144 = vmatpush.xpose.msra.mxu0 %v1127
    %1145 = vmatmul.f32.gmra.mxu0 %v1125
    %v1146 = vpop.f32.mrf.mxu0
    %v1147 = vadd.f32 0.0, %v1146
    %1148 = vdwg.mxu0
    %1149 = vrot.lane.b32.xlu0 %v966, 96
    %v1150 = vpop.permute.xlu0 %1149
    %v1151 = vsel %vm148, %v966, 0
    %v1153 = vsel %vm148, %v1150, 0
    %1155 = vmatpush.xpose.msra.mxu0 0.0
    %1156 = vmatpush.xpose.msra.mxu0 0.0
    %1157 = vmatpush.xpose.msra.mxu0 0.0
    %1158 = vmatpush.xpose.msra.mxu0 0.0
    %1159 = vmatpush.xpose.msra.mxu0 0.0
    %1160 = vmatpush.xpose.msra.mxu0 0.0
    %1161 = vmatpush.xpose.msra.mxu0 0.0
    %1162 = vmatpush.xpose.msra.mxu0 0.0
    %1163 = vmatpush.xpose.msra.mxu0 0.0
    %1164 = vmatpush.xpose.msra.mxu0 0.0
    %1165 = vmatpush.xpose.msra.mxu0 0.0
    %1166 = vmatpush.xpose.msra.mxu0 0.0
    %1167 = vmatpush.xpose.msra.mxu0 0.0
    %1168 = vmatpush.xpose.msra.mxu0 0.0
    %1169 = vmatpush.xpose.msra.mxu0 0.0
    %1170 = vmatpush.xpose.msra.mxu0 %v1153
    %1171 = vmatmul.f32.gmra.mxu0 %v1151
    %v1172 = vpop.f32.mrf.mxu0
    %v1173 = vadd.f32 0.0, %v1172
    %1174 = vdwg.mxu0
    %v1175 = vsel %vm148, %v991, -inf
    %1176 = vmax.xlane.f32.xlu0 %v1175
    %v1177 = vpop.xlane.xlu0 %1176
    %v1178 = vsel %vm148, %v1017, -inf
    %1179 = vmax.xlane.f32.xlu0 %v1178
    %v1180 = vpop.xlane.xlu0 %1179
    %v1181 = vsel %vm148, %v1043, -inf
    %1182 = vmax.xlane.f32.xlu0 %v1181
    %v1183 = vpop.xlane.xlu0 %1182
    %v1184 = vsel %vm148, %v1069, -inf
    %1185 = vmax.xlane.f32.xlu0 %v1184
    %v1186 = vpop.xlane.xlu0 %1185
    %v1187 = vsel %vm148, %v1095, -inf
    %1188 = vmax.xlane.f32.xlu0 %v1187
    %v1189 = vpop.xlane.xlu0 %1188
    %v1190 = vsel %vm148, %v1121, -inf
    %1191 = vmax.xlane.f32.xlu0 %v1190
    %v1192 = vpop.xlane.xlu0 %1191
    %v1193 = vsel %vm148, %v1147, -inf
    %1194 = vmax.xlane.f32.xlu0 %v1193
    %v1195 = vpop.xlane.xlu0 %1194
    %v1196 = vsel %vm148, %v1173, -inf
    %1197 = vmax.xlane.f32.xlu0 %v1196
    %v1198 = vpop.xlane.xlu0 %1197
    %v1199 = vsub.f32 %v991, %v1177
    %v1200 = vsub.f32 %v1017, %v1180
    %v1201 = vsub.f32 %v1043, %v1183
    %v1202 = vsub.f32 %v1069, %v1186
    %v1203 = vsub.f32 %v1095, %v1189
    %v1204 = vsub.f32 %v1121, %v1192
    %v1205 = vsub.f32 %v1147, %v1195
    %v1206 = vsub.f32 %v1173, %v1198
    %v1207 = vmul.f32 %v1199, 1.442695
    %v1208 = vpow.pop %v1207
    %v1209 = vmul.f32 %v1200, 1.442695
    %v1210 = vpow.pop %v1209
    %v1211 = vmul.f32 %v1201, 1.442695
    %v1212 = vpow.pop %v1211
    %v1213 = vmul.f32 %v1202, 1.442695
    %v1214 = vpow.pop %v1213
    %v1215 = vmul.f32 %v1203, 1.442695
    %v1216 = vpow.pop %v1215
    %v1217 = vmul.f32 %v1204, 1.442695
    %v1218 = vpow.pop %v1217
    %v1219 = vmul.f32 %v1205, 1.442695
    %v1220 = vpow.pop %v1219
    %v1221 = vmul.f32 %v1206, 1.442695
    %v1222 = vpow.pop %v1221
    %v1223 = vsel %vm148, %v1208, 0.0
    %1224 = vadd.xlane.f32.xlu0 %v1223
    %v1225 = vpop.xlane.xlu0 %1224
    %v1226 = vsel %vm148, %v1210, 0.0
    %1227 = vadd.xlane.f32.xlu0 %v1226
    %v1228 = vpop.xlane.xlu0 %1227
    %v1229 = vsel %vm148, %v1212, 0.0
    %1230 = vadd.xlane.f32.xlu0 %v1229
    %v1231 = vpop.xlane.xlu0 %1230
    %v1232 = vsel %vm148, %v1214, 0.0
    %1233 = vadd.xlane.f32.xlu0 %v1232
    %v1234 = vpop.xlane.xlu0 %1233
    %v1235 = vsel %vm148, %v1216, 0.0
    %1236 = vadd.xlane.f32.xlu0 %v1235
    %v1237 = vpop.xlane.xlu0 %1236
    %v1238 = vsel %vm148, %v1218, 0.0
    %1239 = vadd.xlane.f32.xlu0 %v1238
    %v1240 = vpop.xlane.xlu0 %1239
    %v1241 = vsel %vm148, %v1220, 0.0
    %1242 = vadd.xlane.f32.xlu0 %v1241
    %v1243 = vpop.xlane.xlu0 %1242
    %v1244 = vsel %vm148, %v1222, 0.0
    %1245 = vadd.xlane.f32.xlu0 %v1244
    %v1246 = vpop.xlane.xlu0 %1245
    %v1247 = vrcp.pop %v1225
    %v1248 = vrcp.pop %v1228
    %v1249 = vrcp.pop %v1231
    %v1250 = vrcp.pop %v1234
    %v1251 = vrcp.pop %v1237
    %v1252 = vrcp.pop %v1240
    %v1253 = vrcp.pop %v1243
    %v1254 = vrcp.pop %v1246
    %v1255 = vmul.f32 %v1208, %v1247
    %v1256 = vmul.f32 %v1210, %v1248
    %v1257 = vmul.f32 %v1212, %v1249
    %v1258 = vmul.f32 %v1214, %v1250
    %v1259 = vmul.f32 %v1216, %v1251
    %v1260 = vmul.f32 %v1218, %v1252
    %v1261 = vmul.f32 %v1220, %v1253
    %v1262 = vmul.f32 %v1222, %v1254
    %1263 = vrot.lane.b32.xlu0 %v948, 64
    %v1264 = vpop.permute.xlu0 %1263
    %v1267 = vsel %vm148, %v1255, 0
    %1269 = vmatpush.msra.mxu0 0.0
    %1270 = vmatpush.msra.mxu0 0.0
    %1271 = vmatpush.msra.mxu0 0.0
    %1272 = vmatpush.msra.mxu0 0.0
    %1273 = vmatpush.msra.mxu0 0.0
    %1274 = vmatpush.msra.mxu0 0.0
    %1275 = vmatpush.msra.mxu0 0.0
    %1276 = vmatpush.msra.mxu0 0.0
    %1277 = vmatpush.msra.mxu0 0.0
    %1278 = vmatpush.msra.mxu0 0.0
    %1279 = vmatpush.msra.mxu0 0.0
    %1280 = vmatpush.msra.mxu0 0.0
    %1281 = vmatpush.msra.mxu0 0.0
    %1282 = vmatpush.msra.mxu0 0.0
    %1283 = vmatpush.msra.mxu0 0.0
    %1284 = vmatpush.msra.mxu0 %v1264
    %1285 = vmatmul.f32.gmra.mxu0 %v1267
    %v1286 = vpop.f32.mrf.mxu0
    %v1287 = vadd.f32 0.0, %v1286
    %1288 = vdwg.mxu0
    %1289 = vrot.lane.b32.xlu0 %v951, 64
    %v1290 = vpop.permute.xlu0 %1289
    %v1293 = vsel %vm148, %v1256, 0
    %1295 = vmatpush.msra.mxu0 0.0
    %1296 = vmatpush.msra.mxu0 0.0
    %1297 = vmatpush.msra.mxu0 0.0
    %1298 = vmatpush.msra.mxu0 0.0
    %1299 = vmatpush.msra.mxu0 0.0
    %1300 = vmatpush.msra.mxu0 0.0
    %1301 = vmatpush.msra.mxu0 0.0
    %1302 = vmatpush.msra.mxu0 0.0
    %1303 = vmatpush.msra.mxu0 0.0
    %1304 = vmatpush.msra.mxu0 0.0
    %1305 = vmatpush.msra.mxu0 0.0
    %1306 = vmatpush.msra.mxu0 0.0
    %1307 = vmatpush.msra.mxu0 0.0
    %1308 = vmatpush.msra.mxu0 0.0
    %1309 = vmatpush.msra.mxu0 0.0
    %1310 = vmatpush.msra.mxu0 %v1290
    %1311 = vmatmul.f32.gmra.mxu0 %v1293
    %v1312 = vpop.f32.mrf.mxu0
    %v1313 = vadd.f32 0.0, %v1312
    %1314 = vdwg.mxu0
    %1315 = vrot.lane.b32.xlu0 %v956, 64
    %v1316 = vpop.permute.xlu0 %1315
    %v1319 = vsel %vm148, %v1257, 0
    %1321 = vmatpush.msra.mxu0 0.0
    %1322 = vmatpush.msra.mxu0 0.0
    %1323 = vmatpush.msra.mxu0 0.0
    %1324 = vmatpush.msra.mxu0 0.0
    %1325 = vmatpush.msra.mxu0 0.0
    %1326 = vmatpush.msra.mxu0 0.0
    %1327 = vmatpush.msra.mxu0 0.0
    %1328 = vmatpush.msra.mxu0 0.0
    %1329 = vmatpush.msra.mxu0 0.0
    %1330 = vmatpush.msra.mxu0 0.0
    %1331 = vmatpush.msra.mxu0 0.0
    %1332 = vmatpush.msra.mxu0 0.0
    %1333 = vmatpush.msra.mxu0 0.0
    %1334 = vmatpush.msra.mxu0 0.0
    %1335 = vmatpush.msra.mxu0 0.0
    %1336 = vmatpush.msra.mxu0 %v1316
    %1337 = vmatmul.f32.gmra.mxu0 %v1319
    %v1338 = vpop.f32.mrf.mxu0
    %v1339 = vadd.f32 0.0, %v1338
    %1340 = vdwg.mxu0
    %1341 = vrot.lane.b32.xlu0 %v958, 64
    %v1342 = vpop.permute.xlu0 %1341
    %v1345 = vsel %vm148, %v1258, 0
    %1347 = vmatpush.msra.mxu0 0.0
    %1348 = vmatpush.msra.mxu0 0.0
    %1349 = vmatpush.msra.mxu0 0.0
    %1350 = vmatpush.msra.mxu0 0.0
    %1351 = vmatpush.msra.mxu0 0.0
    %1352 = vmatpush.msra.mxu0 0.0
    %1353 = vmatpush.msra.mxu0 0.0
    %1354 = vmatpush.msra.mxu0 0.0
    %1355 = vmatpush.msra.mxu0 0.0
    %1356 = vmatpush.msra.mxu0 0.0
    %1357 = vmatpush.msra.mxu0 0.0
    %1358 = vmatpush.msra.mxu0 0.0
    %1359 = vmatpush.msra.mxu0 0.0
    %1360 = vmatpush.msra.mxu0 0.0
    %1361 = vmatpush.msra.mxu0 0.0
    %1362 = vmatpush.msra.mxu0 %v1342
    %1363 = vmatmul.f32.gmra.mxu0 %v1345
    %v1364 = vpop.f32.mrf.mxu0
    %v1365 = vadd.f32 0.0, %v1364
    %1366 = vdwg.mxu0
    %1367 = vrot.lane.b32.xlu0 %v960, 64
    %v1368 = vpop.permute.xlu0 %1367
    %v1371 = vsel %vm148, %v1259, 0
    %1373 = vmatpush.msra.mxu0 0.0
    %1374 = vmatpush.msra.mxu0 0.0
    %1375 = vmatpush.msra.mxu0 0.0
    %1376 = vmatpush.msra.mxu0 0.0
    %1377 = vmatpush.msra.mxu0 0.0
    %1378 = vmatpush.msra.mxu0 0.0
    %1379 = vmatpush.msra.mxu0 0.0
    %1380 = vmatpush.msra.mxu0 0.0
    %1381 = vmatpush.msra.mxu0 0.0
    %1382 = vmatpush.msra.mxu0 0.0
    %1383 = vmatpush.msra.mxu0 0.0
    %1384 = vmatpush.msra.mxu0 0.0
    %1385 = vmatpush.msra.mxu0 0.0
    %1386 = vmatpush.msra.mxu0 0.0
    %1387 = vmatpush.msra.mxu0 0.0
    %1388 = vmatpush.msra.mxu0 %v1368
    %1389 = vmatmul.f32.gmra.mxu0 %v1371
    %v1390 = vpop.f32.mrf.mxu0
    %v1391 = vadd.f32 0.0, %v1390
    %1392 = vdwg.mxu0
    %1393 = vrot.lane.b32.xlu0 %v962, 64
    %v1394 = vpop.permute.xlu0 %1393
    %v1397 = vsel %vm148, %v1260, 0
    %1399 = vmatpush.msra.mxu0 0.0
    %1400 = vmatpush.msra.mxu0 0.0
    %1401 = vmatpush.msra.mxu0 0.0
    %1402 = vmatpush.msra.mxu0 0.0
    %1403 = vmatpush.msra.mxu0 0.0
    %1404 = vmatpush.msra.mxu0 0.0
    %1405 = vmatpush.msra.mxu0 0.0
    %1406 = vmatpush.msra.mxu0 0.0
    %1407 = vmatpush.msra.mxu0 0.0
    %1408 = vmatpush.msra.mxu0 0.0
    %1409 = vmatpush.msra.mxu0 0.0
    %1410 = vmatpush.msra.mxu0 0.0
    %1411 = vmatpush.msra.mxu0 0.0
    %1412 = vmatpush.msra.mxu0 0.0
    %1413 = vmatpush.msra.mxu0 0.0
    %1414 = vmatpush.msra.mxu0 %v1394
    %1415 = vmatmul.f32.gmra.mxu0 %v1397
    %v1416 = vpop.f32.mrf.mxu0
    %v1417 = vadd.f32 0.0, %v1416
    %1418 = vdwg.mxu0
    %1419 = vrot.lane.b32.xlu0 %v964, 64
    %v1420 = vpop.permute.xlu0 %1419
    %v1423 = vsel %vm148, %v1261, 0
    %1425 = vmatpush.msra.mxu0 0.0
    %1426 = vmatpush.msra.mxu0 0.0
    %1427 = vmatpush.msra.mxu0 0.0
    %1428 = vmatpush.msra.mxu0 0.0
    %1429 = vmatpush.msra.mxu0 0.0
    %1430 = vmatpush.msra.mxu0 0.0
    %1431 = vmatpush.msra.mxu0 0.0
    %1432 = vmatpush.msra.mxu0 0.0
    %1433 = vmatpush.msra.mxu0 0.0
    %1434 = vmatpush.msra.mxu0 0.0
    %1435 = vmatpush.msra.mxu0 0.0
    %1436 = vmatpush.msra.mxu0 0.0
    %1437 = vmatpush.msra.mxu0 0.0
    %1438 = vmatpush.msra.mxu0 0.0
    %1439 = vmatpush.msra.mxu0 0.0
    %1440 = vmatpush.msra.mxu0 %v1420
    %1441 = vmatmul.f32.gmra.mxu0 %v1423
    %v1442 = vpop.f32.mrf.mxu0
    %v1443 = vadd.f32 0.0, %v1442
    %1444 = vdwg.mxu0
    %1445 = vrot.lane.b32.xlu0 %v966, 64
    %v1446 = vpop.permute.xlu0 %1445
    %v1449 = vsel %vm148, %v1262, 0
    %1451 = vmatpush.msra.mxu0 0.0
    %1452 = vmatpush.msra.mxu0 0.0
    %1453 = vmatpush.msra.mxu0 0.0
    %1454 = vmatpush.msra.mxu0 0.0
    %1455 = vmatpush.msra.mxu0 0.0
    %1456 = vmatpush.msra.mxu0 0.0
    %1457 = vmatpush.msra.mxu0 0.0
    %1458 = vmatpush.msra.mxu0 0.0
    %1459 = vmatpush.msra.mxu0 0.0
    %1460 = vmatpush.msra.mxu0 0.0
    %1461 = vmatpush.msra.mxu0 0.0
    %1462 = vmatpush.msra.mxu0 0.0
    %1463 = vmatpush.msra.mxu0 0.0
    %1464 = vmatpush.msra.mxu0 0.0
    %1465 = vmatpush.msra.mxu0 0.0
    %1466 = vmatpush.msra.mxu0 %v1446
    %1467 = vmatmul.f32.gmra.mxu0 %v1449
    %v1468 = vpop.f32.mrf.mxu0
    %v1469 = vadd.f32 0.0, %v1468
    %1470 = vdwg.mxu0
    %1473 = vrot.lane.b32.xlu0 %v1339, 8
    %v1474 = vpop.permute.xlu0 %1473
    %1475 = vrot.lane.b32.xlu0 %v1365, 8
    %v1476 = vpop.permute.xlu0 %1475
    %1481 = vrot.lane.b32.xlu0 %v1391, 16
    %v1482 = vpop.permute.xlu0 %1481
    %1483 = vrot.lane.b32.xlu0 %v1417, 16
    %v1484 = vpop.permute.xlu0 %1483
    %1489 = vrot.lane.b32.xlu0 %v1443, 24
    %v1490 = vpop.permute.xlu0 %1489
    %1491 = vrot.lane.b32.xlu0 %v1469, 24
    %v1492 = vpop.permute.xlu0 %1491
    %v1495 = vsel %vm148, %v1287, %v1474
    %v1496 = vsel %vm148, %v1313, %v1476
    %v1497 = vsel %vm677, %v1495, %v1482
    %v1498 = vsel %vm677, %v1496, %v1484
    %v1499 = vsel %vm680, %v1497, %v1490
    %v1500 = vsel %vm680, %v1498, %v1492
    %s1501 = scalar_lea.vmem %s4, 32
    %v1502 = vld [vmem:[%s1501] sm:$0xff]
    %v1503 = vld [vmem:[%s1501 + $0x8] sm:$0xff]
    %v1504 = vld [vmem:[%s1501 + $0x10] sm:$0xff]
    %v1505 = vld [vmem:[%s1501 + $0x18] sm:$0xff]
    %s1506 = scalar_lea.vmem [#allocation7], 1
    %v1507 = vld [vmem:[%s1506] sm:$0x1]
    %v1509 = vperm.slane %v1507, 0
    %v1512 = vsel %vm102, %v1499, 0
    %v1515 = vsel %vm102, %v1500, 0
    %1517 = vmatpush.msra.mxu0 0.0
    %1518 = vmatpush.msra.mxu0 0.0
    %1519 = vmatpush.msra.mxu0 0.0
    %1520 = vmatpush.msra.mxu0 0.0
    %1521 = vmatpush.msra.mxu0 0.0
    %1522 = vmatpush.msra.mxu0 0.0
    %1523 = vmatpush.msra.mxu0 0.0
    %1524 = vmatpush.msra.mxu0 0.0
    %1525 = vmatpush.msra.mxu0 0.0
    %1526 = vmatpush.msra.mxu0 0.0
    %1527 = vmatpush.msra.mxu0 0.0
    %1528 = vmatpush.msra.mxu0 0.0
    %1529 = vmatpush.msra.mxu0 %v1505
    %1530 = vmatpush.msra.mxu0 %v1504
    %1531 = vmatpush.msra.mxu0 %v1503
    %1532 = vmatpush.msra.mxu0 %v1502
    %1533 = vmatmul.f32.gmra.mxu0 %v1512
    %v1534 = vpop.f32.mrf.mxu0
    %v1535 = vadd.f32 %v1509, %v1534
    %1536 = vmatmul.f32.gmra.mxu0 %v1515
    %v1537 = vpop.f32.mrf.mxu0
    %v1538 = vadd.f32 %v1509, %v1537
    %1539 = vdwg.mxu0
    %v1540 = vadd.f32 %v912, %v1535
    %v1541 = vadd.f32 %v913, %v1538
    %v1542 = vsel %vm102, %v1540, 0.0
    %1543 = vadd.xlane.f32.xlu0 %v1542
    %v1544 = vpop.xlane.xlu0 %1543
    %v1545 = vsel %vm102, %v1541, 0.0
    %1546 = vadd.xlane.f32.xlu0 %v1545
    %v1547 = vpop.xlane.xlu0 %1546
    %v1548 = vmul.f32 %v1544, %v734
    %v1549 = vmul.f32 %v1547, %v734
    %v1550 = vsub.f32 %v1540, %v1548
    %v1551 = vsub.f32 %v1541, %v1549
    %v1552 = vmul.f32 %v1550, %v1550
    %v1553 = vmul.f32 %v1551, %v1551
    %v1554 = vsel %vm102, %v1552, 0.0
    %1555 = vadd.xlane.f32.xlu0 %v1554
    %v1556 = vpop.xlane.xlu0 %1555
    %v1557 = vsel %vm102, %v1553, 0.0
    %1558 = vadd.xlane.f32.xlu0 %v1557
    %v1559 = vpop.xlane.xlu0 %1558
    %v1560 = vmul.f32 %v1556, %v734
    %v1561 = vmul.f32 %v1559, %v734
    %v1562 = vadd.f32 %v1560, 1e-05
    %v1563 = vadd.f32 %v1561, 1e-05
    %v1564 = vrsqrt.pop %v1562
    %v1565 = vmul.f32 %v1564, %v1562
    %v1566 = vmul.f32 %v1565, %v1564
    %v1567 = vmul.f32 0.5, %v1566
    %v1568 = vsub.f32 1.5, %v1567
    %v1569 = vmul.f32 %v1564, %v1568
    %vm1570 = vweird.f32 %v1562
    %vm1571 = vweird.f32 %v1564
    %vm1572 = vmor %vm1570, %vm1571
    %v1573 = vsel %vm1572, %v1564, %v1569
    %v1574 = vrsqrt.pop %v1563
    %v1575 = vmul.f32 %v1574, %v1563
    %v1576 = vmul.f32 %v1575, %v1574
    %v1577 = vmul.f32 0.5, %v1576
    %v1578 = vsub.f32 1.5, %v1577
    %v1579 = vmul.f32 %v1574, %v1578
    %vm1580 = vweird.f32 %v1563
    %vm1581 = vweird.f32 %v1574
    %vm1582 = vmor %vm1580, %vm1581
    %v1583 = vsel %vm1582, %v1574, %v1579
    %v1584 = vmul.f32 %v1550, %v1573
    %v1585 = vmul.f32 %v1551, %v1583
    %v1586 = vmul.f32 %v1584, %v774
    %v1587 = vmul.f32 %v1585, %v774
    %v1588 = vadd.f32 %v1586, %v779
    %v1589 = vadd.f32 %v1587, %v779
    %s1590 = scalar_lea.vmem %s6, 32
    %v1591 = vld [vmem:[%s1590] sm:$0xff]
    %v1592 = vld [vmem:[%s1590 + $0x8] sm:$0xff]
    %v1593 = vld [vmem:[%s1590 + $0x10] sm:$0xff]
    %v1594 = vld [vmem:[%s1590 + $0x18] sm:$0xff]
    %s1595 = scalar_lea.vmem %s7, 1
    %v1596 = vld [vmem:[%s1595] sm:$0x1]
    %v1598 = vperm.slane %v1596, 0
    %v1601 = vsel %vm102, %v1588, 0
    %v1604 = vsel %vm102, %v1589, 0
    %1606 = vmatpush.msra.mxu0 0.0
    %1607 = vmatpush.msra.mxu0 0.0
    %1608 = vmatpush.msra.mxu0 0.0
    %1609 = vmatpush.msra.mxu0 0.0
    %1610 = vmatpush.msra.mxu0 0.0
    %1611 = vmatpush.msra.mxu0 0.0
    %1612 = vmatpush.msra.mxu0 0.0
    %1613 = vmatpush.msra.mxu0 0.0
    %1614 = vmatpush.msra.mxu0 0.0
    %1615 = vmatpush.msra.mxu0 0.0
    %1616 = vmatpush.msra.mxu0 0.0
    %1617 = vmatpush.msra.mxu0 0.0
    %1618 = vmatpush.msra.mxu0 %v1594
    %1619 = vmatpush.msra.mxu0 %v1593
    %1620 = vmatpush.msra.mxu0 %v1592
    %1621 = vmatpush.msra.mxu0 %v1591
    %1622 = vmatmul.f32.gmra.mxu0 %v1601
    %v1623 = vpop.f32.mrf.mxu0
    %v1624 = vadd.f32 %v1598, %v1623
    %1625 = vmatmul.f32.gmra.mxu0 %v1604
    %v1626 = vpop.f32.mrf.mxu0
    %v1627 = vadd.f32 %v1598, %v1626
    %1628 = vdwg.mxu0
    %v1629 = vmax.f32 %v1624, 0.0
    %v1630 = vmax.f32 %v1627, 0.0
    %s1631 = scalar_lea.vmem %s8, 64
    %v1632 = vld [vmem:[%s1631] sm:$0xff]
    %v1633 = vld [vmem:[%s1631 + $0x8] sm:$0xff]
    %v1634 = vld [vmem:[%s1631 + $0x10] sm:$0xff]
    %v1635 = vld [vmem:[%s1631 + $0x18] sm:$0xff]
    %v1636 = vld [vmem:[%s1631 + $0x20] sm:$0xff]
    %v1637 = vld [vmem:[%s1631 + $0x28] sm:$0xff]
    %v1638 = vld [vmem:[%s1631 + $0x30] sm:$0xff]
    %v1639 = vld [vmem:[%s1631 + $0x38] sm:$0xff]
    %s1640 = scalar_lea.vmem %s9, 1
    %v1641 = vld [vmem:[%s1640] sm:$0x1]
    %v1643 = vperm.slane %v1641, 0
    %v1646 = vsel %vm834, %v1629, 0
    %v1649 = vsel %vm834, %v1630, 0
    %1651 = vmatpush.msra.mxu0 0.0
    %1652 = vmatpush.msra.mxu0 0.0
    %1653 = vmatpush.msra.mxu0 0.0
    %1654 = vmatpush.msra.mxu0 0.0
    %1655 = vmatpush.msra.mxu0 0.0
    %1656 = vmatpush.msra.mxu0 0.0
    %1657 = vmatpush.msra.mxu0 0.0
    %1658 = vmatpush.msra.mxu0 0.0
    %1659 = vmatpush.msra.mxu0 %v1639
    %1660 = vmatpush.msra.mxu0 %v1638
    %1661 = vmatpush.msra.mxu0 %v1637
    %1662 = vmatpush.msra.mxu0 %v1636
    %1663 = vmatpush.msra.mxu0 %v1635
    %1664 = vmatpush.msra.mxu0 %v1634
    %1665 = vmatpush.msra.mxu0 %v1633
    %1666 = vmatpush.msra.mxu0 %v1632
    %1667 = vmatmul.f32.gmra.mxu0 %v1646
    %v1668 = vpop.f32.mrf.mxu0
    %v1669 = vadd.f32 %v1643, %v1668
    %1670 = vmatmul.f32.gmra.mxu0 %v1649
    %v1671 = vpop.f32.mrf.mxu0
    %v1672 = vadd.f32 %v1643, %v1671
    %1673 = vdwg.mxu0
    %v1674 = vadd.f32 %v1588, %v1669
    %v1675 = vadd.f32 %v1589, %v1672
    %v1676 = vsel %vm102, %v1674, 0.0
    %1677 = vadd.xlane.f32.xlu0 %v1676
    %v1678 = vpop.xlane.xlu0 %1677
    %v1679 = vsel %vm102, %v1675, 0.0
    %1680 = vadd.xlane.f32.xlu0 %v1679
    %v1681 = vpop.xlane.xlu0 %1680
    %v1682 = vmul.f32 %v1678, %v734
    %v1683 = vmul.f32 %v1681, %v734
    %v1684 = vsub.f32 %v1674, %v1682
    %v1685 = vsub.f32 %v1675, %v1683
    %v1686 = vmul.f32 %v1684, %v1684
    %v1687 = vmul.f32 %v1685, %v1685
    %v1688 = vsel %vm102, %v1686, 0.0
    %1689 = vadd.xlane.f32.xlu0 %v1688
    %v1690 = vpop.xlane.xlu0 %1689
    %v1691 = vsel %vm102, %v1687, 0.0
    %1692 = vadd.xlane.f32.xlu0 %v1691
    %v1693 = vpop.xlane.xlu0 %1692
    %v1694 = vmul.f32 %v1690, %v734
    %v1695 = vmul.f32 %v1693, %v734
    %v1696 = vadd.f32 %v1694, 1e-05
    %v1697 = vadd.f32 %v1695, 1e-05
    %v1698 = vrsqrt.pop %v1696
    %v1699 = vmul.f32 %v1698, %v1696
    %v1700 = vmul.f32 %v1699, %v1698
    %v1701 = vmul.f32 0.5, %v1700
    %v1702 = vsub.f32 1.5, %v1701
    %v1703 = vmul.f32 %v1698, %v1702
    %vm1704 = vweird.f32 %v1696
    %vm1705 = vweird.f32 %v1698
    %vm1706 = vmor %vm1704, %vm1705
    %v1707 = vsel %vm1706, %v1698, %v1703
    %v1708 = vrsqrt.pop %v1697
    %v1709 = vmul.f32 %v1708, %v1697
    %v1710 = vmul.f32 %v1709, %v1708
    %v1711 = vmul.f32 0.5, %v1710
    %v1712 = vsub.f32 1.5, %v1711
    %v1713 = vmul.f32 %v1708, %v1712
    %vm1714 = vweird.f32 %v1697
    %vm1715 = vweird.f32 %v1708
    %vm1716 = vmor %vm1714, %vm1715
    %v1717 = vsel %vm1716, %v1708, %v1713
    %v1718 = vmul.f32 %v1684, %v1707
    %v1719 = vmul.f32 %v1685, %v1717
    %v1720 = vmul.f32 %v1718, %v774
    %v1721 = vmul.f32 %v1719, %v774
    %v1722 = vadd.f32 %v1720, %v779
    %v1723 = vadd.f32 %v1721, %v779
    %v1726 = vrot.slane %v1723, 7
    %vm1729 = vcmask 261127
    %1730 = vst.msk [vmem:[#allocation8 - $0x7] sm:$0x80] %vm1729, %v1722
    %vm1731 = vcmask 253952
    %1732 = vst.msk [vmem:[#allocation8 + $0x1] sm:$0x1] %vm1731, %v1726
    // Predicated region
    $region62: #{tpu_custom_call.1} parent=1 // pred_check
      _
    $region63: #{tpu_custom_call.1} parent=1 // pred_check_branch
      %1734 = sbr.rel (0) target = $region65
    $region64: #{tpu_custom_call.1} parent=1 // pred_region
      %1736 = vsyncadd [#allocation4], 0
      %s1738 = sshll.u32 [#allocation8], 4
      %s1739 = int_to_ptr.vmem [resolvable:$true] %s1738
      %s1740 = sshll.u32 %s12, 4
      %s1741 = int_to_ptr.hbm [resolvable:$true] %s1740
      %1743 = dma.vmem_to_hbm [thread:$0]  %s1739, 32, %s1741, [#allocation4]
    $region65: #{tpu_custom_call.1} parent=1 // pred_fallthru
      _
    // Predicated region
    $region66: #{tpu_custom_call.1} parent=1 // pred_check
      _
    $region67: #{tpu_custom_call.1} parent=1 // pred_check_branch
      %1745 = sbr.rel (0) target = $region69
    $region68: #{tpu_custom_call.1} parent=1 // pred_region
      %1747 = dma.done [#allocation4], 32
    $region69: #{tpu_custom_call.1} parent=1 // pred_fallthru
      _
    %1748 = vsyncpa [#allocation3], 1
    %1749 = vsyncpa [#allocation6], 1
    %1750 = vsyncpa [#allocation4], 1

// kernel: tpu_custom_call.1
$region0: #{tpu_custom_call.1}
  #allocation0 [shape = 'u32[]', space=smem, size = 0x4, offset = 0x4, fixed_abs, tag = 'smem constant byte address 0x4 - core index']
  #allocation1 [shape = 'u32[72,128]{1,0:T(1,128)}', space=vmem, size = 0x9000, scoped, tag = 'internal scratch']
  %s0 = inlined_call_operand.hbm [shape: f32[2,8,32], index: 0, kind: input, shape index: {}]
  %s1 = inlined_call_operand.hbm [shape: f32[8,32], index: 1, kind: input, shape index: {}]
  %s2 = inlined_call_operand.vmem [shape: f32[2,32,96], index: 2, kind: input, shape index: {}]
  %s3 = inlined_call_operand.vmem [shape: f32[2,1,96], index: 3, kind: input, shape index: {}]
  %s4 = inlined_call_operand.vmem [shape: f32[2,32,32], index: 4, kind: input, shape index: {}]
  %s5 = inlined_call_operand.hbm [shape: f32[2,1,32], index: 5, kind: input, shape index: {}]
  %s6 = inlined_call_operand.vmem [shape: f32[2,32,64], index: 6, kind: input, shape index: {}]
  %s7 = inlined_call_operand.vmem [shape: f32[2,1,64], index: 7, kind: input, shape index: {}]
  %s8 = inlined_call_operand.vmem [shape: f32[2,64,32], index: 8, kind: input, shape index: {}]
  %s9 = inlined_call_operand.vmem [shape: f32[2,1,32], index: 9, kind: input, shape index: {}]
  %s10 = inlined_call_operand.vmem [shape: f32[1,32], index: 10, kind: input, shape index: {}]
  %s11 = inlined_call_operand.vmem [shape: f32[1,32], index: 11, kind: input, shape index: {}]
  %s12 = inlined_call_operand.hbm [shape: f32[2,32], index: 12, kind: output, shape index: {}]
  %s13 = sld [smem:[#allocation0]]
  $region70: #{tpu_custom_call.1} parent=0
    _
  %s15 = ssub.s32 1, %s13
  %s16 = scalar_select 0, %s15, %s13
  $region1: #{tpu_custom_call.1} parent=0
    #allocation2 [shape = 'u8[8192]{0}', space=vmem, size = 0x2000, scoped, tag = 'input window, operand 0, single buffered']
    #allocation3 [shape = 's32[1]{0}', space=sflag, size = 0x4, scoped, tag = 'scoped memory for tpu_custom_call.1']
    #allocation4 [shape = 's32[1]{0}', space=sflag, size = 0x4, scoped, tag = 'scoped memory for tpu_custom_call.1']
    #allocation5 [shape = 'u8[4096]{0}', space=vmem, size = 0x1000, scoped, tag = 'input window, operand 1, single buffered']
    #allocation6 [shape = 's32[1]{0}', space=sflag, size = 0x4, scoped, tag = 'scoped memory for tpu_custom_call.1']
    #allocation7 [shape = 'u8[1024]{0}', space=vmem, size = 0x400, scoped, tag = 'input window, operand 5, single buffered']
    #allocation8 [shape = 'u8[1024]{0}', space=vmem, size = 0x400, scoped, tag = 'output window, operand 0, single buffered']
    %17 = vsyncpa [#allocation3], 0
    %18 = vsyncpa [#allocation6], 0
    %19 = vsyncpa [#allocation4], 0
    // Predicated region
    $region2: #{tpu_custom_call.1} parent=1 // pred_check
      _
    $region3: #{tpu_custom_call.1} parent=1 // pred_check_branch
      %21 = sbr.rel (0) target = $region5
    $region4: #{tpu_custom_call.1} parent=1 // pred_region
      %23 = vsyncadd [#allocation3], 0
      %s24 = sshll.u32 %s0, 4
      %s25 = int_to_ptr.hbm [resolvable:$true] %s24
      %s26 = sshll.u32 [#allocation2], 4
      %s27 = int_to_ptr.vmem [resolvable:$true] %s26
      %32 = dma.hbm_to_vmem [thread:$0]  %s25, 256, %s27, [#allocation3], 128, 128, 8
    $region5: #{tpu_custom_call.1} parent=1 // pred_fallthru
      _
    // Predicated region
    $region6: #{tpu_custom_call.1} parent=1 // pred_check
      _
    $region7: #{tpu_custom_call.1} parent=1 // pred_check_branch
      %34 = sbr.rel (0) target = $region9
    $region8: #{tpu_custom_call.1} parent=1 // pred_region
      %36 = vsyncadd [#allocation6], 0
      %s38 = sshll.u32 %s1, 4
      %s39 = int_to_ptr.hbm [resolvable:$true] %s38
      %s40 = sshll.u32 [#allocation5], 4
      %s41 = int_to_ptr.vmem [resolvable:$true] %s40
      %43 = dma.hbm_to_vmem [thread:$0]  %s39, 128, %s41, [#allocation6]
    $region9: #{tpu_custom_call.1} parent=1 // pred_fallthru
      _
    // Predicated region
    $region10: #{tpu_custom_call.1} parent=1 // pred_check
      _
    $region11: #{tpu_custom_call.1} parent=1 // pred_check_branch
      %45 = sbr.rel (0) target = $region13
    $region12: #{tpu_custom_call.1} parent=1 // pred_region
      _
    $region13: #{tpu_custom_call.1} parent=1 // pred_fallthru
      _
    // Predicated region
    $region14: #{tpu_custom_call.1} parent=1 // pred_check
      _
    $region15: #{tpu_custom_call.1} parent=1 // pred_check_branch
      %47 = sbr.rel (0) target = $region17
    $region16: #{tpu_custom_call.1} parent=1 // pred_region
      _
    $region17: #{tpu_custom_call.1} parent=1 // pred_fallthru
      _
    // Predicated region
    $region18: #{tpu_custom_call.1} parent=1 // pred_check
      _
    $region19: #{tpu_custom_call.1} parent=1 // pred_check_branch
      %49 = sbr.rel (0) target = $region21
    $region20: #{tpu_custom_call.1} parent=1 // pred_region
      _
    $region21: #{tpu_custom_call.1} parent=1 // pred_fallthru
      _
    // Predicated region
    $region22: #{tpu_custom_call.1} parent=1 // pred_check
      _
    $region23: #{tpu_custom_call.1} parent=1 // pred_check_branch
      %51 = sbr.rel (0) target = $region25
    $region24: #{tpu_custom_call.1} parent=1 // pred_region
      %53 = vsyncadd [#allocation6], 0
      %s54 = sshll.u32 %s5, 4
      %s55 = int_to_ptr.hbm [resolvable:$true] %s54
      %s56 = sshll.u32 [#allocation7], 4
      %s57 = int_to_ptr.vmem [resolvable:$true] %s56
      %62 = dma.hbm_to_vmem [thread:$0]  %s55, 32, %s57, [#allocation6], 16, 16, 1
    $region25: #{tpu_custom_call.1} parent=1 // pred_fallthru
      _
    // Predicated region
    $region26: #{tpu_custom_call.1} parent=1 // pred_check
      _
    $region27: #{tpu_custom_call.1} parent=1 // pred_check_branch
      %64 = sbr.rel (0) target = $region29
    $region28: #{tpu_custom_call.1} parent=1 // pred_region
      _
    $region29: #{tpu_custom_call.1} parent=1 // pred_fallthru
      _
    // Predicated region
    $region30: #{tpu_custom_call.1} parent=1 // pred_check
      _
    $region31: #{tpu_custom_call.1} parent=1 // pred_check_branch
      %66 = sbr.rel (0) target = $region33
    $region32: #{tpu_custom_call.1} parent=1 // pred_region
      _
    $region33: #{tpu_custom_call.1} parent=1 // pred_fallthru
      _
    // Predicated region
    $region34: #{tpu_custom_call.1} parent=1 // pred_check
      _
    $region35: #{tpu_custom_call.1} parent=1 // pred_check_branch
      %68 = sbr.rel (0) target = $region37
    $region36: #{tpu_custom_call.1} parent=1 // pred_region
      _
    $region37: #{tpu_custom_call.1} parent=1 // pred_fallthru
      _
    // Predicated region
    $region38: #{tpu_custom_call.1} parent=1 // pred_check
      _
    $region39: #{tpu_custom_call.1} parent=1 // pred_check_branch
      %70 = sbr.rel (0) target = $region41
    $region40: #{tpu_custom_call.1} parent=1 // pred_region
      _
    $region41: #{tpu_custom_call.1} parent=1 // pred_fallthru
      _
    // Predicated region
    $region42: #{tpu_custom_call.1} parent=1 // pred_check
      _
    $region43: #{tpu_custom_call.1} parent=1 // pred_check_branch
      %72 = sbr.rel (0) target = $region45
    $region44: #{tpu_custom_call.1} parent=1 // pred_region
      _
    $region45: #{tpu_custom_call.1} parent=1 // pred_fallthru
      _
    // Predicated region
    $region46: #{tpu_custom_call.1} parent=1 // pred_check
      _
    $region47: #{tpu_custom_call.1} parent=1 // pred_check_branch
      %74 = sbr.rel (0) target = $region49
    $region48: #{tpu_custom_call.1} parent=1 // pred_region
      _
    $region49: #{tpu_custom_call.1} parent=1 // pred_fallthru
      _
    // Predicated region
    $region50: #{tpu_custom_call.1} parent=1 // pred_check
      _
    $region51: #{tpu_custom_call.1} parent=1 // pred_check_branch
      %76 = sbr.rel (0) target = $region53
    $region52: #{tpu_custom_call.1} parent=1 // pred_region
      %78 = dma.done [#allocation3], 256
    $region53: #{tpu_custom_call.1} parent=1 // pred_fallthru
      _
    // Predicated region
    $region54: #{tpu_custom_call.1} parent=1 // pred_check
      _
    $region55: #{tpu_custom_call.1} parent=1 // pred_check_branch
      %80 = sbr.rel (0) target = $region57
    $region56: #{tpu_custom_call.1} parent=1 // pred_region
      %82 = dma.done [#allocation6], 128
    $region57: #{tpu_custom_call.1} parent=1 // pred_fallthru
      _
    // Predicated region
    $region58: #{tpu_custom_call.1} parent=1 // pred_check
      _
    $region59: #{tpu_custom_call.1} parent=1 // pred_check_branch
      %84 = sbr.rel (0) target = $region61
    $region60: #{tpu_custom_call.1} parent=1 // pred_region
      %86 = dma.done [#allocation6], 32
    $region61: #{tpu_custom_call.1} parent=1 // pred_fallthru
      _
    %v87 = vld [vmem:[%s10] sm:$0x1]
    %v88 = vld [vmem:[%s11] sm:$0x1]
    %v89 = vld [vmem:[#allocation2] sm:$0xff]
    %v90 = vld [vmem:[#allocation2 + $0x8] sm:$0xff]
    %v91 = vld [vmem:[#allocation5] sm:$0xff]
    %v92 = vadd.f32 %v89, %v91
    %v93 = vadd.f32 %v90, %v91
    %v94 = vld [vmem:[%s2] sm:$0xff]
    %v95 = vld [vmem:[%s2 + $0x8] sm:$0xff]
    %v96 = vld [vmem:[%s2 + $0x10] sm:$0xff]
    %v97 = vld [vmem:[%s2 + $0x18] sm:$0xff]
    %v98 = vld [vmem:[%s3] sm:$0x1]
    %v100 = vperm.slane %v98, 0
    %vm102 = vcmask 261120
    %v104 = vsel %vm102, %v92, 0
    %v107 = vsel %vm102, %v93, 0
    %109 = vmatpush.msra.mxu0 0.0
    %110 = vmatpush.msra.mxu0 0.0
    %111 = vmatpush.msra.mxu0 0.0
    %112 = vmatpush.msra.mxu0 0.0
    %113 = vmatpush.msra.mxu0 0.0
    %114 = vmatpush.msra.mxu0 0.0
    %115 = vmatpush.msra.mxu0 0.0
    %116 = vmatpush.msra.mxu0 0.0
    %117 = vmatpush.msra.mxu0 0.0
    %118 = vmatpush.msra.mxu0 0.0
    %119 = vmatpush.msra.mxu0 0.0
    %120 = vmatpush.msra.mxu0 0.0
    %121 = vmatpush.msra.mxu0 %v97
    %122 = vmatpush.msra.mxu0 %v96
    %123 = vmatpush.msra.mxu0 %v95
    %124 = vmatpush.msra.mxu0 %v94
    %125 = vmatmul.f32.gmra.mxu0 %v104
    %v126 = vpop.f32.mrf.mxu0
    %v127 = vadd.f32 %v100, %v126
    %128 = vmatmul.f32.gmra.mxu0 %v107
    %v129 = vpop.f32.mrf.mxu0
    %v130 = vadd.f32 %v100, %v129
    %131 = vdwg.mxu0
    %134 = vrot.lane.b32.xlu0 %v127, 120
    %v135 = vpop.permute.xlu0 %134
    %136 = vrot.lane.b32.xlu0 %v130, 120
    %v137 = vpop.permute.xlu0 %136
    %138 = vrot.lane.b32.xlu0 %v127, 112
    %v139 = vpop.permute.xlu0 %138
    %140 = vrot.lane.b32.xlu0 %v130, 112
    %v141 = vpop.permute.xlu0 %140
    %142 = vrot.lane.b32.xlu0 %v127, 104
    %v143 = vpop.permute.xlu0 %142
    %144 = vrot.lane.b32.xlu0 %v130, 104
    %v145 = vpop.permute.xlu0 %144
    %146 = vrot.lane.b32.xlu0 %v127, 96
    %v147 = vpop.permute.xlu0 %146
    %vm148 = vcmask 64512
    %v149 = vsel %vm148, %v127, 0
    %v151 = vsel %vm148, %v147, 0
    %153 = vmatpush.xpose.msra.mxu0 0.0
    %154 = vmatpush.xpose.msra.mxu0 0.0
    %155 = vmatpush.xpose.msra.mxu0 0.0
    %156 = vmatpush.xpose.msra.mxu0 0.0
    %157 = vmatpush.xpose.msra.mxu0 0.0
    %158 = vmatpush.xpose.msra.mxu0 0.0
    %159 = vmatpush.xpose.msra.mxu0 0.0
    %160 = vmatpush.xpose.msra.mxu0 0.0
    %161 = vmatpush.xpose.msra.mxu0 0.0
    %162 = vmatpush.xpose.msra.mxu0 0.0
    %163 = vmatpush.xpose.msra.mxu0 0.0
    %164 = vmatpush.xpose.msra.mxu0 0.0
    %165 = vmatpush.xpose.msra.mxu0 0.0
    %166 = vmatpush.xpose.msra.mxu0 0.0
    %167 = vmatpush.xpose.msra.mxu0 0.0
    %168 = vmatpush.xpose.msra.mxu0 %v151
    %169 = vmatmul.f32.gmra.mxu0 %v149
    %v170 = vpop.f32.mrf.mxu0
    %v171 = vadd.f32 0.0, %v170
    %172 = vdwg.mxu0
    %173 = vrot.lane.b32.xlu0 %v130, 96
    %v174 = vpop.permute.xlu0 %173
    %v175 = vsel %vm148, %v130, 0
    %v177 = vsel %vm148, %v174, 0
    %179 = vmatpush.xpose.msra.mxu0 0.0
    %180 = vmatpush.xpose.msra.mxu0 0.0
    %181 = vmatpush.xpose.msra.mxu0 0.0
    %182 = vmatpush.xpose.msra.mxu0 0.0
    %183 = vmatpush.xpose.msra.mxu0 0.0
    %184 = vmatpush.xpose.msra.mxu0 0.0
    %185 = vmatpush.xpose.msra.mxu0 0.0
    %186 = vmatpush.xpose.msra.mxu0 0.0
    %187 = vmatpush.xpose.msra.mxu0 0.0
    %188 = vmatpush.xpose.msra.mxu0 0.0
    %189 = vmatpush.xpose.msra.mxu0 0.0
    %190 = vmatpush.xpose.msra.mxu0 0.0
    %191 = vmatpush.xpose.msra.mxu0 0.0
    %192 = vmatpush.xpose.msra.mxu0 0.0
    %193 = vmatpush.xpose.msra.mxu0 0.0
    %194 = vmatpush.xpose.msra.mxu0 %v177
    %195 = vmatmul.f32.gmra.mxu0 %v175
    %v196 = vpop.f32.mrf.mxu0
    %v197 = vadd.f32 0.0, %v196
    %198 = vdwg.mxu0
    %199 = vrot.lane.b32.xlu0 %v135, 96
    %v200 = vpop.permute.xlu0 %199
    %v201 = vsel %vm148, %v135, 0
    %v203 = vsel %vm148, %v200, 0
    %205 = vmatpush.xpose.msra.mxu0 0.0
    %206 = vmatpush.xpose.msra.mxu0 0.0
    %207 = vmatpush.xpose.msra.mxu0 0.0
    %208 = vmatpush.xpose.msra.mxu0 0.0
    %209 = vmatpush.xpose.msra.mxu0 0.0
    %210 = vmatpush.xpose.msra.mxu0 0.0
    %211 = vmatpush.xpose.msra.mxu0 0.0
    %212 = vmatpush.xpose.msra.mxu0 0.0
    %213 = vmatpush.xpose.msra.mxu0 0.0
    %214 = vmatpush.xpose.msra.mxu0 0.0
    %215 = vmatpush.xpose.msra.mxu0 0.0
    %216 = vmatpush.xpose.msra.mxu0 0.0
    %217 = vmatpush.xpose.msra.mxu0 0.0
    %218 = vmatpush.xpose.msra.mxu0 0.0
    %219 = vmatpush.xpose.msra.mxu0 0.0
    %220 = vmatpush.xpose.msra.mxu0 %v203
    %221 = vmatmul.f32.gmra.mxu0 %v201
    %v222 = vpop.f32.mrf.mxu0
    %v223 = vadd.f32 0.0, %v222
    %224 = vdwg.mxu0
    %225 = vrot.lane.b32.xlu0 %v137, 96
    %v226 = vpop.permute.xlu0 %225
    %v227 = vsel %vm148, %v137, 0
    %v229 = vsel %vm148, %v226, 0
    %231 = vmatpush.xpose.msra.mxu0 0.0
    %232 = vmatpush.xpose.msra.mxu0 0.0
    %233 = vmatpush.xpose.msra.mxu0 0.0
    %234 = vmatpush.xpose.msra.mxu0 0.0
    %235 = vmatpush.xpose.msra.mxu0 0.0
    %236 = vmatpush.xpose.msra.mxu0 0.0
    %237 = vmatpush.xpose.msra.mxu0 0.0
    %238 = vmatpush.xpose.msra.mxu0 0.0
    %239 = vmatpush.xpose.msra.mxu0 0.0
    %240 = vmatpush.xpose.msra.mxu0 0.0
    %241 = vmatpush.xpose.msra.mxu0 0.0
    %242 = vmatpush.xpose.msra.mxu0 0.0
    %243 = vmatpush.xpose.msra.mxu0 0.0
    %244 = vmatpush.xpose.msra.mxu0 0.0
    %245 = vmatpush.xpose.msra.mxu0 0.0
    %246 = vmatpush.xpose.msra.mxu0 %v229
    %247 = vmatmul.f32.gmra.mxu0 %v227
    %v248 = vpop.f32.mrf.mxu0
    %v249 = vadd.f32 0.0, %v248
    %250 = vdwg.mxu0
    %251 = vrot.lane.b32.xlu0 %v139, 96
    %v252 = vpop.permute.xlu0 %251
    %v253 = vsel %vm148, %v139, 0
    %v255 = vsel %vm148, %v252, 0
    %257 = vmatpush.xpose.msra.mxu0 0.0
    %258 = vmatpush.xpose.msra.mxu0 0.0
    %259 = vmatpush.xpose.msra.mxu0 0.0
    %260 = vmatpush.xpose.msra.mxu0 0.0
    %261 = vmatpush.xpose.msra.mxu0 0.0
    %262 = vmatpush.xpose.msra.mxu0 0.0
    %263 = vmatpush.xpose.msra.mxu0 0.0
    %264 = vmatpush.xpose.msra.mxu0 0.0
    %265 = vmatpush.xpose.msra.mxu0 0.0
    %266 = vmatpush.xpose.msra.mxu0 0.0
    %267 = vmatpush.xpose.msra.mxu0 0.0
    %268 = vmatpush.xpose.msra.mxu0 0.0
    %269 = vmatpush.xpose.msra.mxu0 0.0
    %270 = vmatpush.xpose.msra.mxu0 0.0
    %271 = vmatpush.xpose.msra.mxu0 0.0
    %272 = vmatpush.xpose.msra.mxu0 %v255
    %273 = vmatmul.f32.gmra.mxu0 %v253
    %v274 = vpop.f32.mrf.mxu0
    %v275 = vadd.f32 0.0, %v274
    %276 = vdwg.mxu0
    %277 = vrot.lane.b32.xlu0 %v141, 96
    %v278 = vpop.permute.xlu0 %277
    %v279 = vsel %vm148, %v141, 0
    %v281 = vsel %vm148, %v278, 0
    %283 = vmatpush.xpose.msra.mxu0 0.0
    %284 = vmatpush.xpose.msra.mxu0 0.0
    %285 = vmatpush.xpose.msra.mxu0 0.0
    %286 = vmatpush.xpose.msra.mxu0 0.0
    %287 = vmatpush.xpose.msra.mxu0 0.0
    %288 = vmatpush.xpose.msra.mxu0 0.0
    %289 = vmatpush.xpose.msra.mxu0 0.0
    %290 = vmatpush.xpose.msra.mxu0 0.0
    %291 = vmatpush.xpose.msra.mxu0 0.0
    %292 = vmatpush.xpose.msra.mxu0 0.0
    %293 = vmatpush.xpose.msra.mxu0 0.0
    %294 = vmatpush.xpose.msra.mxu0 0.0
    %295 = vmatpush.xpose.msra.mxu0 0.0
    %296 = vmatpush.xpose.msra.mxu0 0.0
    %297 = vmatpush.xpose.msra.mxu0 0.0
    %298 = vmatpush.xpose.msra.mxu0 %v281
    %299 = vmatmul.f32.gmra.mxu0 %v279
    %v300 = vpop.f32.mrf.mxu0
    %v301 = vadd.f32 0.0, %v300
    %302 = vdwg.mxu0
    %303 = vrot.lane.b32.xlu0 %v143, 96
    %v304 = vpop.permute.xlu0 %303
    %v305 = vsel %vm148, %v143, 0
    %v307 = vsel %vm148, %v304, 0
    %309 = vmatpush.xpose.msra.mxu0 0.0
    %310 = vmatpush.xpose.msra.mxu0 0.0
    %311 = vmatpush.xpose.msra.mxu0 0.0
    %312 = vmatpush.xpose.msra.mxu0 0.0
    %313 = vmatpush.xpose.msra.mxu0 0.0
    %314 = vmatpush.xpose.msra.mxu0 0.0
    %315 = vmatpush.xpose.msra.mxu0 0.0
    %316 = vmatpush.xpose.msra.mxu0 0.0
    %317 = vmatpush.xpose.msra.mxu0 0.0
    %318 = vmatpush.xpose.msra.mxu0 0.0
    %319 = vmatpush.xpose.msra.mxu0 0.0
    %320 = vmatpush.xpose.msra.mxu0 0.0
    %321 = vmatpush.xpose.msra.mxu0 0.0
    %322 = vmatpush.xpose.msra.mxu0 0.0
    %323 = vmatpush.xpose.msra.mxu0 0.0
    %324 = vmatpush.xpose.msra.mxu0 %v307
    %325 = vmatmul.f32.gmra.mxu0 %v305
    %v326 = vpop.f32.mrf.mxu0
    %v327 = vadd.f32 0.0, %v326
    %328 = vdwg.mxu0
    %329 = vrot.lane.b32.xlu0 %v145, 96
    %v330 = vpop.permute.xlu0 %329
    %v331 = vsel %vm148, %v145, 0
    %v333 = vsel %vm148, %v330, 0
    %335 = vmatpush.xpose.msra.mxu0 0.0
    %336 = vmatpush.xpose.msra.mxu0 0.0
    %337 = vmatpush.xpose.msra.mxu0 0.0
    %338 = vmatpush.xpose.msra.mxu0 0.0
    %339 = vmatpush.xpose.msra.mxu0 0.0
    %340 = vmatpush.xpose.msra.mxu0 0.0
    %341 = vmatpush.xpose.msra.mxu0 0.0
    %342 = vmatpush.xpose.msra.mxu0 0.0
    %343 = vmatpush.xpose.msra.mxu0 0.0
    %344 = vmatpush.xpose.msra.mxu0 0.0
    %345 = vmatpush.xpose.msra.mxu0 0.0
    %346 = vmatpush.xpose.msra.mxu0 0.0
    %347 = vmatpush.xpose.msra.mxu0 0.0
    %348 = vmatpush.xpose.msra.mxu0 0.0
    %349 = vmatpush.xpose.msra.mxu0 0.0
    %350 = vmatpush.xpose.msra.mxu0 %v333
    %351 = vmatmul.f32.gmra.mxu0 %v331
    %v352 = vpop.f32.mrf.mxu0
    %v353 = vadd.f32 0.0, %v352
    %354 = vdwg.mxu0
    %v355 = vsel %vm148, %v171, -inf
    %356 = vmax.xlane.f32.xlu0 %v355
    %v357 = vpop.xlane.xlu0 %356
    %v358 = vsel %vm148, %v197, -inf
    %359 = vmax.xlane.f32.xlu0 %v358
    %v360 = vpop.xlane.xlu0 %359
    %v361 = vsel %vm148, %v223, -inf
    %362 = vmax.xlane.f32.xlu0 %v361
    %v363 = vpop.xlane.xlu0 %362
    %v364 = vsel %vm148, %v249, -inf
    %365 = vmax.xlane.f32.xlu0 %v364
    %v366 = vpop.xlane.xlu0 %365
    %v367 = vsel %vm148, %v275, -inf
    %368 = vmax.xlane.f32.xlu0 %v367
    %v369 = vpop.xlane.xlu0 %368
    %v370 = vsel %vm148, %v301, -inf
    %371 = vmax.xlane.f32.xlu0 %v370
    %v372 = vpop.xlane.xlu0 %371
    %v373 = vsel %vm148, %v327, -inf
    %374 = vmax.xlane.f32.xlu0 %v373
    %v375 = vpop.xlane.xlu0 %374
    %v376 = vsel %vm148, %v353, -inf
    %377 = vmax.xlane.f32.xlu0 %v376
    %v378 = vpop.xlane.xlu0 %377
    %v379 = vsub.f32 %v171, %v357
    %v380 = vsub.f32 %v197, %v360
    %v381 = vsub.f32 %v223, %v363
    %v382 = vsub.f32 %v249, %v366
    %v383 = vsub.f32 %v275, %v369
    %v384 = vsub.f32 %v301, %v372
    %v385 = vsub.f32 %v327, %v375
    %v386 = vsub.f32 %v353, %v378
    %v387 = vmul.f32 %v379, 1.442695
    %v388 = vpow.pop %v387
    %v389 = vmul.f32 %v380, 1.442695
    %v390 = vpow.pop %v389
    %v391 = vmul.f32 %v381, 1.442695
    %v392 = vpow.pop %v391
    %v393 = vmul.f32 %v382, 1.442695
    %v394 = vpow.pop %v393
    %v395 = vmul.f32 %v383, 1.442695
    %v396 = vpow.pop %v395
    %v397 = vmul.f32 %v384, 1.442695
    %v398 = vpow.pop %v397
    %v399 = vmul.f32 %v385, 1.442695
    %v400 = vpow.pop %v399
    %v401 = vmul.f32 %v386, 1.442695
    %v402 = vpow.pop %v401
    %v403 = vsel %vm148, %v388, 0.0
    %404 = vadd.xlane.f32.xlu0 %v403
    %v405 = vpop.xlane.xlu0 %404
    %v406 = vsel %vm148, %v390, 0.0
    %407 = vadd.xlane.f32.xlu0 %v406
    %v408 = vpop.xlane.xlu0 %407
    %v409 = vsel %vm148, %v392, 0.0
    %410 = vadd.xlane.f32.xlu0 %v409
    %v411 = vpop.xlane.xlu0 %410
    %v412 = vsel %vm148, %v394, 0.0
    %413 = vadd.xlane.f32.xlu0 %v412
    %v414 = vpop.xlane.xlu0 %413
    %v415 = vsel %vm148, %v396, 0.0
    %416 = vadd.xlane.f32.xlu0 %v415
    %v417 = vpop.xlane.xlu0 %416
    %v418 = vsel %vm148, %v398, 0.0
    %419 = vadd.xlane.f32.xlu0 %v418
    %v420 = vpop.xlane.xlu0 %419
    %v421 = vsel %vm148, %v400, 0.0
    %422 = vadd.xlane.f32.xlu0 %v421
    %v423 = vpop.xlane.xlu0 %422
    %v424 = vsel %vm148, %v402, 0.0
    %425 = vadd.xlane.f32.xlu0 %v424
    %v426 = vpop.xlane.xlu0 %425
    %v427 = vrcp.pop %v405
    %v428 = vrcp.pop %v408
    %v429 = vrcp.pop %v411
    %v430 = vrcp.pop %v414
    %v431 = vrcp.pop %v417
    %v432 = vrcp.pop %v420
    %v433 = vrcp.pop %v423
    %v434 = vrcp.pop %v426
    %v435 = vmul.f32 %v388, %v427
    %v436 = vmul.f32 %v390, %v428
    %v437 = vmul.f32 %v392, %v429
    %v438 = vmul.f32 %v394, %v430
    %v439 = vmul.f32 %v396, %v431
    %v440 = vmul.f32 %v398, %v432
    %v441 = vmul.f32 %v400, %v433
    %v442 = vmul.f32 %v402, %v434
    %443 = vrot.lane.b32.xlu0 %v127, 64
    %v444 = vpop.permute.xlu0 %443
    %v447 = vsel %vm148, %v435, 0
    %449 = vmatpush.msra.mxu0 0.0
    %450 = vmatpush.msra.mxu0 0.0
    %451 = vmatpush.msra.mxu0 0.0
    %452 = vmatpush.msra.mxu0 0.0
    %453 = vmatpush.msra.mxu0 0.0
    %454 = vmatpush.msra.mxu0 0.0
    %455 = vmatpush.msra.mxu0 0.0
    %456 = vmatpush.msra.mxu0 0.0
    %457 = vmatpush.msra.mxu0 0.0
    %458 = vmatpush.msra.mxu0 0.0
    %459 = vmatpush.msra.mxu0 0.0
    %460 = vmatpush.msra.mxu0 0.0
    %461 = vmatpush.msra.mxu0 0.0
    %462 = vmatpush.msra.mxu0 0.0
    %463 = vmatpush.msra.mxu0 0.0
    %464 = vmatpush.msra.mxu0 %v444
    %465 = vmatmul.f32.gmra.mxu0 %v447
    %v466 = vpop.f32.mrf.mxu0
    %v467 = vadd.f32 0.0, %v466
    %468 = vdwg.mxu0
    %469 = vrot.lane.b32.xlu0 %v130, 64
    %v470 = vpop.permute.xlu0 %469
    %v473 = vsel %vm148, %v436, 0
    %475 = vmatpush.msra.mxu0 0.0
    %476 = vmatpush.msra.mxu0 0.0
    %477 = vmatpush.msra.mxu0 0.0
    %478 = vmatpush.msra.mxu0 0.0
    %479 = vmatpush.msra.mxu0 0.0
    %480 = vmatpush.msra.mxu0 0.0
    %481 = vmatpush.msra.mxu0 0.0
    %482 = vmatpush.msra.mxu0 0.0
    %483 = vmatpush.msra.mxu0 0.0
    %484 = vmatpush.msra.mxu0 0.0
    %485 = vmatpush.msra.mxu0 0.0
    %486 = vmatpush.msra.mxu0 0.0
    %487 = vmatpush.msra.mxu0 0.0
    %488 = vmatpush.msra.mxu0 0.0
    %489 = vmatpush.msra.mxu0 0.0
    %490 = vmatpush.msra.mxu0 %v470
    %491 = vmatmul.f32.gmra.mxu0 %v473
    %v492 = vpop.f32.mrf.mxu0
    %v493 = vadd.f32 0.0, %v492
    %494 = vdwg.mxu0
    %495 = vrot.lane.b32.xlu0 %v135, 64
    %v496 = vpop.permute.xlu0 %495
    %v499 = vsel %vm148, %v437, 0
    %501 = vmatpush.msra.mxu0 0.0
    %502 = vmatpush.msra.mxu0 0.0
    %503 = vmatpush.msra.mxu0 0.0
    %504 = vmatpush.msra.mxu0 0.0
    %505 = vmatpush.msra.mxu0 0.0
    %506 = vmatpush.msra.mxu0 0.0
    %507 = vmatpush.msra.mxu0 0.0
    %508 = vmatpush.msra.mxu0 0.0
    %509 = vmatpush.msra.mxu0 0.0
    %510 = vmatpush.msra.mxu0 0.0
    %511 = vmatpush.msra.mxu0 0.0
    %512 = vmatpush.msra.mxu0 0.0
    %513 = vmatpush.msra.mxu0 0.0
    %514 = vmatpush.msra.mxu0 0.0
    %515 = vmatpush.msra.mxu0 0.0
    %516 = vmatpush.msra.mxu0 %v496
    %517 = vmatmul.f32.gmra.mxu0 %v499
    %v518 = vpop.f32.mrf.mxu0
    %v519 = vadd.f32 0.0, %v518
    %520 = vdwg.mxu0
    %521 = vrot.lane.b32.xlu0 %v137, 64
    %v522 = vpop.permute.xlu0 %521
    %v525 = vsel %vm148, %v438, 0
    %527 = vmatpush.msra.mxu0 0.0
    %528 = vmatpush.msra.mxu0 0.0
    %529 = vmatpush.msra.mxu0 0.0
    %530 = vmatpush.msra.mxu0 0.0
    %531 = vmatpush.msra.mxu0 0.0
    %532 = vmatpush.msra.mxu0 0.0
    %533 = vmatpush.msra.mxu0 0.0
    %534 = vmatpush.msra.mxu0 0.0
    %535 = vmatpush.msra.mxu0 0.0
    %536 = vmatpush.msra.mxu0 0.0
    %537 = vmatpush.msra.mxu0 0.0
    %538 = vmatpush.msra.mxu0 0.0
    %539 = vmatpush.msra.mxu0 0.0
    %540 = vmatpush.msra.mxu0 0.0
    %541 = vmatpush.msra.mxu0 0.0
    %542 = vmatpush.msra.mxu0 %v522
    %543 = vmatmul.f32.gmra.mxu0 %v525
    %v544 = vpop.f32.mrf.mxu0
    %v545 = vadd.f32 0.0, %v544
    %546 = vdwg.mxu0
    %547 = vrot.lane.b32.xlu0 %v139, 64
    %v548 = vpop.permute.xlu0 %547
    %v551 = vsel %vm148, %v439, 0
    %553 = vmatpush.msra.mxu0 0.0
    %554 = vmatpush.msra.mxu0 0.0
    %555 = vmatpush.msra.mxu0 0.0
    %556 = vmatpush.msra.mxu0 0.0
    %557 = vmatpush.msra.mxu0 0.0
    %558 = vmatpush.msra.mxu0 0.0
    %559 = vmatpush.msra.mxu0 0.0
    %560 = vmatpush.msra.mxu0 0.0
    %561 = vmatpush.msra.mxu0 0.0
    %562 = vmatpush.msra.mxu0 0.0
    %563 = vmatpush.msra.mxu0 0.0
    %564 = vmatpush.msra.mxu0 0.0
    %565 = vmatpush.msra.mxu0 0.0
    %566 = vmatpush.msra.mxu0 0.0
    %567 = vmatpush.msra.mxu0 0.0
    %568 = vmatpush.msra.mxu0 %v548
    %569 = vmatmul.f32.gmra.mxu0 %v551
    %v570 = vpop.f32.mrf.mxu0
    %v571 = vadd.f32 0.0, %v570
    %572 = vdwg.mxu0
    %573 = vrot.lane.b32.xlu0 %v141, 64
    %v574 = vpop.permute.xlu0 %573
    %v577 = vsel %vm148, %v440, 0
    %579 = vmatpush.msra.mxu0 0.0
    %580 = vmatpush.msra.mxu0 0.0
    %581 = vmatpush.msra.mxu0 0.0
    %582 = vmatpush.msra.mxu0 0.0
    %583 = vmatpush.msra.mxu0 0.0
    %584 = vmatpush.msra.mxu0 0.0
    %585 = vmatpush.msra.mxu0 0.0
    %586 = vmatpush.msra.mxu0 0.0
    %587 = vmatpush.msra.mxu0 0.0
    %588 = vmatpush.msra.mxu0 0.0
    %589 = vmatpush.msra.mxu0 0.0
    %590 = vmatpush.msra.mxu0 0.0
    %591 = vmatpush.msra.mxu0 0.0
    %592 = vmatpush.msra.mxu0 0.0
    %593 = vmatpush.msra.mxu0 0.0
    %594 = vmatpush.msra.mxu0 %v574
    %595 = vmatmul.f32.gmra.mxu0 %v577
    %v596 = vpop.f32.mrf.mxu0
    %v597 = vadd.f32 0.0, %v596
    %598 = vdwg.mxu0
    %599 = vrot.lane.b32.xlu0 %v143, 64
    %v600 = vpop.permute.xlu0 %599
    %v603 = vsel %vm148, %v441, 0
    %605 = vmatpush.msra.mxu0 0.0
    %606 = vmatpush.msra.mxu0 0.0
    %607 = vmatpush.msra.mxu0 0.0
    %608 = vmatpush.msra.mxu0 0.0
    %609 = vmatpush.msra.mxu0 0.0
    %610 = vmatpush.msra.mxu0 0.0
    %611 = vmatpush.msra.mxu0 0.0
    %612 = vmatpush.msra.mxu0 0.0
    %613 = vmatpush.msra.mxu0 0.0
    %614 = vmatpush.msra.mxu0 0.0
    %615 = vmatpush.msra.mxu0 0.0
    %616 = vmatpush.msra.mxu0 0.0
    %617 = vmatpush.msra.mxu0 0.0
    %618 = vmatpush.msra.mxu0 0.0
    %619 = vmatpush.msra.mxu0 0.0
    %620 = vmatpush.msra.mxu0 %v600
    %621 = vmatmul.f32.gmra.mxu0 %v603
    %v622 = vpop.f32.mrf.mxu0
    %v623 = vadd.f32 0.0, %v622
    %624 = vdwg.mxu0
    %625 = vrot.lane.b32.xlu0 %v145, 64
    %v626 = vpop.permute.xlu0 %625
    %v629 = vsel %vm148, %v442, 0
    %631 = vmatpush.msra.mxu0 0.0
    %632 = vmatpush.msra.mxu0 0.0
    %633 = vmatpush.msra.mxu0 0.0
    %634 = vmatpush.msra.mxu0 0.0
    %635 = vmatpush.msra.mxu0 0.0
    %636 = vmatpush.msra.mxu0 0.0
    %637 = vmatpush.msra.mxu0 0.0
    %638 = vmatpush.msra.mxu0 0.0
    %639 = vmatpush.msra.mxu0 0.0
    %640 = vmatpush.msra.mxu0 0.0
    %641 = vmatpush.msra.mxu0 0.0
    %642 = vmatpush.msra.mxu0 0.0
    %643 = vmatpush.msra.mxu0 0.0
    %644 = vmatpush.msra.mxu0 0.0
    %645 = vmatpush.msra.mxu0 0.0
    %646 = vmatpush.msra.mxu0 %v626
    %647 = vmatmul.f32.gmra.mxu0 %v629
    %v648 = vpop.f32.mrf.mxu0
    %v649 = vadd.f32 0.0, %v648
    %650 = vdwg.mxu0
    %653 = vrot.lane.b32.xlu0 %v519, 8
    %v654 = vpop.permute.xlu0 %653
    %655 = vrot.lane.b32.xlu0 %v545, 8
    %v656 = vpop.permute.xlu0 %655
    %661 = vrot.lane.b32.xlu0 %v571, 16
    %v662 = vpop.permute.xlu0 %661
    %663 = vrot.lane.b32.xlu0 %v597, 16
    %v664 = vpop.permute.xlu0 %663
    %669 = vrot.lane.b32.xlu0 %v623, 24
    %v670 = vpop.permute.xlu0 %669
    %671 = vrot.lane.b32.xlu0 %v649, 24
    %v672 = vpop.permute.xlu0 %671
    %v675 = vsel %vm148, %v467, %v654
    %v676 = vsel %vm148, %v493, %v656
    %vm677 = vcmask 130048
    %v678 = vsel %vm677, %v675, %v662
    %v679 = vsel %vm677, %v676, %v664
    %vm680 = vcmask 195584
    %v681 = vsel %vm680, %v678, %v670
    %v682 = vsel %vm680, %v679, %v672
    %v683 = vld [vmem:[%s4] sm:$0xff]
    %v684 = vld [vmem:[%s4 + $0x8] sm:$0xff]
    %v685 = vld [vmem:[%s4 + $0x10] sm:$0xff]
    %v686 = vld [vmem:[%s4 + $0x18] sm:$0xff]
    %v687 = vld [vmem:[#allocation7] sm:$0x1]
    %v689 = vperm.slane %v687, 0
    %v692 = vsel %vm102, %v681, 0
    %v695 = vsel %vm102, %v682, 0
    %697 = vmatpush.msra.mxu0 0.0
    %698 = vmatpush.msra.mxu0 0.0
    %699 = vmatpush.msra.mxu0 0.0
    %700 = vmatpush.msra.mxu0 0.0
    %701 = vmatpush.msra.mxu0 0.0
    %702 = vmatpush.msra.mxu0 0.0
    %703 = vmatpush.msra.mxu0 0.0
    %704 = vmatpush.msra.mxu0 0.0
    %705 = vmatpush.msra.mxu0 0.0
    %706 = vmatpush.msra.mxu0 0.0
    %707 = vmatpush.msra.mxu0 0.0
    %708 = vmatpush.msra.mxu0 0.0
    %709 = vmatpush.msra.mxu0 %v686
    %710 = vmatpush.msra.mxu0 %v685
    %711 = vmatpush.msra.mxu0 %v684
    %712 = vmatpush.msra.mxu0 %v683
    %713 = vmatmul.f32.gmra.mxu0 %v692
    %v714 = vpop.f32.mrf.mxu0
    %v715 = vadd.f32 %v689, %v714
    %716 = vmatmul.f32.gmra.mxu0 %v695
    %v717 = vpop.f32.mrf.mxu0
    %v718 = vadd.f32 %v689, %v717
    %719 = vdwg.mxu0
    %v720 = vadd.f32 %v92, %v715
    %v721 = vadd.f32 %v93, %v718
    %v722 = vsel %vm102, %v720, 0.0
    %723 = vadd.xlane.f32.xlu0 %v722
    %v724 = vpop.xlane.xlu0 %723
    %v725 = vsel %vm102, %v721, 0.0
    %726 = vadd.xlane.f32.xlu0 %v725
    %v727 = vpop.xlane.xlu0 %726
    %v728 = vrcp.pop 32.0
    %v729 = vmul.f32 32.0, %v728
    %v730 = vsub.f32 1.0, %v729
    %v731 = vmul.f32 %v728, %v730
    %v732 = vadd.f32 %v728, %v731
    %vm733 = vweird.f32 %v728
    %v734 = vsel %vm733, %v728, %v732
    %v735 = vmul.f32 %v724, %v734
    %v736 = vmul.f32 %v727, %v734
    %v737 = vsub.f32 %v720, %v735
    %v738 = vsub.f32 %v721, %v736
    %v739 = vmul.f32 %v737, %v737
    %v740 = vmul.f32 %v738, %v738
    %v741 = vsel %vm102, %v739, 0.0
    %742 = vadd.xlane.f32.xlu0 %v741
    %v743 = vpop.xlane.xlu0 %742
    %v744 = vsel %vm102, %v740, 0.0
    %745 = vadd.xlane.f32.xlu0 %v744
    %v746 = vpop.xlane.xlu0 %745
    %v747 = vmul.f32 %v743, %v734
    %v748 = vmul.f32 %v746, %v734
    %v749 = vadd.f32 %v747, 1e-05
    %v750 = vadd.f32 %v748, 1e-05
    %v751 = vrsqrt.pop %v749
    %v752 = vmul.f32 %v751, %v749
    %v753 = vmul.f32 %v752, %v751
    %v754 = vmul.f32 0.5, %v753
    %v755 = vsub.f32 1.5, %v754
    %v756 = vmul.f32 %v751, %v755
    %vm757 = vweird.f32 %v749
    %vm758 = vweird.f32 %v751
    %vm759 = vmor %vm757, %vm758
    %v760 = vsel %vm759, %v751, %v756
    %v761 = vrsqrt.pop %v750
    %v762 = vmul.f32 %v761, %v750
    %v763 = vmul.f32 %v762, %v761
    %v764 = vmul.f32 0.5, %v763
    %v765 = vsub.f32 1.5, %v764
    %v766 = vmul.f32 %v761, %v765
    %vm767 = vweird.f32 %v750
    %vm768 = vweird.f32 %v761
    %vm769 = vmor %vm767, %vm768
    %v770 = vsel %vm769, %v761, %v766
    %v771 = vmul.f32 %v737, %v760
    %v772 = vmul.f32 %v738, %v770
    %v774 = vperm.slane %v87, 0
    %v776 = vmul.f32 %v771, %v774
    %v777 = vmul.f32 %v772, %v774
    %v779 = vperm.slane %v88, 0
    %v781 = vadd.f32 %v776, %v779
    %v782 = vadd.f32 %v777, %v779
    %v783 = vld [vmem:[%s6] sm:$0xff]
    %v784 = vld [vmem:[%s6 + $0x8] sm:$0xff]
    %v785 = vld [vmem:[%s6 + $0x10] sm:$0xff]
    %v786 = vld [vmem:[%s6 + $0x18] sm:$0xff]
    %v787 = vld [vmem:[%s7] sm:$0x1]
    %v789 = vperm.slane %v787, 0
    %v792 = vsel %vm102, %v781, 0
    %v795 = vsel %vm102, %v782, 0
    %797 = vmatpush.msra.mxu0 0.0
    %798 = vmatpush.msra.mxu0 0.0
    %799 = vmatpush.msra.mxu0 0.0
    %800 = vmatpush.msra.mxu0 0.0
    %801 = vmatpush.msra.mxu0 0.0
    %802 = vmatpush.msra.mxu0 0.0
    %803 = vmatpush.msra.mxu0 0.0
    %804 = vmatpush.msra.mxu0 0.0
    %805 = vmatpush.msra.mxu0 0.0
    %806 = vmatpush.msra.mxu0 0.0
    %807 = vmatpush.msra.mxu0 0.0
    %808 = vmatpush.msra.mxu0 0.0
    %809 = vmatpush.msra.mxu0 %v786
    %810 = vmatpush.msra.mxu0 %v785
    %811 = vmatpush.msra.mxu0 %v784
    %812 = vmatpush.msra.mxu0 %v783
    %813 = vmatmul.f32.gmra.mxu0 %v792
    %v814 = vpop.f32.mrf.mxu0
    %v815 = vadd.f32 %v789, %v814
    %816 = vmatmul.f32.gmra.mxu0 %v795
    %v817 = vpop.f32.mrf.mxu0
    %v818 = vadd.f32 %v789, %v817
    %819 = vdwg.mxu0
    %v820 = vmax.f32 %v815, 0.0
    %v821 = vmax.f32 %v818, 0.0
    %v822 = vld [vmem:[%s8] sm:$0xff]
    %v823 = vld [vmem:[%s8 + $0x8] sm:$0xff]
    %v824 = vld [vmem:[%s8 + $0x10] sm:$0xff]
    %v825 = vld [vmem:[%s8 + $0x18] sm:$0xff]
    %v826 = vld [vmem:[%s8 + $0x20] sm:$0xff]
    %v827 = vld [vmem:[%s8 + $0x28] sm:$0xff]
    %v828 = vld [vmem:[%s8 + $0x30] sm:$0xff]
    %v829 = vld [vmem:[%s8 + $0x38] sm:$0xff]
    %v830 = vld [vmem:[%s9] sm:$0x1]
    %v832 = vperm.slane %v830, 0
    %vm834 = vcmask 523264
    %v836 = vsel %vm834, %v820, 0
    %v839 = vsel %vm834, %v821, 0
    %841 = vmatpush.msra.mxu0 0.0
    %842 = vmatpush.msra.mxu0 0.0
    %843 = vmatpush.msra.mxu0 0.0
    %844 = vmatpush.msra.mxu0 0.0
    %845 = vmatpush.msra.mxu0 0.0
    %846 = vmatpush.msra.mxu0 0.0
    %847 = vmatpush.msra.mxu0 0.0
    %848 = vmatpush.msra.mxu0 0.0
    %849 = vmatpush.msra.mxu0 %v829
    %850 = vmatpush.msra.mxu0 %v828
    %851 = vmatpush.msra.mxu0 %v827
    %852 = vmatpush.msra.mxu0 %v826
    %853 = vmatpush.msra.mxu0 %v825
    %854 = vmatpush.msra.mxu0 %v824
    %855 = vmatpush.msra.mxu0 %v823
    %856 = vmatpush.msra.mxu0 %v822
    %857 = vmatmul.f32.gmra.mxu0 %v836
    %v858 = vpop.f32.mrf.mxu0
    %v859 = vadd.f32 %v832, %v858
    %860 = vmatmul.f32.gmra.mxu0 %v839
    %v861 = vpop.f32.mrf.mxu0
    %v862 = vadd.f32 %v832, %v861
    %863 = vdwg.mxu0
    %v864 = vadd.f32 %v781, %v859
    %v865 = vadd.f32 %v782, %v862
    %v866 = vsel %vm102, %v864, 0.0
    %867 = vadd.xlane.f32.xlu0 %v866
    %v868 = vpop.xlane.xlu0 %867
    %v869 = vsel %vm102, %v865, 0.0
    %870 = vadd.xlane.f32.xlu0 %v869
    %v871 = vpop.xlane.xlu0 %870
    %v872 = vmul.f32 %v868, %v734
    %v873 = vmul.f32 %v871, %v734
    %v874 = vsub.f32 %v864, %v872
    %v875 = vsub.f32 %v865, %v873
    %v876 = vmul.f32 %v874, %v874
    %v877 = vmul.f32 %v875, %v875
    %v878 = vsel %vm102, %v876, 0.0
    %879 = vadd.xlane.f32.xlu0 %v878
    %v880 = vpop.xlane.xlu0 %879
    %v881 = vsel %vm102, %v877, 0.0
    %882 = vadd.xlane.f32.xlu0 %v881
    %v883 = vpop.xlane.xlu0 %882
    %v884 = vmul.f32 %v880, %v734
    %v885 = vmul.f32 %v883, %v734
    %v886 = vadd.f32 %v884, 1e-05
    %v887 = vadd.f32 %v885, 1e-05
    %v888 = vrsqrt.pop %v886
    %v889 = vmul.f32 %v888, %v886
    %v890 = vmul.f32 %v889, %v888
    %v891 = vmul.f32 0.5, %v890
    %v892 = vsub.f32 1.5, %v891
    %v893 = vmul.f32 %v888, %v892
    %vm894 = vweird.f32 %v886
    %vm895 = vweird.f32 %v888
    %vm896 = vmor %vm894, %vm895
    %v897 = vsel %vm896, %v888, %v893
    %v898 = vrsqrt.pop %v887
    %v899 = vmul.f32 %v898, %v887
    %v900 = vmul.f32 %v899, %v898
    %v901 = vmul.f32 0.5, %v900
    %v902 = vsub.f32 1.5, %v901
    %v903 = vmul.f32 %v898, %v902
    %vm904 = vweird.f32 %v887
    %vm905 = vweird.f32 %v898
    %vm906 = vmor %vm904, %vm905
    %v907 = vsel %vm906, %v898, %v903
    %v908 = vmul.f32 %v874, %v897
    %v909 = vmul.f32 %v875, %v907
    %v910 = vmul.f32 %v908, %v774
    %v911 = vmul.f32 %v909, %v774
    %v912 = vadd.f32 %v910, %v779
    %v913 = vadd.f32 %v911, %v779
    %s914 = scalar_lea.vmem %s2, 32
    %v915 = vld [vmem:[%s914] sm:$0xff]
    %v916 = vld [vmem:[%s914 + $0x8] sm:$0xff]
    %v917 = vld [vmem:[%s914 + $0x10] sm:$0xff]
    %v918 = vld [vmem:[%s914 + $0x18] sm:$0xff]
    %s919 = scalar_lea.vmem %s3, 1
    %v920 = vld [vmem:[%s919] sm:$0x1]
    %v922 = vperm.slane %v920, 0
    %v925 = vsel %vm102, %v912, 0
    %v928 = vsel %vm102, %v913, 0
    %930 = vmatpush.msra.mxu0 0.0
    %931 = vmatpush.msra.mxu0 0.0
    %932 = vmatpush.msra.mxu0 0.0
    %933 = vmatpush.msra.mxu0 0.0
    %934 = vmatpush.msra.mxu0 0.0
    %935 = vmatpush.msra.mxu0 0.0
    %936 = vmatpush.msra.mxu0 0.0
    %937 = vmatpush.msra.mxu0 0.0
    %938 = vmatpush.msra.mxu0 0.0
    %939 = vmatpush.msra.mxu0 0.0
    %940 = vmatpush.msra.mxu0 0.0
    %941 = vmatpush.msra.mxu0 0.0
    %942 = vmatpush.msra.mxu0 %v918
    %943 = vmatpush.msra.mxu0 %v917
    %944 = vmatpush.msra.mxu0 %v916
    %945 = vmatpush.msra.mxu0 %v915
    %946 = vmatmul.f32.gmra.mxu0 %v925
    %v947 = vpop.f32.mrf.mxu0
    %v948 = vadd.f32 %v922, %v947
    %949 = vmatmul.f32.gmra.mxu0 %v928
    %v950 = vpop.f32.mrf.mxu0
    %v951 = vadd.f32 %v922, %v950
    %952 = vdwg.mxu0
    %955 = vrot.lane.b32.xlu0 %v948, 120
    %v956 = vpop.permute.xlu0 %955
    %957 = vrot.lane.b32.xlu0 %v951, 120
    %v958 = vpop.permute.xlu0 %957
    %959 = vrot.lane.b32.xlu0 %v948, 112
    %v960 = vpop.permute.xlu0 %959
    %961 = vrot.lane.b32.xlu0 %v951, 112
    %v962 = vpop.permute.xlu0 %961
    %963 = vrot.lane.b32.xlu0 %v948, 104
    %v964 = vpop.permute.xlu0 %963
    %965 = vrot.lane.b32.xlu0 %v951, 104
    %v966 = vpop.permute.xlu0 %965
    %967 = vrot.lane.b32.xlu0 %v948, 96
    %v968 = vpop.permute.xlu0 %967
    %v969 = vsel %vm148, %v948, 0
    %v971 = vsel %vm148, %v968, 0
    %973 = vmatpush.xpose.msra.mxu0 0.0
    %974 = vmatpush.xpose.msra.mxu0 0.0
    %975 = vmatpush.xpose.msra.mxu0 0.0
    %976 = vmatpush.xpose.msra.mxu0 0.0
    %977 = vmatpush.xpose.msra.mxu0 0.0
    %978 = vmatpush.xpose.msra.mxu0 0.0
    %979 = vmatpush.xpose.msra.mxu0 0.0
    %980 = vmatpush.xpose.msra.mxu0 0.0
    %981 = vmatpush.xpose.msra.mxu0 0.0
    %982 = vmatpush.xpose.msra.mxu0 0.0
    %983 = vmatpush.xpose.msra.mxu0 0.0
    %984 = vmatpush.xpose.msra.mxu0 0.0
    %985 = vmatpush.xpose.msra.mxu0 0.0
    %986 = vmatpush.xpose.msra.mxu0 0.0
    %987 = vmatpush.xpose.msra.mxu0 0.0
    %988 = vmatpush.xpose.msra.mxu0 %v971
    %989 = vmatmul.f32.gmra.mxu0 %v969
    %v990 = vpop.f32.mrf.mxu0
    %v991 = vadd.f32 0.0, %v990
    %992 = vdwg.mxu0
    %993 = vrot.lane.b32.xlu0 %v951, 96
    %v994 = vpop.permute.xlu0 %993
    %v995 = vsel %vm148, %v951, 0
    %v997 = vsel %vm148, %v994, 0
    %999 = vmatpush.xpose.msra.mxu0 0.0
    %1000 = vmatpush.xpose.msra.mxu0 0.0
    %1001 = vmatpush.xpose.msra.mxu0 0.0
    %1002 = vmatpush.xpose.msra.mxu0 0.0
    %1003 = vmatpush.xpose.msra.mxu0 0.0
    %1004 = vmatpush.xpose.msra.mxu0 0.0
    %1005 = vmatpush.xpose.msra.mxu0 0.0
    %1006 = vmatpush.xpose.msra.mxu0 0.0
    %1007 = vmatpush.xpose.msra.mxu0 0.0
    %1008 = vmatpush.xpose.msra.mxu0 0.0
    %1009 = vmatpush.xpose.msra.mxu0 0.0
    %1010 = vmatpush.xpose.msra.mxu0 0.0
    %1011 = vmatpush.xpose.msra.mxu0 0.0
    %1012 = vmatpush.xpose.msra.mxu0 0.0
    %1013 = vmatpush.xpose.msra.mxu0 0.0
    %1014 = vmatpush.xpose.msra.mxu0 %v997
    %1015 = vmatmul.f32.gmra.mxu0 %v995
    %v1016 = vpop.f32.mrf.mxu0
    %v1017 = vadd.f32 0.0, %v1016
    %1018 = vdwg.mxu0
    %1019 = vrot.lane.b32.xlu0 %v956, 96
    %v1020 = vpop.permute.xlu0 %1019
    %v1021 = vsel %vm148, %v956, 0
    %v1023 = vsel %vm148, %v1020, 0
    %1025 = vmatpush.xpose.msra.mxu0 0.0
    %1026 = vmatpush.xpose.msra.mxu0 0.0
    %1027 = vmatpush.xpose.msra.mxu0 0.0
    %1028 = vmatpush.xpose.msra.mxu0 0.0
    %1029 = vmatpush.xpose.msra.mxu0 0.0
    %1030 = vmatpush.xpose.msra.mxu0 0.0
    %1031 = vmatpush.xpose.msra.mxu0 0.0
    %1032 = vmatpush.xpose.msra.mxu0 0.0
    %1033 = vmatpush.xpose.msra.mxu0 0.0
    %1034 = vmatpush.xpose.msra.mxu0 0.0
    %1035 = vmatpush.xpose.msra.mxu0 0.0
    %1036 = vmatpush.xpose.msra.mxu0 0.0
    %1037 = vmatpush.xpose.msra.mxu0 0.0
    %1038 = vmatpush.xpose.msra.mxu0 0.0
    %1039 = vmatpush.xpose.msra.mxu0 0.0
    %1040 = vmatpush.xpose.msra.mxu0 %v1023
    %1041 = vmatmul.f32.gmra.mxu0 %v1021
    %v1042 = vpop.f32.mrf.mxu0
    %v1043 = vadd.f32 0.0, %v1042
    %1044 = vdwg.mxu0
    %1045 = vrot.lane.b32.xlu0 %v958, 96
    %v1046 = vpop.permute.xlu0 %1045
    %v1047 = vsel %vm148, %v958, 0
    %v1049 = vsel %vm148, %v1046, 0
    %1051 = vmatpush.xpose.msra.mxu0 0.0
    %1052 = vmatpush.xpose.msra.mxu0 0.0
    %1053 = vmatpush.xpose.msra.mxu0 0.0
    %1054 = vmatpush.xpose.msra.mxu0 0.0
    %1055 = vmatpush.xpose.msra.mxu0 0.0
    %1056 = vmatpush.xpose.msra.mxu0 0.0
    %1057 = vmatpush.xpose.msra.mxu0 0.0
    %1058 = vmatpush.xpose.msra.mxu0 0.0
    %1059 = vmatpush.xpose.msra.mxu0 0.0
    %1060 = vmatpush.xpose.msra.mxu0 0.0
    %1061 = vmatpush.xpose.msra.mxu0 0.0
    %1062 = vmatpush.xpose.msra.mxu0 0.0
    %1063 = vmatpush.xpose.msra.mxu0 0.0
    %1064 = vmatpush.xpose.msra.mxu0 0.0
    %1065 = vmatpush.xpose.msra.mxu0 0.0
    %1066 = vmatpush.xpose.msra.mxu0 %v1049
    %1067 = vmatmul.f32.gmra.mxu0 %v1047
    %v1068 = vpop.f32.mrf.mxu0
    %v1069 = vadd.f32 0.0, %v1068
    %1070 = vdwg.mxu0
    %1071 = vrot.lane.b32.xlu0 %v960, 96
    %v1072 = vpop.permute.xlu0 %1071
    %v1073 = vsel %vm148, %v960, 0
    %v1075 = vsel %vm148, %v1072, 0
    %1077 = vmatpush.xpose.msra.mxu0 0.0
    %1078 = vmatpush.xpose.msra.mxu0 0.0
    %1079 = vmatpush.xpose.msra.mxu0 0.0
    %1080 = vmatpush.xpose.msra.mxu0 0.0
    %1081 = vmatpush.xpose.msra.mxu0 0.0
    %1082 = vmatpush.xpose.msra.mxu0 0.0
    %1083 = vmatpush.xpose.msra.mxu0 0.0
    %1084 = vmatpush.xpose.msra.mxu0 0.0
    %1085 = vmatpush.xpose.msra.mxu0 0.0
    %1086 = vmatpush.xpose.msra.mxu0 0.0
    %1087 = vmatpush.xpose.msra.mxu0 0.0
    %1088 = vmatpush.xpose.msra.mxu0 0.0
    %1089 = vmatpush.xpose.msra.mxu0 0.0
    %1090 = vmatpush.xpose.msra.mxu0 0.0
    %1091 = vmatpush.xpose.msra.mxu0 0.0
    %1092 = vmatpush.xpose.msra.mxu0 %v1075
    %1093 = vmatmul.f32.gmra.mxu0 %v1073
    %v1094 = vpop.f32.mrf.mxu0
    %v1095 = vadd.f32 0.0, %v1094
    %1096 = vdwg.mxu0
    %1097 = vrot.lane.b32.xlu0 %v962, 96
    %v1098 = vpop.permute.xlu0 %1097
    %v1099 = vsel %vm148, %v962, 0
    %v1101 = vsel %vm148, %v1098, 0
    %1103 = vmatpush.xpose.msra.mxu0 0.0
    %1104 = vmatpush.xpose.msra.mxu0 0.0
    %1105 = vmatpush.xpose.msra.mxu0 0.0
    %1106 = vmatpush.xpose.msra.mxu0 0.0
    %1107 = vmatpush.xpose.msra.mxu0 0.0
    %1108 = vmatpush.xpose.msra.mxu0 0.0
    %1109 = vmatpush.xpose.msra.mxu0 0.0
    %1110 = vmatpush.xpose.msra.mxu0 0.0
    %1111 = vmatpush.xpose.msra.mxu0 0.0
    %1112 = vmatpush.xpose.msra.mxu0 0.0
    %1113 = vmatpush.xpose.msra.mxu0 0.0
    %1114 = vmatpush.xpose.msra.mxu0 0.0
    %1115 = vmatpush.xpose.msra.mxu0 0.0
    %1116 = vmatpush.xpose.msra.mxu0 0.0
    %1117 = vmatpush.xpose.msra.mxu0 0.0
    %1118 = vmatpush.xpose.msra.mxu0 %v1101
    %1119 = vmatmul.f32.gmra.mxu0 %v1099
    %v1120 = vpop.f32.mrf.mxu0
    %v1121 = vadd.f32 0.0, %v1120
    %1122 = vdwg.mxu0
    %1123 = vrot.lane.b32.xlu0 %v964, 96
    %v1124 = vpop.permute.xlu0 %1123
    %v1125 = vsel %vm148, %v964, 0
    %v1127 = vsel %vm148, %v1124, 0
    %1129 = vmatpush.xpose.msra.mxu0 0.0
    %1130 = vmatpush.xpose.msra.mxu0 0.0
    %1131 = vmatpush.xpose.msra.mxu0 0.0
    %1132 = vmatpush.xpose.msra.mxu0 0.0
    %1133 = vmatpush.xpose.msra.mxu0 0.0
    %1134 = vmatpush.xpose.msra.mxu0 0.0
    %1135 = vmatpush.xpose.msra.mxu0 0.0
    %1136 = vmatpush.xpose.msra.mxu0 0.0
    %1137 = vmatpush.xpose.msra.mxu0 0.0
    %1138 = vmatpush.xpose.msra.mxu0 0.0
    %1139 = vmatpush.xpose.msra.mxu0 0.0
    %1140 = vmatpush.xpose.msra.mxu0 0.0
    %1141 = vmatpush.xpose.msra.mxu0 0.0
    %1142 = vmatpush.xpose.msra.mxu0 0.0
    %1143 = vmatpush.xpose.msra.mxu0 0.0
    %1144 = vmatpush.xpose.msra.mxu0 %v1127
    %1145 = vmatmul.f32.gmra.mxu0 %v1125
    %v1146 = vpop.f32.mrf.mxu0
    %v1147 = vadd.f32 0.0, %v1146
    %1148 = vdwg.mxu0
    %1149 = vrot.lane.b32.xlu0 %v966, 96
    %v1150 = vpop.permute.xlu0 %1149
    %v1151 = vsel %vm148, %v966, 0
    %v1153 = vsel %vm148, %v1150, 0
    %1155 = vmatpush.xpose.msra.mxu0 0.0
    %1156 = vmatpush.xpose.msra.mxu0 0.0
    %1157 = vmatpush.xpose.msra.mxu0 0.0
    %1158 = vmatpush.xpose.msra.mxu0 0.0
    %1159 = vmatpush.xpose.msra.mxu0 0.0
    %1160 = vmatpush.xpose.msra.mxu0 0.0
    %1161 = vmatpush.xpose.msra.mxu0 0.0
    %1162 = vmatpush.xpose.msra.mxu0 0.0
    %1163 = vmatpush.xpose.msra.mxu0 0.0
    %1164 = vmatpush.xpose.msra.mxu0 0.0
    %1165 = vmatpush.xpose.msra.mxu0 0.0
    %1166 = vmatpush.xpose.msra.mxu0 0.0
    %1167 = vmatpush.xpose.msra.mxu0 0.0
    %1168 = vmatpush.xpose.msra.mxu0 0.0
    %1169 = vmatpush.xpose.msra.mxu0 0.0
    %1170 = vmatpush.xpose.msra.mxu0 %v1153
    %1171 = vmatmul.f32.gmra.mxu0 %v1151
    %v1172 = vpop.f32.mrf.mxu0
    %v1173 = vadd.f32 0.0, %v1172
    %1174 = vdwg.mxu0
    %v1175 = vsel %vm148, %v991, -inf
    %1176 = vmax.xlane.f32.xlu0 %v1175
    %v1177 = vpop.xlane.xlu0 %1176
    %v1178 = vsel %vm148, %v1017, -inf
    %1179 = vmax.xlane.f32.xlu0 %v1178
    %v1180 = vpop.xlane.xlu0 %1179
    %v1181 = vsel %vm148, %v1043, -inf
    %1182 = vmax.xlane.f32.xlu0 %v1181
    %v1183 = vpop.xlane.xlu0 %1182
    %v1184 = vsel %vm148, %v1069, -inf
    %1185 = vmax.xlane.f32.xlu0 %v1184
    %v1186 = vpop.xlane.xlu0 %1185
    %v1187 = vsel %vm148, %v1095, -inf
    %1188 = vmax.xlane.f32.xlu0 %v1187
    %v1189 = vpop.xlane.xlu0 %1188
    %v1190 = vsel %vm148, %v1121, -inf
    %1191 = vmax.xlane.f32.xlu0 %v1190
    %v1192 = vpop.xlane.xlu0 %1191
    %v1193 = vsel %vm148, %v1147, -inf
    %1194 = vmax.xlane.f32.xlu0 %v1193
    %v1195 = vpop.xlane.xlu0 %1194
    %v1196 = vsel %vm148, %v1173, -inf
    %1197 = vmax.xlane.f32.xlu0 %v1196
    %v1198 = vpop.xlane.xlu0 %1197
    %v1199 = vsub.f32 %v991, %v1177
    %v1200 = vsub.f32 %v1017, %v1180
    %v1201 = vsub.f32 %v1043, %v1183
    %v1202 = vsub.f32 %v1069, %v1186
    %v1203 = vsub.f32 %v1095, %v1189
    %v1204 = vsub.f32 %v1121, %v1192
    %v1205 = vsub.f32 %v1147, %v1195
    %v1206 = vsub.f32 %v1173, %v1198
    %v1207 = vmul.f32 %v1199, 1.442695
    %v1208 = vpow.pop %v1207
    %v1209 = vmul.f32 %v1200, 1.442695
    %v1210 = vpow.pop %v1209
    %v1211 = vmul.f32 %v1201, 1.442695
    %v1212 = vpow.pop %v1211
    %v1213 = vmul.f32 %v1202, 1.442695
    %v1214 = vpow.pop %v1213
    %v1215 = vmul.f32 %v1203, 1.442695
    %v1216 = vpow.pop %v1215
    %v1217 = vmul.f32 %v1204, 1.442695
    %v1218 = vpow.pop %v1217
    %v1219 = vmul.f32 %v1205, 1.442695
    %v1220 = vpow.pop %v1219
    %v1221 = vmul.f32 %v1206, 1.442695
    %v1222 = vpow.pop %v1221
    %v1223 = vsel %vm148, %v1208, 0.0
    %1224 = vadd.xlane.f32.xlu0 %v1223
    %v1225 = vpop.xlane.xlu0 %1224
    %v1226 = vsel %vm148, %v1210, 0.0
    %1227 = vadd.xlane.f32.xlu0 %v1226
    %v1228 = vpop.xlane.xlu0 %1227
    %v1229 = vsel %vm148, %v1212, 0.0
    %1230 = vadd.xlane.f32.xlu0 %v1229
    %v1231 = vpop.xlane.xlu0 %1230
    %v1232 = vsel %vm148, %v1214, 0.0
    %1233 = vadd.xlane.f32.xlu0 %v1232
    %v1234 = vpop.xlane.xlu0 %1233
    %v1235 = vsel %vm148, %v1216, 0.0
    %1236 = vadd.xlane.f32.xlu0 %v1235
    %v1237 = vpop.xlane.xlu0 %1236
    %v1238 = vsel %vm148, %v1218, 0.0
    %1239 = vadd.xlane.f32.xlu0 %v1238
    %v1240 = vpop.xlane.xlu0 %1239
    %v1241 = vsel %vm148, %v1220, 0.0
    %1242 = vadd.xlane.f32.xlu0 %v1241
    %v1243 = vpop.xlane.xlu0 %1242
    %v1244 = vsel %vm148, %v1222, 0.0
    %1245 = vadd.xlane.f32.xlu0 %v1244
    %v1246 = vpop.xlane.xlu0 %1245
    %v1247 = vrcp.pop %v1225
    %v1248 = vrcp.pop %v1228
    %v1249 = vrcp.pop %v1231
    %v1250 = vrcp.pop %v1234
    %v1251 = vrcp.pop %v1237
    %v1252 = vrcp.pop %v1240
    %v1253 = vrcp.pop %v1243
    %v1254 = vrcp.pop %v1246
    %v1255 = vmul.f32 %v1208, %v1247
    %v1256 = vmul.f32 %v1210, %v1248
    %v1257 = vmul.f32 %v1212, %v1249
    %v1258 = vmul.f32 %v1214, %v1250
    %v1259 = vmul.f32 %v1216, %v1251
    %v1260 = vmul.f32 %v1218, %v1252
    %v1261 = vmul.f32 %v1220, %v1253
    %v1262 = vmul.f32 %v1222, %v1254
    %1263 = vrot.lane.b32.xlu0 %v948, 64
    %v1264 = vpop.permute.xlu0 %1263
    %v1267 = vsel %vm148, %v1255, 0
    %1269 = vmatpush.msra.mxu0 0.0
    %1270 = vmatpush.msra.mxu0 0.0
    %1271 = vmatpush.msra.mxu0 0.0
    %1272 = vmatpush.msra.mxu0 0.0
    %1273 = vmatpush.msra.mxu0 0.0
    %1274 = vmatpush.msra.mxu0 0.0
    %1275 = vmatpush.msra.mxu0 0.0
    %1276 = vmatpush.msra.mxu0 0.0
    %1277 = vmatpush.msra.mxu0 0.0
    %1278 = vmatpush.msra.mxu0 0.0
    %1279 = vmatpush.msra.mxu0 0.0
    %1280 = vmatpush.msra.mxu0 0.0
    %1281 = vmatpush.msra.mxu0 0.0
    %1282 = vmatpush.msra.mxu0 0.0
    %1283 = vmatpush.msra.mxu0 0.0
    %1284 = vmatpush.msra.mxu0 %v1264
    %1285 = vmatmul.f32.gmra.mxu0 %v1267
    %v1286 = vpop.f32.mrf.mxu0
    %v1287 = vadd.f32 0.0, %v1286
    %1288 = vdwg.mxu0
    %1289 = vrot.lane.b32.xlu0 %v951, 64
    %v1290 = vpop.permute.xlu0 %1289
    %v1293 = vsel %vm148, %v1256, 0
    %1295 = vmatpush.msra.mxu0 0.0
    %1296 = vmatpush.msra.mxu0 0.0
    %1297 = vmatpush.msra.mxu0 0.0
    %1298 = vmatpush.msra.mxu0 0.0
    %1299 = vmatpush.msra.mxu0 0.0
    %1300 = vmatpush.msra.mxu0 0.0
    %1301 = vmatpush.msra.mxu0 0.0
    %1302 = vmatpush.msra.mxu0 0.0
    %1303 = vmatpush.msra.mxu0 0.0
    %1304 = vmatpush.msra.mxu0 0.0
    %1305 = vmatpush.msra.mxu0 0.0
    %1306 = vmatpush.msra.mxu0 0.0
    %1307 = vmatpush.msra.mxu0 0.0
    %1308 = vmatpush.msra.mxu0 0.0
    %1309 = vmatpush.msra.mxu0 0.0
    %1310 = vmatpush.msra.mxu0 %v1290
    %1311 = vmatmul.f32.gmra.mxu0 %v1293
    %v1312 = vpop.f32.mrf.mxu0
    %v1313 = vadd.f32 0.0, %v1312
    %1314 = vdwg.mxu0
    %1315 = vrot.lane.b32.xlu0 %v956, 64
    %v1316 = vpop.permute.xlu0 %1315
    %v1319 = vsel %vm148, %v1257, 0
    %1321 = vmatpush.msra.mxu0 0.0
    %1322 = vmatpush.msra.mxu0 0.0
    %1323 = vmatpush.msra.mxu0 0.0
    %1324 = vmatpush.msra.mxu0 0.0
    %1325 = vmatpush.msra.mxu0 0.0
    %1326 = vmatpush.msra.mxu0 0.0
    %1327 = vmatpush.msra.mxu0 0.0
    %1328 = vmatpush.msra.mxu0 0.0
    %1329 = vmatpush.msra.mxu0 0.0
    %1330 = vmatpush.msra.mxu0 0.0
    %1331 = vmatpush.msra.mxu0 0.0
    %1332 = vmatpush.msra.mxu0 0.0
    %1333 = vmatpush.msra.mxu0 0.0
    %1334 = vmatpush.msra.mxu0 0.0
    %1335 = vmatpush.msra.mxu0 0.0
    %1336 = vmatpush.msra.mxu0 %v1316
    %1337 = vmatmul.f32.gmra.mxu0 %v1319
    %v1338 = vpop.f32.mrf.mxu0
    %v1339 = vadd.f32 0.0, %v1338
    %1340 = vdwg.mxu0
    %1341 = vrot.lane.b32.xlu0 %v958, 64
    %v1342 = vpop.permute.xlu0 %1341
    %v1345 = vsel %vm148, %v1258, 0
    %1347 = vmatpush.msra.mxu0 0.0
    %1348 = vmatpush.msra.mxu0 0.0
    %1349 = vmatpush.msra.mxu0 0.0
    %1350 = vmatpush.msra.mxu0 0.0
    %1351 = vmatpush.msra.mxu0 0.0
    %1352 = vmatpush.msra.mxu0 0.0
    %1353 = vmatpush.msra.mxu0 0.0
    %1354 = vmatpush.msra.mxu0 0.0
    %1355 = vmatpush.msra.mxu0 0.0
    %1356 = vmatpush.msra.mxu0 0.0
    %1357 = vmatpush.msra.mxu0 0.0
    %1358 = vmatpush.msra.mxu0 0.0
    %1359 = vmatpush.msra.mxu0 0.0
    %1360 = vmatpush.msra.mxu0 0.0
    %1361 = vmatpush.msra.mxu0 0.0
    %1362 = vmatpush.msra.mxu0 %v1342
    %1363 = vmatmul.f32.gmra.mxu0 %v1345
    %v1364 = vpop.f32.mrf.mxu0
    %v1365 = vadd.f32 0.0, %v1364
    %1366 = vdwg.mxu0
    %1367 = vrot.lane.b32.xlu0 %v960, 64
    %v1368 = vpop.permute.xlu0 %1367
    %v1371 = vsel %vm148, %v1259, 0
    %1373 = vmatpush.msra.mxu0 0.0
    %1374 = vmatpush.msra.mxu0 0.0
    %1375 = vmatpush.msra.mxu0 0.0
    %1376 = vmatpush.msra.mxu0 0.0
    %1377 = vmatpush.msra.mxu0 0.0
    %1378 = vmatpush.msra.mxu0 0.0
    %1379 = vmatpush.msra.mxu0 0.0
    %1380 = vmatpush.msra.mxu0 0.0
    %1381 = vmatpush.msra.mxu0 0.0
    %1382 = vmatpush.msra.mxu0 0.0
    %1383 = vmatpush.msra.mxu0 0.0
    %1384 = vmatpush.msra.mxu0 0.0
    %1385 = vmatpush.msra.mxu0 0.0
    %1386 = vmatpush.msra.mxu0 0.0
    %1387 = vmatpush.msra.mxu0 0.0
    %1388 = vmatpush.msra.mxu0 %v1368
    %1389 = vmatmul.f32.gmra.mxu0 %v1371
    %v1390 = vpop.f32.mrf.mxu0
    %v1391 = vadd.f32 0.0, %v1390
    %1392 = vdwg.mxu0
    %1393 = vrot.lane.b32.xlu0 %v962, 64
    %v1394 = vpop.permute.xlu0 %1393
    %v1397 = vsel %vm148, %v1260, 0
    %1399 = vmatpush.msra.mxu0 0.0
    %1400 = vmatpush.msra.mxu0 0.0
    %1401 = vmatpush.msra.mxu0 0.0
    %1402 = vmatpush.msra.mxu0 0.0
    %1403 = vmatpush.msra.mxu0 0.0
    %1404 = vmatpush.msra.mxu0 0.0
    %1405 = vmatpush.msra.mxu0 0.0
    %1406 = vmatpush.msra.mxu0 0.0
    %1407 = vmatpush.msra.mxu0 0.0
    %1408 = vmatpush.msra.mxu0 0.0
    %1409 = vmatpush.msra.mxu0 0.0
    %1410 = vmatpush.msra.mxu0 0.0
    %1411 = vmatpush.msra.mxu0 0.0
    %1412 = vmatpush.msra.mxu0 0.0
    %1413 = vmatpush.msra.mxu0 0.0
    %1414 = vmatpush.msra.mxu0 %v1394
    %1415 = vmatmul.f32.gmra.mxu0 %v1397
    %v1416 = vpop.f32.mrf.mxu0
    %v1417 = vadd.f32 0.0, %v1416
    %1418 = vdwg.mxu0
    %1419 = vrot.lane.b32.xlu0 %v964, 64
    %v1420 = vpop.permute.xlu0 %1419
    %v1423 = vsel %vm148, %v1261, 0
    %1425 = vmatpush.msra.mxu0 0.0
    %1426 = vmatpush.msra.mxu0 0.0
    %1427 = vmatpush.msra.mxu0 0.0
    %1428 = vmatpush.msra.mxu0 0.0
    %1429 = vmatpush.msra.mxu0 0.0
    %1430 = vmatpush.msra.mxu0 0.0
    %1431 = vmatpush.msra.mxu0 0.0
    %1432 = vmatpush.msra.mxu0 0.0
    %1433 = vmatpush.msra.mxu0 0.0
    %1434 = vmatpush.msra.mxu0 0.0
    %1435 = vmatpush.msra.mxu0 0.0
    %1436 = vmatpush.msra.mxu0 0.0
    %1437 = vmatpush.msra.mxu0 0.0
    %1438 = vmatpush.msra.mxu0 0.0
    %1439 = vmatpush.msra.mxu0 0.0
    %1440 = vmatpush.msra.mxu0 %v1420
    %1441 = vmatmul.f32.gmra.mxu0 %v1423
    %v1442 = vpop.f32.mrf.mxu0
    %v1443 = vadd.f32 0.0, %v1442
    %1444 = vdwg.mxu0
    %1445 = vrot.lane.b32.xlu0 %v966, 64
    %v1446 = vpop.permute.xlu0 %1445
    %v1449 = vsel %vm148, %v1262, 0
    %1451 = vmatpush.msra.mxu0 0.0
    %1452 = vmatpush.msra.mxu0 0.0
    %1453 = vmatpush.msra.mxu0 0.0
    %1454 = vmatpush.msra.mxu0 0.0
    %1455 = vmatpush.msra.mxu0 0.0
    %1456 = vmatpush.msra.mxu0 0.0
    %1457 = vmatpush.msra.mxu0 0.0
    %1458 = vmatpush.msra.mxu0 0.0
    %1459 = vmatpush.msra.mxu0 0.0
    %1460 = vmatpush.msra.mxu0 0.0
    %1461 = vmatpush.msra.mxu0 0.0
    %1462 = vmatpush.msra.mxu0 0.0
    %1463 = vmatpush.msra.mxu0 0.0
    %1464 = vmatpush.msra.mxu0 0.0
    %1465 = vmatpush.msra.mxu0 0.0
    %1466 = vmatpush.msra.mxu0 %v1446
    %1467 = vmatmul.f32.gmra.mxu0 %v1449
    %v1468 = vpop.f32.mrf.mxu0
    %v1469 = vadd.f32 0.0, %v1468
    %1470 = vdwg.mxu0
    %1473 = vrot.lane.b32.xlu0 %v1339, 8
    %v1474 = vpop.permute.xlu0 %1473
    %1475 = vrot.lane.b32.xlu0 %v1365, 8
    %v1476 = vpop.permute.xlu0 %1475
    %1481 = vrot.lane.b32.xlu0 %v1391, 16
    %v1482 = vpop.permute.xlu0 %1481
    %1483 = vrot.lane.b32.xlu0 %v1417, 16
    %v1484 = vpop.permute.xlu0 %1483
    %1489 = vrot.lane.b32.xlu0 %v1443, 24
    %v1490 = vpop.permute.xlu0 %1489
    %1491 = vrot.lane.b32.xlu0 %v1469, 24
    %v1492 = vpop.permute.xlu0 %1491
    %v1495 = vsel %vm148, %v1287, %v1474
    %v1496 = vsel %vm148, %v1313, %v1476
    %v1497 = vsel %vm677, %v1495, %v1482
    %v1498 = vsel %vm677, %v1496, %v1484
    %v1499 = vsel %vm680, %v1497, %v1490
    %v1500 = vsel %vm680, %v1498, %v1492
    %s1501 = scalar_lea.vmem %s4, 32
    %v1502 = vld [vmem:[%s1501] sm:$0xff]
    %v1503 = vld [vmem:[%s1501 + $0x8] sm:$0xff]
    %v1504 = vld [vmem:[%s1501 + $0x10] sm:$0xff]
    %v1505 = vld [vmem:[%s1501 + $0x18] sm:$0xff]
    %s1506 = scalar_lea.vmem [#allocation7], 1
    %v1507 = vld [vmem:[%s1506] sm:$0x1]
    %v1509 = vperm.slane %v1507, 0
    %v1512 = vsel %vm102, %v1499, 0
    %v1515 = vsel %vm102, %v1500, 0
    %1517 = vmatpush.msra.mxu0 0.0
    %1518 = vmatpush.msra.mxu0 0.0
    %1519 = vmatpush.msra.mxu0 0.0
    %1520 = vmatpush.msra.mxu0 0.0
    %1521 = vmatpush.msra.mxu0 0.0
    %1522 = vmatpush.msra.mxu0 0.0
    %1523 = vmatpush.msra.mxu0 0.0
    %1524 = vmatpush.msra.mxu0 0.0
    %1525 = vmatpush.msra.mxu0 0.0
    %1526 = vmatpush.msra.mxu0 0.0
    %1527 = vmatpush.msra.mxu0 0.0
    %1528 = vmatpush.msra.mxu0 0.0
    %1529 = vmatpush.msra.mxu0 %v1505
    %1530 = vmatpush.msra.mxu0 %v1504
    %1531 = vmatpush.msra.mxu0 %v1503
    %1532 = vmatpush.msra.mxu0 %v1502
    %1533 = vmatmul.f32.gmra.mxu0 %v1512
    %v1534 = vpop.f32.mrf.mxu0
    %v1535 = vadd.f32 %v1509, %v1534
    %1536 = vmatmul.f32.gmra.mxu0 %v1515
    %v1537 = vpop.f32.mrf.mxu0
    %v1538 = vadd.f32 %v1509, %v1537
    %1539 = vdwg.mxu0
    %v1540 = vadd.f32 %v912, %v1535
    %v1541 = vadd.f32 %v913, %v1538
    %v1542 = vsel %vm102, %v1540, 0.0
    %1543 = vadd.xlane.f32.xlu0 %v1542
    %v1544 = vpop.xlane.xlu0 %1543
    %v1545 = vsel %vm102, %v1541, 0.0
    %1546 = vadd.xlane.f32.xlu0 %v1545
    %v1547 = vpop.xlane.xlu0 %1546
    %v1548 = vmul.f32 %v1544, %v734
    %v1549 = vmul.f32 %v1547, %v734
    %v1550 = vsub.f32 %v1540, %v1548
    %v1551 = vsub.f32 %v1541, %v1549
    %v1552 = vmul.f32 %v1550, %v1550
    %v1553 = vmul.f32 %v1551, %v1551
    %v1554 = vsel %vm102, %v1552, 0.0
    %1555 = vadd.xlane.f32.xlu0 %v1554
    %v1556 = vpop.xlane.xlu0 %1555
    %v1557 = vsel %vm102, %v1553, 0.0
    %1558 = vadd.xlane.f32.xlu0 %v1557
    %v1559 = vpop.xlane.xlu0 %1558
    %v1560 = vmul.f32 %v1556, %v734
    %v1561 = vmul.f32 %v1559, %v734
    %v1562 = vadd.f32 %v1560, 1e-05
    %v1563 = vadd.f32 %v1561, 1e-05
    %v1564 = vrsqrt.pop %v1562
    %v1565 = vmul.f32 %v1564, %v1562
    %v1566 = vmul.f32 %v1565, %v1564
    %v1567 = vmul.f32 0.5, %v1566
    %v1568 = vsub.f32 1.5, %v1567
    %v1569 = vmul.f32 %v1564, %v1568
    %vm1570 = vweird.f32 %v1562
    %vm1571 = vweird.f32 %v1564
    %vm1572 = vmor %vm1570, %vm1571
    %v1573 = vsel %vm1572, %v1564, %v1569
    %v1574 = vrsqrt.pop %v1563
    %v1575 = vmul.f32 %v1574, %v1563
    %v1576 = vmul.f32 %v1575, %v1574
    %v1577 = vmul.f32 0.5, %v1576
    %v1578 = vsub.f32 1.5, %v1577
    %v1579 = vmul.f32 %v1574, %v1578
    %vm1580 = vweird.f32 %v1563
    %vm1581 = vweird.f32 %v1574
    %vm1582 = vmor %vm1580, %vm1581
    %v1583 = vsel %vm1582, %v1574, %v1579
    %v1584 = vmul.f32 %v1550, %v1573
    %v1585 = vmul.f32 %v1551, %v1583
    %v1586 = vmul.f32 %v1584, %v774
    %v1587 = vmul.f32 %v1585, %v774
    %v1588 = vadd.f32 %v1586, %v779
    %v1589 = vadd.f32 %v1587, %v779
    %s1590 = scalar_lea.vmem %s6, 32
    %v1591 = vld [vmem:[%s1590] sm:$0xff]
    %v1592 = vld [vmem:[%s1590 + $0x8] sm:$0xff]
    %v1593 = vld [vmem:[%s1590 + $0x10] sm:$0xff]
    %v1594 = vld [vmem:[%s1590 + $0x18] sm:$0xff]
    %s1595 = scalar_lea.vmem %s7, 1
    %v1596 = vld [vmem:[%s1595] sm:$0x1]
    %v1598 = vperm.slane %v1596, 0
    %v1601 = vsel %vm102, %v1588, 0
    %v1604 = vsel %vm102, %v1589, 0
    %1606 = vmatpush.msra.mxu0 0.0
    %1607 = vmatpush.msra.mxu0 0.0
    %1608 = vmatpush.msra.mxu0 0.0
    %1609 = vmatpush.msra.mxu0 0.0
    %1610 = vmatpush.msra.mxu0 0.0
    %1611 = vmatpush.msra.mxu0 0.0
    %1612 = vmatpush.msra.mxu0 0.0
    %1613 = vmatpush.msra.mxu0 0.0
    %1614 = vmatpush.msra.mxu0 0.0
    %1615 = vmatpush.msra.mxu0 0.0
    %1616 = vmatpush.msra.mxu0 0.0
    %1617 = vmatpush.msra.mxu0 0.0
    %1618 = vmatpush.msra.mxu0 %v1594
    %1619 = vmatpush.msra.mxu0 %v1593
    %1620 = vmatpush.msra.mxu0 %v1592
    %1621 = vmatpush.msra.mxu0 %v1591
    %1622 = vmatmul.f32.gmra.mxu0 %v1601
    %v1623 = vpop.f32.mrf.mxu0
    %v1624 = vadd.f32 %v1598, %v1623
    %1625 = vmatmul.f32.gmra.mxu0 %v1604
    %v1626 = vpop.f32.mrf.mxu0
    %v1627 = vadd.f32 %v1598, %v1626
    %1628 = vdwg.mxu0
    %v1629 = vmax.f32 %v1624, 0.0
    %v1630 = vmax.f32 %v1627, 0.0
    %s1631 = scalar_lea.vmem %s8, 64
    %v1632 = vld [vmem:[%s1631] sm:$0xff]
    %v1633 = vld [vmem:[%s1631 + $0x8] sm:$0xff]
    %v1634 = vld [vmem:[%s1631 + $0x10] sm:$0xff]
    %v1635 = vld [vmem:[%s1631 + $0x18] sm:$0xff]
    %v1636 = vld [vmem:[%s1631 + $0x20] sm:$0xff]
    %v1637 = vld [vmem:[%s1631 + $0x28] sm:$0xff]
    %v1638 = vld [vmem:[%s1631 + $0x30] sm:$0xff]
    %v1639 = vld [vmem:[%s1631 + $0x38] sm:$0xff]
    %s1640 = scalar_lea.vmem %s9, 1
    %v1641 = vld [vmem:[%s1640] sm:$0x1]
    %v1643 = vperm.slane %v1641, 0
    %v1646 = vsel %vm834, %v1629, 0
    %v1649 = vsel %vm834, %v1630, 0
    %1651 = vmatpush.msra.mxu0 0.0
    %1652 = vmatpush.msra.mxu0 0.0
    %1653 = vmatpush.msra.mxu0 0.0
    %1654 = vmatpush.msra.mxu0 0.0
    %1655 = vmatpush.msra.mxu0 0.0
    %1656 = vmatpush.msra.mxu0 0.0
    %1657 = vmatpush.msra.mxu0 0.0
    %1658 = vmatpush.msra.mxu0 0.0
    %1659 = vmatpush.msra.mxu0 %v1639
    %1660 = vmatpush.msra.mxu0 %v1638
    %1661 = vmatpush.msra.mxu0 %v1637
    %1662 = vmatpush.msra.mxu0 %v1636
    %1663 = vmatpush.msra.mxu0 %v1635
    %1664 = vmatpush.msra.mxu0 %v1634
    %1665 = vmatpush.msra.mxu0 %v1633
    %1666 = vmatpush.msra.mxu0 %v1632
    %1667 = vmatmul.f32.gmra.mxu0 %v1646
    %v1668 = vpop.f32.mrf.mxu0
    %v1669 = vadd.f32 %v1643, %v1668
    %1670 = vmatmul.f32.gmra.mxu0 %v1649
    %v1671 = vpop.f32.mrf.mxu0
    %v1672 = vadd.f32 %v1643, %v1671
    %1673 = vdwg.mxu0
    %v1674 = vadd.f32 %v1588, %v1669
    %v1675 = vadd.f32 %v1589, %v1672
    %v1676 = vsel %vm102, %v1674, 0.0
    %1677 = vadd.xlane.f32.xlu0 %v1676
    %v1678 = vpop.xlane.xlu0 %1677
    %v1679 = vsel %vm102, %v1675, 0.0
    %1680 = vadd.xlane.f32.xlu0 %v1679
    %v1681 = vpop.xlane.xlu0 %1680
    %v1682 = vmul.f32 %v1678, %v734
    %v1683 = vmul.f32 %v1681, %v734
    %v1684 = vsub.f32 %v1674, %v1682
    %v1685 = vsub.f32 %v1675, %v1683
    %v1686 = vmul.f32 %v1684, %v1684
    %v1687 = vmul.f32 %v1685, %v1685
    %v1688 = vsel %vm102, %v1686, 0.0
    %1689 = vadd.xlane.f32.xlu0 %v1688
    %v1690 = vpop.xlane.xlu0 %1689
    %v1691 = vsel %vm102, %v1687, 0.0
    %1692 = vadd.xlane.f32.xlu0 %v1691
    %v1693 = vpop.xlane.xlu0 %1692
    %v1694 = vmul.f32 %v1690, %v734
    %v1695 = vmul.f32 %v1693, %v734
    %v1696 = vadd.f32 %v1694, 1e-05
    %v1697 = vadd.f32 %v1695, 1e-05
    %v1698 = vrsqrt.pop %v1696
    %v1699 = vmul.f32 %v1698, %v1696
    %v1700 = vmul.f32 %v1699, %v1698
    %v1701 = vmul.f32 0.5, %v1700
    %v1702 = vsub.f32 1.5, %v1701
    %v1703 = vmul.f32 %v1698, %v1702
    %vm1704 = vweird.f32 %v1696
    %vm1705 = vweird.f32 %v1698
    %vm1706 = vmor %vm1704, %vm1705
    %v1707 = vsel %vm1706, %v1698, %v1703
    %v1708 = vrsqrt.pop %v1697
    %v1709 = vmul.f32 %v1708, %v1697
    %v1710 = vmul.f32 %v1709, %v1708
    %v1711 = vmul.f32 0.5, %v1710
    %v1712 = vsub.f32 1.5, %v1711
    %v1713 = vmul.f32 %v1708, %v1712
    %vm1714 = vweird.f32 %v1697
    %vm1715 = vweird.f32 %v1708
    %vm1716 = vmor %vm1714, %vm1715
    %v1717 = vsel %vm1716, %v1708, %v1713
    %v1718 = vmul.f32 %v1684, %v1707
    %v1719 = vmul.f32 %v1685, %v1717
    %v1720 = vmul.f32 %v1718, %v774
    %v1721 = vmul.f32 %v1719, %v774
    %v1722 = vadd.f32 %v1720, %v779
    %v1723 = vadd.f32 %v1721, %v779
    %v1726 = vrot.slane %v1723, 7
    %vm1729 = vcmask 261127
    %1730 = vst.msk [vmem:[#allocation8 - $0x7] sm:$0x80] %vm1729, %v1722
    %vm1731 = vcmask 253952
    %1732 = vst.msk [vmem:[#allocation8 + $0x1] sm:$0x1] %vm1731, %v1726
    // Predicated region
    $region62: #{tpu_custom_call.1} parent=1 // pred_check
      _
    $region63: #{tpu_custom_call.1} parent=1 // pred_check_branch
      %1734 = sbr.rel (0) target = $region65
    $region64: #{tpu_custom_call.1} parent=1 // pred_region
      %1736 = vsyncadd [#allocation4], 0
      %s1738 = sshll.u32 [#allocation8], 4
      %s1739 = int_to_ptr.vmem [resolvable:$true] %s1738
      %s1740 = sshll.u32 %s12, 4
      %s1741 = int_to_ptr.hbm [resolvable:$true] %s1740
      %1743 = dma.vmem_to_hbm [thread:$0]  %s1739, 32, %s1741, [#allocation4]
    $region65: #{tpu_custom_call.1} parent=1 // pred_fallthru
      _
    // Predicated region
    $region66: #{tpu_custom_call.1} parent=1 // pred_check
      _
    $region67: #{tpu_custom_call.1} parent=1 // pred_check_branch
      %1745 = sbr.rel (0) target = $region69
    $region68: #{tpu_custom_call.1} parent=1 // pred_region
      %1747 = dma.done [#allocation4], 32
    $region69: #{tpu_custom_call.1} parent=1 // pred_fallthru
      _
    %1748 = vsyncpa [#allocation3], 1
    %1749 = vsyncpa [#allocation6], 1
    %1750 = vsyncpa [#allocation4], 1

</llo_original>
